<compile_context>
chip_gen: v5e
topology: v5e:2x2
jax: 0.10.0
libtpu: 0.0.40
codegen_flags: <defaults>
</compile_context>

<pallas_src>
import jax
import jax.numpy as jnp
from jax import lax
from jax.experimental import pallas as pl
from jax.experimental.pallas import tpu as pltpu


# ----------------------------------------------------------------------------
# In-kernel helpers
# ----------------------------------------------------------------------------
def _load_band_with_halo(x_ref, band_start, th, H):
    """Rows [band_start-2, band_start+th+2) of x_ref, zero-filled outside [0,H).

    x_ref: (H, W, C) block (bf16).  Returns (th+4, W, C) in x_ref's dtype.
    The core `th` rows are one aligned dynamic slice; the 4 halo rows are
    clamped single-row reads masked with a scalar predicate, so no HBM padding
    pass and no mis-aligned buffer shifts are needed.
    """
    core = x_ref[pl.ds(band_start, th)]                      # (th, W, C)

    def edge_row(g):
        gc = jnp.clip(g, 0, H - 1)
        r = x_ref[pl.ds(gc, 1)]                              # (1, W, C)
        valid = jnp.logical_and(g >= 0, g < H)               # traced scalar bool
        return jnp.where(valid, r, jnp.zeros_like(r))

    return jnp.concatenate(
        [edge_row(band_start - 2), edge_row(band_start - 1),
         core,
         edge_row(band_start + th), edge_row(band_start + th + 1)], axis=0)


def _conv3x3(inp, w_ref, left_mask, right_mask):
    """3x3 'same' convolution over a row band.

    inp:   (R+2, W, C) f32 - includes the +-1 row halo (already zeroed where it
           falls outside the image); columns are handled via roll + hoisted masks.
    w_ref: (3, 3, C, Cout) bf16 ref (per-tap path, C % 128 != 0) or
           (9*C, Cout) bf16 ref (big-K concat path, C % 128 == 0), BN folded.
    Returns (R, W, Cout) f32 (f32 accumulation on the MXU).
    """
    Rh, W, C = inp.shape
    R = Rh - 2
    Cout = w_ref.shape[-1]

    # Column taps (dx = -1, 0, +1): XLU sublane rotate + hoisted edge masks.
    left = jnp.where(left_mask, 0.0, pltpu.roll(inp, shift=1, axis=1))
    right = jnp.where(right_mask, 0.0, pltpu.roll(inp, shift=W - 1, axis=1))
    cols = (left.astype(jnp.bfloat16),
            inp.astype(jnp.bfloat16),
            right.astype(jnp.bfloat16))

    if len(w_ref.shape) == 2:
        # Big-K path (C % 128 == 0): one lane-aligned concat + one matmul.
        parts = [cols[dx][dy:dy + R] for dy in range(3) for dx in range(3)]
        patches = jnp.concatenate(parts, axis=-1)            # (R, W, 9C) bf16
        out = jnp.dot(patches.reshape(R * W, 9 * C), w_ref[...],
                      preferred_element_type=jnp.float32)
    else:
        # Per-tap accumulation: no lane-misaligned concat / extra patch buffer.
        out = jnp.zeros((R * W, Cout), jnp.float32)
        for dy in range(3):
            for dx in range(3):
                tap = cols[dx][dy:dy + R].reshape(R * W, C)
                out = out + jnp.dot(tap, w_ref[dy, dx],
                                    preferred_element_type=jnp.float32)
    return out.reshape(R, W, Cout)


# ----------------------------------------------------------------------------
# Kernel: one (batch element, H row-band) tile per grid step
# ----------------------------------------------------------------------------
def basic_block_kernel(x_ref, w1_ref, b1_ref, w2_ref, b2_ref, o_ref):
    TH, W, P = o_ref.shape            # output row band (TH, W, planes)
    H = x_ref.shape[0]                # full (un-padded) image height

    h = pl.program_id(1)
    band_start = h * TH

    # Hoisted column-edge masks (shared by both convs).
    col = lax.broadcasted_iota(jnp.int32, (1, W, 1), 1)
    left_mask = col == 0
    right_mask = col == W - 1

    # Band with +-2 row halo, upcast once to f32.
    xb = _load_band_with_halo(x_ref, band_start, TH, H).astype(jnp.float32)
    identity = xb[2:2 + TH]                                  # (TH, W, Cin) f32

    # ---- conv1 (BN1 folded) + ReLU over TH+2 rows (carries conv2's halo) ----
    y1 = _conv3x3(xb, w1_ref, left_mask, right_mask)         # (TH+2, W, P) f32
    y1 = jnp.maximum(y1 + b1_ref[...], 0.0)
    # Halo rows outside the image are conv2's zero padding.
    row_ids = band_start - 1 + lax.broadcasted_iota(jnp.int32, (TH + 2, 1, 1), 0)
    y1 = jnp.where((row_ids >= 0) & (row_ids < H), y1, 0.0)

    # ---- conv2 (BN2 folded) + residual add + ReLU ----------------------------
    y2 = _conv3x3(y1, w2_ref, left_mask, right_mask) + b2_ref[...]   # (TH, W, P)
    o_ref[...] = jnp.maximum(y2 + identity, 0.0).astype(o_ref.dtype)


# ----------------------------------------------------------------------------
# Wrapper
# ----------------------------------------------------------------------------
def fold_bn(gamma, beta, mean, var, eps=1e-5):
    scale = gamma / jnp.sqrt(var + eps)
    return scale, beta - mean * scale


def _pick_tile_h(H, max_tile_h=32):
    """Largest divisor of H that is <= max_tile_h and keeps >= 2 row bands."""
    cands = [d for d in range(1, min(H, max_tile_h) + 1)
             if H % d == 0 and H // d >= 2]
    return max(cands) if cands else H


def basic_block(x_nchw, w1, bn1, w2, bn2, *, max_tile_h=32):
    """BasicBlock forward (stride=1, downsample=None), inference-mode BN.

    x_nchw: (N, C, H, W) float32 (PyTorch layout).
    w1, w2: (3, 3, C, C) HWIO conv weights.  bn1, bn2: (gamma, beta, mean, var).
    Returns (N, C, H, W) float32.
    """
    N, Cin, H, W = x_nchw.shape
    P = w1.shape[3]
    assert w1.shape == (3, 3, Cin, P) and w2.shape == (3, 3, P, P)
    # TODO(synk): stride != 1 and the downsample branch are not implemented.
    assert Cin == P, "stride=1 / downsample=None BasicBlock needs inplanes == planes"

    # --- fold BN into conv weights (scale) + per-channel bias -----------------
    s1, b1 = fold_bn(*bn1)
    s2, b2 = fold_bn(*bn2)
    big_k = (Cin % 128 == 0) and (P % 128 == 0)
    if big_k:
        w1k = (w1 * s1).reshape(9 * Cin, P).astype(jnp.bfloat16)
        w2k = (w2 * s2).reshape(9 * P, P).astype(jnp.bfloat16)
    else:
        w1k = (w1 * s1).astype(jnp.bfloat16)        # (3, 3, Cin, P)
        w2k = (w2 * s2).astype(jnp.bfloat16)        # (3, 3, P,   P)
    b1 = b1.reshape(1, P).astype(jnp.float32)
    b2 = b2.reshape(1, P).astype(jnp.float32)

    # --- NCHW f32 -> NHWC bf16 (single layout+cast pass; no HBM pad pass) -----
    x_nhwc = jnp.transpose(x_nchw, (0, 2, 3, 1)).astype(jnp.bfloat16)

    th = _pick_tile_h(H, max_tile_h)
    hb = H // th

    # --- VMEM budget + generation-aware limit ----------------------------------
    blk_bytes = (
        2 * H * W * Cin * 2                        # bf16 input block (double buffered)
        + 2 * th * W * P * 4                       # f32 output block
        + 2 * (w1k.size + w2k.size) * 2            # weights (worst case double buffered)
        + 10 * (th + 4) * W * max(Cin, P) * 4      # in-kernel f32/bf16 temporaries
    )
    try:
        vmem_cap = pltpu.get_tpu_info().vmem_capacity_bytes
    except Exception:
        vmem_cap = 64 << 20                        # conservative (v7x per-TC VMEM)
    vmem_limit = int(min(max(2 * blk_bytes, 16 << 20), vmem_cap * 3 // 4))

    flops = int(2 * N * H * W * 9 * (Cin * P + P * P))
    bytes_accessed = int(x_nhwc.size * 2 + N * H * W * P * 4
                         + (w1k.size + w2k.size) * 2 + (b1.size + b2.size) * 4)

    def _run(single_buffer_consts):
        def const_spec(shape):
            kwargs = {}
            if single_buffer_consts:
                kwargs["pipeline_mode"] = pl.Buffered(1)     # constants: no double buffer
            return pl.BlockSpec(shape, lambda n, h, _r=len(shape): (0,) * _r, **kwargs)

        return pl.pallas_call(
            basic_block_kernel,
            out_shape=jax.ShapeDtypeStruct((N, H, W, P), jnp.float32),
            grid=(N, hb),
            in_specs=[
                # whole (un-padded) bf16 image per batch element, reused across h
                pl.BlockSpec((None, H, W, Cin), lambda n, h: (n, 0, 0, 0)),
                const_spec(w1k.shape),
                const_spec(b1.shape),
                const_spec(w2k.shape),
                const_spec(b2.shape),
            ],
            out_specs=pl.BlockSpec((None, th, W, P), lambda n, h: (n, h, 0, 0)),
            compiler_params=pltpu.CompilerParams(
                dimension_semantics=("parallel", "parallel"),
                vmem_limit_bytes=vmem_limit,
            ),
            cost_estimate=pl.CostEstimate(
                flops=flops, transcendentals=0, bytes_accessed=bytes_accessed),
        )(x_nhwc, w1k, b1, w2k, b2)

    try:
        out_nhwc = _run(True)
    except Exception:
        # Fallback if pipeline_mode / Buffered(1) is unsupported in this JAX build.
        out_nhwc = _run(False)

    return jnp.transpose(out_nhwc, (0, 3, 1, 2))             # NHWC -> NCHW


# ----------------------------------------------------------------------------
# Plain-JAX reference (same bf16 boundary / folded BN / f32 accumulation)
# ----------------------------------------------------------------------------
def reference_forward(x_nchw, w1, bn1, w2, bn2):
    s1, b1 = fold_bn(*bn1)
    s2, b2 = fold_bn(*bn2)
    x_bf = jnp.transpose(x_nchw, (0, 2, 3, 1)).astype(jnp.bfloat16)
    x_f32 = x_bf.astype(jnp.float32)
    dn = ("NHWC", "HWIO", "NHWC")
    w1f = (w1 * s1).astype(jnp.bfloat16)
    w2f = (w2 * s2).astype(jnp.bfloat16)
    y = lax.conv_general_dilated(x_bf, w1f, (1, 1), ((1, 1), (1, 1)),
                                 dimension_numbers=dn,
                                 preferred_element_type=jnp.float32)
    y = jnp.maximum(y + b1, 0.0)
    y = lax.conv_general_dilated(y.astype(jnp.bfloat16), w2f, (1, 1),
                                 ((1, 1), (1, 1)), dimension_numbers=dn,
                                 preferred_element_type=jnp.float32)
    y = jnp.maximum(y + b2 + x_f32, 0.0)
    return jnp.transpose(y, (0, 3, 1, 2))


if __name__ == "__main__":
    # BasicBlock(inplanes=4, planes=4, stride=1, downsample=None)
    N, C, H, W = 2, 4, 16, 16
    key = jax.random.PRNGKey(0)
    ks = jax.random.split(key, 5)

    x = jax.random.normal(ks[0], (N, C, H, W), jnp.float32)
    w1 = jax.random.normal(ks[1], (3, 3, C, C), jnp.float32) * 0.2   # HWIO
    w2 = jax.random.normal(ks[2], (3, 3, C, C), jnp.float32) * 0.2   # HWIO

    def make_bn(k, c):
        k1, k2, k3, k4 = jax.random.split(k, 4)
        gamma = 1.0 + 0.1 * jax.random.normal(k1, (c,), jnp.float32)
        beta = 0.1 * jax.random.normal(k2, (c,), jnp.float32)
        mean = 0.1 * jax.random.normal(k3, (c,), jnp.float32)
        var = jnp.abs(jax.random.normal(k4, (c,), jnp.float32)) + 0.5
        return gamma, beta, mean, var

    bn1 = make_bn(ks[3], C)
    bn2 = make_bn(ks[4], C)

    out = jax.block_until_ready(basic_block(x, w1, bn1, w2, bn2))
    ref = jax.block_until_ready(reference_forward(x, w1, bn1, w2, bn2))

    assert out.shape == (N, C, H, W)
    err = float(jnp.max(jnp.abs(out - ref)))
    assert jnp.allclose(out, ref, atol=5e-3, rtol=5e-3), \
        f"mismatch vs reference (max abs err {err})"

    print("KERNEL_OK")
</pallas_src>

<mosaic_0001>
module attributes {stable_mosaic.version = 11 : i64} {
  func.func @basic_block_kernel(%arg0: i32, %arg1: i32, %arg2: memref<1x16x16x4xbf16, #tpu.memory_space<vmem>>, %arg3: memref<3x3x4x4xbf16, #tpu.memory_space<vmem>>, %arg4: memref<1x4xf32, #tpu.memory_space<vmem>>, %arg5: memref<3x3x4x4xbf16, #tpu.memory_space<vmem>>, %arg6: memref<1x4xf32, #tpu.memory_space<vmem>>, %arg7: memref<1x8x16x4xf32, #tpu.memory_space<vmem>>) attributes {dimension_semantics = [#tpu.dimension_semantics<parallel>, #tpu.dimension_semantics<parallel>], iteration_bounds = array<i64: 2, 2>, scalar_prefetch = 0 : i64, scratch_operands = 0 : i64, tpu.core_type = #tpu.core_type<tc>, window_params = [{transform_indices = @transform_0, window_bounds = array<i64: 1, 16, 16, 4>}, {pipeline_mode = #tpu.pipeline_mode<synchronous>, transform_indices = @transform_1, window_bounds = array<i64: 3, 3, 4, 4>}, {pipeline_mode = #tpu.pipeline_mode<synchronous>, transform_indices = @transform_2, window_bounds = array<i64: 1, 4>}, {pipeline_mode = #tpu.pipeline_mode<synchronous>, transform_indices = @transform_3, window_bounds = array<i64: 3, 3, 4, 4>}, {pipeline_mode = #tpu.pipeline_mode<synchronous>, transform_indices = @transform_4, window_bounds = array<i64: 1, 4>}, {transform_indices = @transform_5, window_bounds = array<i64: 1, 8, 16, 4>}]} {
    %c8_i32 = arith.constant 8 : i32
    %0 = arith.muli %arg1, %c8_i32 : i32
    %1 = tpu.iota {dimensions = array<i32: 1>} : vector<1x16x1xi32>
    %c0_i32 = arith.constant 0 : i32
    %2 = vector.broadcast %c0_i32 : i32 to vector<1x16x1xi32>
    %3 = arith.cmpi eq, %1, %2 : vector<1x16x1xi32>
    %c15_i32 = arith.constant 15 : i32
    %4 = vector.broadcast %c15_i32 : i32 to vector<1x16x1xi32>
    %5 = arith.cmpi eq, %1, %4 : vector<1x16x1xi32>
    %c0 = arith.constant 0 : index
    %6 = arith.index_cast %0 : i32 to index
    %c0_0 = arith.constant 0 : index
    %c0_1 = arith.constant 0 : index
    %7 = vector.load %arg2[%c0, %6, %c0_0, %c0_1] : memref<1x16x16x4xbf16, #tpu.memory_space<vmem>>, vector<1x8x16x4xbf16>
    %8 = vector.shape_cast %7 : vector<1x8x16x4xbf16> to vector<8x16x4xbf16>
    %c2_i32 = arith.constant 2 : i32
    %9 = arith.subi %0, %c2_i32 : i32
    %c0_i32_2 = arith.constant 0 : i32
    %c15_i32_3 = arith.constant 15 : i32
    %10 = arith.maxsi %c0_i32_2, %9 : i32
    %11 = arith.minsi %c15_i32_3, %10 : i32
    %c0_4 = arith.constant 0 : index
    %12 = arith.index_cast %11 : i32 to index
    %c0_5 = arith.constant 0 : index
    %c0_6 = arith.constant 0 : index
    %13 = vector.load %arg2[%c0_4, %12, %c0_5, %c0_6] : memref<1x16x16x4xbf16, #tpu.memory_space<vmem>>, vector<1x1x16x4xbf16>
    %14 = vector.shape_cast %13 : vector<1x1x16x4xbf16> to vector<1x16x4xbf16>
    %c0_i32_7 = arith.constant 0 : i32
    %15 = arith.cmpi sge, %9, %c0_i32_7 : i32
    %c16_i32 = arith.constant 16 : i32
    %16 = arith.cmpi slt, %9, %c16_i32 : i32
    %17 = arith.andi %15, %16 : i1
    %cst = arith.constant 0.000000e+00 : bf16
    %18 = vector.broadcast %cst : bf16 to vector<1x16x4xbf16>
    %19 = arith.select %17, %14, %18 : vector<1x16x4xbf16>
    %c1_i32 = arith.constant 1 : i32
    %20 = arith.subi %0, %c1_i32 : i32
    %c0_i32_8 = arith.constant 0 : i32
    %c15_i32_9 = arith.constant 15 : i32
    %21 = arith.maxsi %c0_i32_8, %20 : i32
    %22 = arith.minsi %c15_i32_9, %21 : i32
    %c0_10 = arith.constant 0 : index
    %23 = arith.index_cast %22 : i32 to index
    %c0_11 = arith.constant 0 : index
    %c0_12 = arith.constant 0 : index
    %24 = vector.load %arg2[%c0_10, %23, %c0_11, %c0_12] : memref<1x16x16x4xbf16, #tpu.memory_space<vmem>>, vector<1x1x16x4xbf16>
    %25 = vector.shape_cast %24 : vector<1x1x16x4xbf16> to vector<1x16x4xbf16>
    %c0_i32_13 = arith.constant 0 : i32
    %26 = arith.cmpi sge, %20, %c0_i32_13 : i32
    %c16_i32_14 = arith.constant 16 : i32
    %27 = arith.cmpi slt, %20, %c16_i32_14 : i32
    %28 = arith.andi %26, %27 : i1
    %cst_15 = arith.constant 0.000000e+00 : bf16
    %29 = vector.broadcast %cst_15 : bf16 to vector<1x16x4xbf16>
    %30 = arith.select %28, %25, %29 : vector<1x16x4xbf16>
    %c8_i32_16 = arith.constant 8 : i32
    %31 = arith.addi %0, %c8_i32_16 : i32
    %c0_i32_17 = arith.constant 0 : i32
    %c15_i32_18 = arith.constant 15 : i32
    %32 = arith.maxsi %c0_i32_17, %31 : i32
    %33 = arith.minsi %c15_i32_18, %32 : i32
    %c0_19 = arith.constant 0 : index
    %34 = arith.index_cast %33 : i32 to index
    %c0_20 = arith.constant 0 : index
    %c0_21 = arith.constant 0 : index
    %35 = vector.load %arg2[%c0_19, %34, %c0_20, %c0_21] : memref<1x16x16x4xbf16, #tpu.memory_space<vmem>>, vector<1x1x16x4xbf16>
    %36 = vector.shape_cast %35 : vector<1x1x16x4xbf16> to vector<1x16x4xbf16>
    %c0_i32_22 = arith.constant 0 : i32
    %37 = arith.cmpi sge, %31, %c0_i32_22 : i32
    %c16_i32_23 = arith.constant 16 : i32
    %38 = arith.cmpi slt, %31, %c16_i32_23 : i32
    %39 = arith.andi %37, %38 : i1
    %cst_24 = arith.constant 0.000000e+00 : bf16
    %40 = vector.broadcast %cst_24 : bf16 to vector<1x16x4xbf16>
    %41 = arith.select %39, %36, %40 : vector<1x16x4xbf16>
    %c8_i32_25 = arith.constant 8 : i32
    %42 = arith.addi %0, %c8_i32_25 : i32
    %c1_i32_26 = arith.constant 1 : i32
    %43 = arith.addi %42, %c1_i32_26 : i32
    %c0_i32_27 = arith.constant 0 : i32
    %c15_i32_28 = arith.constant 15 : i32
    %44 = arith.maxsi %c0_i32_27, %43 : i32
    %45 = arith.minsi %c15_i32_28, %44 : i32
    %c0_29 = arith.constant 0 : index
    %46 = arith.index_cast %45 : i32 to index
    %c0_30 = arith.constant 0 : index
    %c0_31 = arith.constant 0 : index
    %47 = vector.load %arg2[%c0_29, %46, %c0_30, %c0_31] : memref<1x16x16x4xbf16, #tpu.memory_space<vmem>>, vector<1x1x16x4xbf16>
    %48 = vector.shape_cast %47 : vector<1x1x16x4xbf16> to vector<1x16x4xbf16>
    %c0_i32_32 = arith.constant 0 : i32
    %49 = arith.cmpi sge, %43, %c0_i32_32 : i32
    %c16_i32_33 = arith.constant 16 : i32
    %50 = arith.cmpi slt, %43, %c16_i32_33 : i32
    %51 = arith.andi %49, %50 : i1
    %cst_34 = arith.constant 0.000000e+00 : bf16
    %52 = vector.broadcast %cst_34 : bf16 to vector<1x16x4xbf16>
    %53 = arith.select %51, %48, %52 : vector<1x16x4xbf16>
    %54 = tpu.concatenate %19, %30, %8, %41, %53 in 0 : vector<1x16x4xbf16>, vector<1x16x4xbf16>, vector<8x16x4xbf16>, vector<1x16x4xbf16>, vector<1x16x4xbf16> -> vector<12x16x4xbf16>
    %55 = arith.extf %54 : vector<12x16x4xbf16> to vector<12x16x4xf32>
    %56 = vector.extract_strided_slice %55 {offsets = [2, 0, 0], sizes = [8, 16, 4], strides = [1, 1, 1]} : vector<12x16x4xf32> to vector<8x16x4xf32>
    %c1_i32_35 = arith.constant 1 : i32
    %57 = tpu.dynamic_rotate %55 by %c1_i32_35 dim 1 : vector<12x16x4xf32>, i32 -> vector<12x16x4xf32>
    %cst_36 = arith.constant 0.000000e+00 : f32
    %58 = vector.shape_cast %3 : vector<1x16x1xi1> to vector<1x16x1xi1>
    %59 = vector.broadcast %58 : vector<1x16x1xi1> to vector<12x16x4xi1>
    %60 = vector.broadcast %cst_36 : f32 to vector<12x16x4xf32>
    %61 = arith.select %59, %60, %57 : vector<12x16x4xi1>, vector<12x16x4xf32>
    %c15_i32_37 = arith.constant 15 : i32
    %62 = tpu.dynamic_rotate %55 by %c15_i32_37 dim 1 : vector<12x16x4xf32>, i32 -> vector<12x16x4xf32>
    %cst_38 = arith.constant 0.000000e+00 : f32
    %63 = vector.shape_cast %5 : vector<1x16x1xi1> to vector<1x16x1xi1>
    %64 = vector.broadcast %63 : vector<1x16x1xi1> to vector<12x16x4xi1>
    %65 = vector.broadcast %cst_38 : f32 to vector<12x16x4xf32>
    %66 = arith.select %64, %65, %62 : vector<12x16x4xi1>, vector<12x16x4xf32>
    %67 = arith.truncf %61 : vector<12x16x4xf32> to vector<12x16x4xbf16>
    %68 = arith.truncf %55 : vector<12x16x4xf32> to vector<12x16x4xbf16>
    %69 = arith.truncf %66 : vector<12x16x4xf32> to vector<12x16x4xbf16>
    %cst_39 = arith.constant 0.000000e+00 : f32
    %70 = vector.broadcast %cst_39 : f32 to vector<160x4xf32>
    %71 = vector.extract_strided_slice %67 {offsets = [0, 0, 0], sizes = [10, 16, 4], strides = [1, 1, 1]} : vector<12x16x4xbf16> to vector<10x16x4xbf16>
    %72 = vector.shape_cast %71 : vector<10x16x4xbf16> to vector<160x4xbf16>
    %c0_40 = arith.constant 0 : index
    %c0_41 = arith.constant 0 : index
    %c0_42 = arith.constant 0 : index
    %c0_43 = arith.constant 0 : index
    %73 = vector.load %arg3[%c0_40, %c0_41, %c0_42, %c0_43] : memref<3x3x4x4xbf16, #tpu.memory_space<vmem>>, vector<1x1x4x4xbf16>
    %74 = vector.shape_cast %73 : vector<1x1x4x4xbf16> to vector<4x4xbf16>
    %cst_44 = arith.constant dense<0.000000e+00> : vector<160x4xf32>
    %75 = tpu.matmul %72, %74, %cst_44 {dimension_numbers = #tpu.dot_dimension_numbers<[1], [0], [0], [1], [0, 0, 1, 1], [], []>} : vector<160x4xbf16>, vector<4x4xbf16>, vector<160x4xf32> -> vector<160x4xf32>
    %76 = arith.addf %70, %75 : vector<160x4xf32>
    %77 = vector.extract_strided_slice %68 {offsets = [0, 0, 0], sizes = [10, 16, 4], strides = [1, 1, 1]} : vector<12x16x4xbf16> to vector<10x16x4xbf16>
    %78 = vector.shape_cast %77 : vector<10x16x4xbf16> to vector<160x4xbf16>
    %c0_45 = arith.constant 0 : index
    %c1 = arith.constant 1 : index
    %c0_46 = arith.constant 0 : index
    %c0_47 = arith.constant 0 : index
    %79 = vector.load %arg3[%c0_45, %c1, %c0_46, %c0_47] : memref<3x3x4x4xbf16, #tpu.memory_space<vmem>>, vector<1x1x4x4xbf16>
    %80 = vector.shape_cast %79 : vector<1x1x4x4xbf16> to vector<4x4xbf16>
    %cst_48 = arith.constant dense<0.000000e+00> : vector<160x4xf32>
    %81 = tpu.matmul %78, %80, %cst_48 {dimension_numbers = #tpu.dot_dimension_numbers<[1], [0], [0], [1], [0, 0, 1, 1], [], []>} : vector<160x4xbf16>, vector<4x4xbf16>, vector<160x4xf32> -> vector<160x4xf32>
    %82 = arith.addf %76, %81 : vector<160x4xf32>
    %83 = vector.extract_strided_slice %69 {offsets = [0, 0, 0], sizes = [10, 16, 4], strides = [1, 1, 1]} : vector<12x16x4xbf16> to vector<10x16x4xbf16>
    %84 = vector.shape_cast %83 : vector<10x16x4xbf16> to vector<160x4xbf16>
    %c0_49 = arith.constant 0 : index
    %c2 = arith.constant 2 : index
    %c0_50 = arith.constant 0 : index
    %c0_51 = arith.constant 0 : index
    %85 = vector.load %arg3[%c0_49, %c2, %c0_50, %c0_51] : memref<3x3x4x4xbf16, #tpu.memory_space<vmem>>, vector<1x1x4x4xbf16>
    %86 = vector.shape_cast %85 : vector<1x1x4x4xbf16> to vector<4x4xbf16>
    %cst_52 = arith.constant dense<0.000000e+00> : vector<160x4xf32>
    %87 = tpu.matmul %84, %86, %cst_52 {dimension_numbers = #tpu.dot_dimension_numbers<[1], [0], [0], [1], [0, 0, 1, 1], [], []>} : vector<160x4xbf16>, vector<4x4xbf16>, vector<160x4xf32> -> vector<160x4xf32>
    %88 = arith.addf %82, %87 : vector<160x4xf32>
    %89 = vector.extract_strided_slice %67 {offsets = [1, 0, 0], sizes = [10, 16, 4], strides = [1, 1, 1]} : vector<12x16x4xbf16> to vector<10x16x4xbf16>
    %90 = vector.shape_cast %89 : vector<10x16x4xbf16> to vector<160x4xbf16>
    %c1_53 = arith.constant 1 : index
    %c0_54 = arith.constant 0 : index
    %c0_55 = arith.constant 0 : index
    %c0_56 = arith.constant 0 : index
    %91 = vector.load %arg3[%c1_53, %c0_54, %c0_55, %c0_56] : memref<3x3x4x4xbf16, #tpu.memory_space<vmem>>, vector<1x1x4x4xbf16>
    %92 = vector.shape_cast %91 : vector<1x1x4x4xbf16> to vector<4x4xbf16>
    %cst_57 = arith.constant dense<0.000000e+00> : vector<160x4xf32>
    %93 = tpu.matmul %90, %92, %cst_57 {dimension_numbers = #tpu.dot_dimension_numbers<[1], [0], [0], [1], [0, 0, 1, 1], [], []>} : vector<160x4xbf16>, vector<4x4xbf16>, vector<160x4xf32> -> vector<160x4xf32>
    %94 = arith.addf %88, %93 : vector<160x4xf32>
    %95 = vector.extract_strided_slice %68 {offsets = [1, 0, 0], sizes = [10, 16, 4], strides = [1, 1, 1]} : vector<12x16x4xbf16> to vector<10x16x4xbf16>
    %96 = vector.shape_cast %95 : vector<10x16x4xbf16> to vector<160x4xbf16>
    %c1_58 = arith.constant 1 : index
    %c1_59 = arith.constant 1 : index
    %c0_60 = arith.constant 0 : index
    %c0_61 = arith.constant 0 : index
    %97 = vector.load %arg3[%c1_58, %c1_59, %c0_60, %c0_61] : memref<3x3x4x4xbf16, #tpu.memory_space<vmem>>, vector<1x1x4x4xbf16>
    %98 = vector.shape_cast %97 : vector<1x1x4x4xbf16> to vector<4x4xbf16>
    %cst_62 = arith.constant dense<0.000000e+00> : vector<160x4xf32>
    %99 = tpu.matmul %96, %98, %cst_62 {dimension_numbers = #tpu.dot_dimension_numbers<[1], [0], [0], [1], [0, 0, 1, 1], [], []>} : vector<160x4xbf16>, vector<4x4xbf16>, vector<160x4xf32> -> vector<160x4xf32>
    %100 = arith.addf %94, %99 : vector<160x4xf32>
    %101 = vector.extract_strided_slice %69 {offsets = [1, 0, 0], sizes = [10, 16, 4], strides = [1, 1, 1]} : vector<12x16x4xbf16> to vector<10x16x4xbf16>
    %102 = vector.shape_cast %101 : vector<10x16x4xbf16> to vector<160x4xbf16>
    %c1_63 = arith.constant 1 : index
    %c2_64 = arith.constant 2 : index
    %c0_65 = arith.constant 0 : index
    %c0_66 = arith.constant 0 : index
    %103 = vector.load %arg3[%c1_63, %c2_64, %c0_65, %c0_66] : memref<3x3x4x4xbf16, #tpu.memory_space<vmem>>, vector<1x1x4x4xbf16>
    %104 = vector.shape_cast %103 : vector<1x1x4x4xbf16> to vector<4x4xbf16>
    %cst_67 = arith.constant dense<0.000000e+00> : vector<160x4xf32>
    %105 = tpu.matmul %102, %104, %cst_67 {dimension_numbers = #tpu.dot_dimension_numbers<[1], [0], [0], [1], [0, 0, 1, 1], [], []>} : vector<160x4xbf16>, vector<4x4xbf16>, vector<160x4xf32> -> vector<160x4xf32>
    %106 = arith.addf %100, %105 : vector<160x4xf32>
    %107 = vector.extract_strided_slice %67 {offsets = [2, 0, 0], sizes = [10, 16, 4], strides = [1, 1, 1]} : vector<12x16x4xbf16> to vector<10x16x4xbf16>
    %108 = vector.shape_cast %107 : vector<10x16x4xbf16> to vector<160x4xbf16>
    %c2_68 = arith.constant 2 : index
    %c0_69 = arith.constant 0 : index
    %c0_70 = arith.constant 0 : index
    %c0_71 = arith.constant 0 : index
    %109 = vector.load %arg3[%c2_68, %c0_69, %c0_70, %c0_71] : memref<3x3x4x4xbf16, #tpu.memory_space<vmem>>, vector<1x1x4x4xbf16>
    %110 = vector.shape_cast %109 : vector<1x1x4x4xbf16> to vector<4x4xbf16>
    %cst_72 = arith.constant dense<0.000000e+00> : vector<160x4xf32>
    %111 = tpu.matmul %108, %110, %cst_72 {dimension_numbers = #tpu.dot_dimension_numbers<[1], [0], [0], [1], [0, 0, 1, 1], [], []>} : vector<160x4xbf16>, vector<4x4xbf16>, vector<160x4xf32> -> vector<160x4xf32>
    %112 = arith.addf %106, %111 : vector<160x4xf32>
    %113 = vector.extract_strided_slice %68 {offsets = [2, 0, 0], sizes = [10, 16, 4], strides = [1, 1, 1]} : vector<12x16x4xbf16> to vector<10x16x4xbf16>
    %114 = vector.shape_cast %113 : vector<10x16x4xbf16> to vector<160x4xbf16>
    %c2_73 = arith.constant 2 : index
    %c1_74 = arith.constant 1 : index
    %c0_75 = arith.constant 0 : index
    %c0_76 = arith.constant 0 : index
    %115 = vector.load %arg3[%c2_73, %c1_74, %c0_75, %c0_76] : memref<3x3x4x4xbf16, #tpu.memory_space<vmem>>, vector<1x1x4x4xbf16>
    %116 = vector.shape_cast %115 : vector<1x1x4x4xbf16> to vector<4x4xbf16>
    %cst_77 = arith.constant dense<0.000000e+00> : vector<160x4xf32>
    %117 = tpu.matmul %114, %116, %cst_77 {dimension_numbers = #tpu.dot_dimension_numbers<[1], [0], [0], [1], [0, 0, 1, 1], [], []>} : vector<160x4xbf16>, vector<4x4xbf16>, vector<160x4xf32> -> vector<160x4xf32>
    %118 = arith.addf %112, %117 : vector<160x4xf32>
    %119 = vector.extract_strided_slice %69 {offsets = [2, 0, 0], sizes = [10, 16, 4], strides = [1, 1, 1]} : vector<12x16x4xbf16> to vector<10x16x4xbf16>
    %120 = vector.shape_cast %119 : vector<10x16x4xbf16> to vector<160x4xbf16>
    %c2_78 = arith.constant 2 : index
    %c2_79 = arith.constant 2 : index
    %c0_80 = arith.constant 0 : index
    %c0_81 = arith.constant 0 : index
    %121 = vector.load %arg3[%c2_78, %c2_79, %c0_80, %c0_81] : memref<3x3x4x4xbf16, #tpu.memory_space<vmem>>, vector<1x1x4x4xbf16>
    %122 = vector.shape_cast %121 : vector<1x1x4x4xbf16> to vector<4x4xbf16>
    %cst_82 = arith.constant dense<0.000000e+00> : vector<160x4xf32>
    %123 = tpu.matmul %120, %122, %cst_82 {dimension_numbers = #tpu.dot_dimension_numbers<[1], [0], [0], [1], [0, 0, 1, 1], [], []>} : vector<160x4xbf16>, vector<4x4xbf16>, vector<160x4xf32> -> vector<160x4xf32>
    %124 = arith.addf %118, %123 : vector<160x4xf32>
    %125 = vector.shape_cast %124 : vector<160x4xf32> to vector<10x16x4xf32>
    %c0_83 = arith.constant 0 : index
    %c0_84 = arith.constant 0 : index
    %126 = vector.load %arg4[%c0_83, %c0_84] : memref<1x4xf32, #tpu.memory_space<vmem>>, vector<1x4xf32>
    %127 = vector.shape_cast %126 : vector<1x4xf32> to vector<1x1x4xf32>
    %128 = vector.broadcast %127 : vector<1x1x4xf32> to vector<10x16x4xf32>
    %129 = arith.addf %125, %128 : vector<10x16x4xf32>
    %cst_85 = arith.constant 0.000000e+00 : f32
    %130 = vector.broadcast %cst_85 : f32 to vector<10x16x4xf32>
    %131 = arith.maximumf %129, %130 : vector<10x16x4xf32>
    %c1_i32_86 = arith.constant 1 : i32
    %132 = arith.subi %0, %c1_i32_86 : i32
    %133 = tpu.iota {dimensions = array<i32: 0>} : vector<10x1x1xi32>
    %134 = vector.broadcast %132 : i32 to vector<10x1x1xi32>
    %135 = arith.addi %134, %133 : vector<10x1x1xi32>
    %c0_i32_87 = arith.constant 0 : i32
    %136 = vector.broadcast %c0_i32_87 : i32 to vector<10x1x1xi32>
    %137 = arith.cmpi sge, %135, %136 : vector<10x1x1xi32>
    %c16_i32_88 = arith.constant 16 : i32
    %138 = vector.broadcast %c16_i32_88 : i32 to vector<10x1x1xi32>
    %139 = arith.cmpi slt, %135, %138 : vector<10x1x1xi32>
    %140 = arith.andi %137, %139 : vector<10x1x1xi1>
    %cst_89 = arith.constant 0.000000e+00 : f32
    %141 = vector.shape_cast %140 : vector<10x1x1xi1> to vector<10x1x1xi1>
    %142 = vector.broadcast %141 : vector<10x1x1xi1> to vector<10x16x4xi1>
    %143 = vector.broadcast %cst_89 : f32 to vector<10x16x4xf32>
    %144 = arith.select %142, %131, %143 : vector<10x16x4xi1>, vector<10x16x4xf32>
    %c1_i32_90 = arith.constant 1 : i32
    %145 = tpu.dynamic_rotate %144 by %c1_i32_90 dim 1 : vector<10x16x4xf32>, i32 -> vector<10x16x4xf32>
    %cst_91 = arith.constant 0.000000e+00 : f32
    %146 = vector.shape_cast %3 : vector<1x16x1xi1> to vector<1x16x1xi1>
    %147 = vector.broadcast %146 : vector<1x16x1xi1> to vector<10x16x4xi1>
    %148 = vector.broadcast %cst_91 : f32 to vector<10x16x4xf32>
    %149 = arith.select %147, %148, %145 : vector<10x16x4xi1>, vector<10x16x4xf32>
    %c15_i32_92 = arith.constant 15 : i32
    %150 = tpu.dynamic_rotate %144 by %c15_i32_92 dim 1 : vector<10x16x4xf32>, i32 -> vector<10x16x4xf32>
    %cst_93 = arith.constant 0.000000e+00 : f32
    %151 = vector.shape_cast %5 : vector<1x16x1xi1> to vector<1x16x1xi1>
    %152 = vector.broadcast %151 : vector<1x16x1xi1> to vector<10x16x4xi1>
    %153 = vector.broadcast %cst_93 : f32 to vector<10x16x4xf32>
    %154 = arith.select %152, %153, %150 : vector<10x16x4xi1>, vector<10x16x4xf32>
    %155 = arith.truncf %149 : vector<10x16x4xf32> to vector<10x16x4xbf16>
    %156 = arith.truncf %144 : vector<10x16x4xf32> to vector<10x16x4xbf16>
    %157 = arith.truncf %154 : vector<10x16x4xf32> to vector<10x16x4xbf16>
    %cst_94 = arith.constant 0.000000e+00 : f32
    %158 = vector.broadcast %cst_94 : f32 to vector<128x4xf32>
    %159 = vector.extract_strided_slice %155 {offsets = [0, 0, 0], sizes = [8, 16, 4], strides = [1, 1, 1]} : vector<10x16x4xbf16> to vector<8x16x4xbf16>
    %160 = vector.shape_cast %159 : vector<8x16x4xbf16> to vector<128x4xbf16>
    %c0_95 = arith.constant 0 : index
    %c0_96 = arith.constant 0 : index
    %c0_97 = arith.constant 0 : index
    %c0_98 = arith.constant 0 : index
    %161 = vector.load %arg5[%c0_95, %c0_96, %c0_97, %c0_98] : memref<3x3x4x4xbf16, #tpu.memory_space<vmem>>, vector<1x1x4x4xbf16>
    %162 = vector.shape_cast %161 : vector<1x1x4x4xbf16> to vector<4x4xbf16>
    %cst_99 = arith.constant dense<0.000000e+00> : vector<128x4xf32>
    %163 = tpu.matmul %160, %162, %cst_99 {dimension_numbers = #tpu.dot_dimension_numbers<[1], [0], [0], [1], [0, 0, 1, 1], [], []>} : vector<128x4xbf16>, vector<4x4xbf16>, vector<128x4xf32> -> vector<128x4xf32>
    %164 = arith.addf %158, %163 : vector<128x4xf32>
    %165 = vector.extract_strided_slice %156 {offsets = [0, 0, 0], sizes = [8, 16, 4], strides = [1, 1, 1]} : vector<10x16x4xbf16> to vector<8x16x4xbf16>
    %166 = vector.shape_cast %165 : vector<8x16x4xbf16> to vector<128x4xbf16>
    %c0_100 = arith.constant 0 : index
    %c1_101 = arith.constant 1 : index
    %c0_102 = arith.constant 0 : index
    %c0_103 = arith.constant 0 : index
    %167 = vector.load %arg5[%c0_100, %c1_101, %c0_102, %c0_103] : memref<3x3x4x4xbf16, #tpu.memory_space<vmem>>, vector<1x1x4x4xbf16>
    %168 = vector.shape_cast %167 : vector<1x1x4x4xbf16> to vector<4x4xbf16>
    %cst_104 = arith.constant dense<0.000000e+00> : vector<128x4xf32>
    %169 = tpu.matmul %166, %168, %cst_104 {dimension_numbers = #tpu.dot_dimension_numbers<[1], [0], [0], [1], [0, 0, 1, 1], [], []>} : vector<128x4xbf16>, vector<4x4xbf16>, vector<128x4xf32> -> vector<128x4xf32>
    %170 = arith.addf %164, %169 : vector<128x4xf32>
    %171 = vector.extract_strided_slice %157 {offsets = [0, 0, 0], sizes = [8, 16, 4], strides = [1, 1, 1]} : vector<10x16x4xbf16> to vector<8x16x4xbf16>
    %172 = vector.shape_cast %171 : vector<8x16x4xbf16> to vector<128x4xbf16>
    %c0_105 = arith.constant 0 : index
    %c2_106 = arith.constant 2 : index
    %c0_107 = arith.constant 0 : index
    %c0_108 = arith.constant 0 : index
    %173 = vector.load %arg5[%c0_105, %c2_106, %c0_107, %c0_108] : memref<3x3x4x4xbf16, #tpu.memory_space<vmem>>, vector<1x1x4x4xbf16>
    %174 = vector.shape_cast %173 : vector<1x1x4x4xbf16> to vector<4x4xbf16>
    %cst_109 = arith.constant dense<0.000000e+00> : vector<128x4xf32>
    %175 = tpu.matmul %172, %174, %cst_109 {dimension_numbers = #tpu.dot_dimension_numbers<[1], [0], [0], [1], [0, 0, 1, 1], [], []>} : vector<128x4xbf16>, vector<4x4xbf16>, vector<128x4xf32> -> vector<128x4xf32>
    %176 = arith.addf %170, %175 : vector<128x4xf32>
    %177 = vector.extract_strided_slice %155 {offsets = [1, 0, 0], sizes = [8, 16, 4], strides = [1, 1, 1]} : vector<10x16x4xbf16> to vector<8x16x4xbf16>
    %178 = vector.shape_cast %177 : vector<8x16x4xbf16> to vector<128x4xbf16>
    %c1_110 = arith.constant 1 : index
    %c0_111 = arith.constant 0 : index
    %c0_112 = arith.constant 0 : index
    %c0_113 = arith.constant 0 : index
    %179 = vector.load %arg5[%c1_110, %c0_111, %c0_112, %c0_113] : memref<3x3x4x4xbf16, #tpu.memory_space<vmem>>, vector<1x1x4x4xbf16>
    %180 = vector.shape_cast %179 : vector<1x1x4x4xbf16> to vector<4x4xbf16>
    %cst_114 = arith.constant dense<0.000000e+00> : vector<128x4xf32>
    %181 = tpu.matmul %178, %180, %cst_114 {dimension_numbers = #tpu.dot_dimension_numbers<[1], [0], [0], [1], [0, 0, 1, 1], [], []>} : vector<128x4xbf16>, vector<4x4xbf16>, vector<128x4xf32> -> vector<128x4xf32>
    %182 = arith.addf %176, %181 : vector<128x4xf32>
    %183 = vector.extract_strided_slice %156 {offsets = [1, 0, 0], sizes = [8, 16, 4], strides = [1, 1, 1]} : vector<10x16x4xbf16> to vector<8x16x4xbf16>
    %184 = vector.shape_cast %183 : vector<8x16x4xbf16> to vector<128x4xbf16>
    %c1_115 = arith.constant 1 : index
    %c1_116 = arith.constant 1 : index
    %c0_117 = arith.constant 0 : index
    %c0_118 = arith.constant 0 : index
    %185 = vector.load %arg5[%c1_115, %c1_116, %c0_117, %c0_118] : memref<3x3x4x4xbf16, #tpu.memory_space<vmem>>, vector<1x1x4x4xbf16>
    %186 = vector.shape_cast %185 : vector<1x1x4x4xbf16> to vector<4x4xbf16>
    %cst_119 = arith.constant dense<0.000000e+00> : vector<128x4xf32>
    %187 = tpu.matmul %184, %186, %cst_119 {dimension_numbers = #tpu.dot_dimension_numbers<[1], [0], [0], [1], [0, 0, 1, 1], [], []>} : vector<128x4xbf16>, vector<4x4xbf16>, vector<128x4xf32> -> vector<128x4xf32>
    %188 = arith.addf %182, %187 : vector<128x4xf32>
    %189 = vector.extract_strided_slice %157 {offsets = [1, 0, 0], sizes = [8, 16, 4], strides = [1, 1, 1]} : vector<10x16x4xbf16> to vector<8x16x4xbf16>
    %190 = vector.shape_cast %189 : vector<8x16x4xbf16> to vector<128x4xbf16>
    %c1_120 = arith.constant 1 : index
    %c2_121 = arith.constant 2 : index
    %c0_122 = arith.constant 0 : index
    %c0_123 = arith.constant 0 : index
    %191 = vector.load %arg5[%c1_120, %c2_121, %c0_122, %c0_123] : memref<3x3x4x4xbf16, #tpu.memory_space<vmem>>, vector<1x1x4x4xbf16>
    %192 = vector.shape_cast %191 : vector<1x1x4x4xbf16> to vector<4x4xbf16>
    %cst_124 = arith.constant dense<0.000000e+00> : vector<128x4xf32>
    %193 = tpu.matmul %190, %192, %cst_124 {dimension_numbers = #tpu.dot_dimension_numbers<[1], [0], [0], [1], [0, 0, 1, 1], [], []>} : vector<128x4xbf16>, vector<4x4xbf16>, vector<128x4xf32> -> vector<128x4xf32>
    %194 = arith.addf %188, %193 : vector<128x4xf32>
    %195 = vector.extract_strided_slice %155 {offsets = [2, 0, 0], sizes = [8, 16, 4], strides = [1, 1, 1]} : vector<10x16x4xbf16> to vector<8x16x4xbf16>
    %196 = vector.shape_cast %195 : vector<8x16x4xbf16> to vector<128x4xbf16>
    %c2_125 = arith.constant 2 : index
    %c0_126 = arith.constant 0 : index
    %c0_127 = arith.constant 0 : index
    %c0_128 = arith.constant 0 : index
    %197 = vector.load %arg5[%c2_125, %c0_126, %c0_127, %c0_128] : memref<3x3x4x4xbf16, #tpu.memory_space<vmem>>, vector<1x1x4x4xbf16>
    %198 = vector.shape_cast %197 : vector<1x1x4x4xbf16> to vector<4x4xbf16>
    %cst_129 = arith.constant dense<0.000000e+00> : vector<128x4xf32>
    %199 = tpu.matmul %196, %198, %cst_129 {dimension_numbers = #tpu.dot_dimension_numbers<[1], [0], [0], [1], [0, 0, 1, 1], [], []>} : vector<128x4xbf16>, vector<4x4xbf16>, vector<128x4xf32> -> vector<128x4xf32>
    %200 = arith.addf %194, %199 : vector<128x4xf32>
    %201 = vector.extract_strided_slice %156 {offsets = [2, 0, 0], sizes = [8, 16, 4], strides = [1, 1, 1]} : vector<10x16x4xbf16> to vector<8x16x4xbf16>
    %202 = vector.shape_cast %201 : vector<8x16x4xbf16> to vector<128x4xbf16>
    %c2_130 = arith.constant 2 : index
    %c1_131 = arith.constant 1 : index
    %c0_132 = arith.constant 0 : index
    %c0_133 = arith.constant 0 : index
    %203 = vector.load %arg5[%c2_130, %c1_131, %c0_132, %c0_133] : memref<3x3x4x4xbf16, #tpu.memory_space<vmem>>, vector<1x1x4x4xbf16>
    %204 = vector.shape_cast %203 : vector<1x1x4x4xbf16> to vector<4x4xbf16>
    %cst_134 = arith.constant dense<0.000000e+00> : vector<128x4xf32>
    %205 = tpu.matmul %202, %204, %cst_134 {dimension_numbers = #tpu.dot_dimension_numbers<[1], [0], [0], [1], [0, 0, 1, 1], [], []>} : vector<128x4xbf16>, vector<4x4xbf16>, vector<128x4xf32> -> vector<128x4xf32>
    %206 = arith.addf %200, %205 : vector<128x4xf32>
    %207 = vector.extract_strided_slice %157 {offsets = [2, 0, 0], sizes = [8, 16, 4], strides = [1, 1, 1]} : vector<10x16x4xbf16> to vector<8x16x4xbf16>
    %208 = vector.shape_cast %207 : vector<8x16x4xbf16> to vector<128x4xbf16>
    %c2_135 = arith.constant 2 : index
    %c2_136 = arith.constant 2 : index
    %c0_137 = arith.constant 0 : index
    %c0_138 = arith.constant 0 : index
    %209 = vector.load %arg5[%c2_135, %c2_136, %c0_137, %c0_138] : memref<3x3x4x4xbf16, #tpu.memory_space<vmem>>, vector<1x1x4x4xbf16>
    %210 = vector.shape_cast %209 : vector<1x1x4x4xbf16> to vector<4x4xbf16>
    %cst_139 = arith.constant dense<0.000000e+00> : vector<128x4xf32>
    %211 = tpu.matmul %208, %210, %cst_139 {dimension_numbers = #tpu.dot_dimension_numbers<[1], [0], [0], [1], [0, 0, 1, 1], [], []>} : vector<128x4xbf16>, vector<4x4xbf16>, vector<128x4xf32> -> vector<128x4xf32>
    %212 = arith.addf %206, %211 : vector<128x4xf32>
    %213 = vector.shape_cast %212 : vector<128x4xf32> to vector<8x16x4xf32>
    %c0_140 = arith.constant 0 : index
    %c0_141 = arith.constant 0 : index
    %214 = vector.load %arg6[%c0_140, %c0_141] : memref<1x4xf32, #tpu.memory_space<vmem>>, vector<1x4xf32>
    %215 = vector.shape_cast %214 : vector<1x4xf32> to vector<1x1x4xf32>
    %216 = vector.broadcast %215 : vector<1x1x4xf32> to vector<8x16x4xf32>
    %217 = arith.addf %213, %216 : vector<8x16x4xf32>
    %218 = arith.addf %217, %56 : vector<8x16x4xf32>
    %cst_142 = arith.constant 0.000000e+00 : f32
    %219 = vector.broadcast %cst_142 : f32 to vector<8x16x4xf32>
    %220 = arith.maximumf %218, %219 : vector<8x16x4xf32>
    %c0_143 = arith.constant 0 : index
    %c0_144 = arith.constant 0 : index
    %c0_145 = arith.constant 0 : index
    %c0_146 = arith.constant 0 : index
    %221 = vector.load %arg7[%c0_143, %c0_144, %c0_145, %c0_146] : memref<1x8x16x4xf32, #tpu.memory_space<vmem>>, vector<1x8x16x4xf32>
    %222 = vector.shape_cast %221 : vector<1x8x16x4xf32> to vector<8x16x4xf32>
    %223 = vector.shape_cast %220 : vector<8x16x4xf32> to vector<1x8x16x4xf32>
    tpu.vector_store %arg7[%c0_143, %c0_144, %c0_145, %c0_146], %223 {strides = array<i32>} : memref<1x8x16x4xf32, #tpu.memory_space<vmem>>, vector<1x8x16x4xf32>,
    return
  }
  func.func @transform_0(%arg0: i32, %arg1: i32) -> (i32, i32, i32, i32) {
    %c0_i32 = arith.constant 0 : i32
    %c0_i32_0 = arith.constant 0 : i32
    %c0_i32_1 = arith.constant 0 : i32
    %c0_i32_2 = arith.constant 0 : i32
    return %arg0, %c0_i32, %c0_i32_0, %c0_i32_1 : i32, i32, i32, i32
  }
  func.func @transform_1(%arg0: i32, %arg1: i32) -> (i32, i32, i32, i32) {
    %c0_i32 = arith.constant 0 : i32
    %c0_i32_0 = arith.constant 0 : i32
    %c0_i32_1 = arith.constant 0 : i32
    %c0_i32_2 = arith.constant 0 : i32
    %c0_i32_3 = arith.constant 0 : i32
    return %c0_i32, %c0_i32_0, %c0_i32_1, %c0_i32_2 : i32, i32, i32, i32
  }
  func.func @transform_2(%arg0: i32, %arg1: i32) -> (i32, i32) {
    %c0_i32 = arith.constant 0 : i32
    %c0_i32_0 = arith.constant 0 : i32
    %c0_i32_1 = arith.constant 0 : i32
    return %c0_i32, %c0_i32_0 : i32, i32
  }
  func.func @transform_3(%arg0: i32, %arg1: i32) -> (i32, i32, i32, i32) {
    %c0_i32 = arith.constant 0 : i32
    %c0_i32_0 = arith.constant 0 : i32
    %c0_i32_1 = arith.constant 0 : i32
    %c0_i32_2 = arith.constant 0 : i32
    %c0_i32_3 = arith.constant 0 : i32
    return %c0_i32, %c0_i32_0, %c0_i32_1, %c0_i32_2 : i32, i32, i32, i32
  }
  func.func @transform_4(%arg0: i32, %arg1: i32) -> (i32, i32) {
    %c0_i32 = arith.constant 0 : i32
    %c0_i32_0 = arith.constant 0 : i32
    %c0_i32_1 = arith.constant 0 : i32
    return %c0_i32, %c0_i32_0 : i32, i32
  }
  func.func @transform_5(%arg0: i32, %arg1: i32) -> (i32, i32, i32, i32) {
    %c0_i32 = arith.constant 0 : i32
    %c0_i32_0 = arith.constant 0 : i32
    %c0_i32_1 = arith.constant 0 : i32
    return %arg0, %arg1, %c0_i32, %c0_i32_0 : i32, i32, i32, i32
  }
}

module attributes {stable_mosaic.version = 11 : i64} {
  func.func @basic_block_kernel(%arg0: i32, %arg1: i32, %arg2: memref<1x16x16x4xbf16, #tpu.memory_space<vmem>>, %arg3: memref<3x3x4x4xbf16, #tpu.memory_space<vmem>>, %arg4: memref<1x4xf32, #tpu.memory_space<vmem>>, %arg5: memref<3x3x4x4xbf16, #tpu.memory_space<vmem>>, %arg6: memref<1x4xf32, #tpu.memory_space<vmem>>, %arg7: memref<1x8x16x4xf32, #tpu.memory_space<vmem>>) attributes {dimension_semantics = [#tpu.dimension_semantics<parallel>, #tpu.dimension_semantics<parallel>], iteration_bounds = array<i64: 2, 2>, scalar_prefetch = 0 : i64, scratch_operands = 0 : i64, tpu.core_type = #tpu.core_type<tc>, window_params = [{transform_indices = @transform_0, window_bounds = array<i64: 1, 16, 16, 4>}, {pipeline_mode = #tpu.pipeline_mode<synchronous>, transform_indices = @transform_1, window_bounds = array<i64: 3, 3, 4, 4>}, {pipeline_mode = #tpu.pipeline_mode<synchronous>, transform_indices = @transform_2, window_bounds = array<i64: 1, 4>}, {pipeline_mode = #tpu.pipeline_mode<synchronous>, transform_indices = @transform_3, window_bounds = array<i64: 3, 3, 4, 4>}, {pipeline_mode = #tpu.pipeline_mode<synchronous>, transform_indices = @transform_4, window_bounds = array<i64: 1, 4>}, {transform_indices = @transform_5, window_bounds = array<i64: 1, 8, 16, 4>}]} {
    %c8_i32 = arith.constant 8 : i32
    %0 = arith.muli %arg1, %c8_i32 : i32
    %1 = tpu.iota {dimensions = array<i32: 1>} : vector<1x16x1xi32>
    %c0_i32 = arith.constant 0 : i32
    %2 = vector.broadcast %c0_i32 : i32 to vector<1x16x1xi32>
    %3 = arith.cmpi eq, %1, %2 : vector<1x16x1xi32>
    %c15_i32 = arith.constant 15 : i32
    %4 = vector.broadcast %c15_i32 : i32 to vector<1x16x1xi32>
    %5 = arith.cmpi eq, %1, %4 : vector<1x16x1xi32>
    %c0 = arith.constant 0 : index
    %6 = arith.index_cast %0 : i32 to index
    %c0_0 = arith.constant 0 : index
    %c0_1 = arith.constant 0 : index
    %7 = vector.load %arg2[%c0, %6, %c0_0, %c0_1] : memref<1x16x16x4xbf16, #tpu.memory_space<vmem>>, vector<1x8x16x4xbf16>
    %8 = vector.shape_cast %7 : vector<1x8x16x4xbf16> to vector<8x16x4xbf16>
    %c2_i32 = arith.constant 2 : i32
    %9 = arith.subi %0, %c2_i32 : i32
    %c0_i32_2 = arith.constant 0 : i32
    %c15_i32_3 = arith.constant 15 : i32
    %10 = arith.maxsi %c0_i32_2, %9 : i32
    %11 = arith.minsi %c15_i32_3, %10 : i32
    %c0_4 = arith.constant 0 : index
    %12 = arith.index_cast %11 : i32 to index
    %c0_5 = arith.constant 0 : index
    %c0_6 = arith.constant 0 : index
    %13 = vector.load %arg2[%c0_4, %12, %c0_5, %c0_6] : memref<1x16x16x4xbf16, #tpu.memory_space<vmem>>, vector<1x1x16x4xbf16>
    %14 = vector.shape_cast %13 : vector<1x1x16x4xbf16> to vector<1x16x4xbf16>
    %c0_i32_7 = arith.constant 0 : i32
    %15 = arith.cmpi sge, %9, %c0_i32_7 : i32
    %c16_i32 = arith.constant 16 : i32
    %16 = arith.cmpi slt, %9, %c16_i32 : i32
    %17 = arith.andi %15, %16 : i1
    %cst = arith.constant 0.000000e+00 : bf16
    %18 = vector.broadcast %cst : bf16 to vector<1x16x4xbf16>
    %19 = arith.select %17, %14, %18 : vector<1x16x4xbf16>
    %c1_i32 = arith.constant 1 : i32
    %20 = arith.subi %0, %c1_i32 : i32
    %c0_i32_8 = arith.constant 0 : i32
    %c15_i32_9 = arith.constant 15 : i32
    %21 = arith.maxsi %c0_i32_8, %20 : i32
    %22 = arith.minsi %c15_i32_9, %21 : i32
    %c0_10 = arith.constant 0 : index
    %23 = arith.index_cast %22 : i32 to index
    %c0_11 = arith.constant 0 : index
    %c0_12 = arith.constant 0 : index
    %24 = vector.load %arg2[%c0_10, %23, %c0_11, %c0_12] : memref<1x16x16x4xbf16, #tpu.memory_space<vmem>>, vector<1x1x16x4xbf16>
    %25 = vector.shape_cast %24 : vector<1x1x16x4xbf16> to vector<1x16x4xbf16>
    %c0_i32_13 = arith.constant 0 : i32
    %26 = arith.cmpi sge, %20, %c0_i32_13 : i32
    %c16_i32_14 = arith.constant 16 : i32
    %27 = arith.cmpi slt, %20, %c16_i32_14 : i32
    %28 = arith.andi %26, %27 : i1
    %cst_15 = arith.constant 0.000000e+00 : bf16
    %29 = vector.broadcast %cst_15 : bf16 to vector<1x16x4xbf16>
    %30 = arith.select %28, %25, %29 : vector<1x16x4xbf16>
    %c8_i32_16 = arith.constant 8 : i32
    %31 = arith.addi %0, %c8_i32_16 : i32
    %c0_i32_17 = arith.constant 0 : i32
    %c15_i32_18 = arith.constant 15 : i32
    %32 = arith.maxsi %c0_i32_17, %31 : i32
    %33 = arith.minsi %c15_i32_18, %32 : i32
    %c0_19 = arith.constant 0 : index
    %34 = arith.index_cast %33 : i32 to index
    %c0_20 = arith.constant 0 : index
    %c0_21 = arith.constant 0 : index
    %35 = vector.load %arg2[%c0_19, %34, %c0_20, %c0_21] : memref<1x16x16x4xbf16, #tpu.memory_space<vmem>>, vector<1x1x16x4xbf16>
    %36 = vector.shape_cast %35 : vector<1x1x16x4xbf16> to vector<1x16x4xbf16>
    %c0_i32_22 = arith.constant 0 : i32
    %37 = arith.cmpi sge, %31, %c0_i32_22 : i32
    %c16_i32_23 = arith.constant 16 : i32
    %38 = arith.cmpi slt, %31, %c16_i32_23 : i32
    %39 = arith.andi %37, %38 : i1
    %cst_24 = arith.constant 0.000000e+00 : bf16
    %40 = vector.broadcast %cst_24 : bf16 to vector<1x16x4xbf16>
    %41 = arith.select %39, %36, %40 : vector<1x16x4xbf16>
    %c8_i32_25 = arith.constant 8 : i32
    %42 = arith.addi %0, %c8_i32_25 : i32
    %c1_i32_26 = arith.constant 1 : i32
    %43 = arith.addi %42, %c1_i32_26 : i32
    %c0_i32_27 = arith.constant 0 : i32
    %c15_i32_28 = arith.constant 15 : i32
    %44 = arith.maxsi %c0_i32_27, %43 : i32
    %45 = arith.minsi %c15_i32_28, %44 : i32
    %c0_29 = arith.constant 0 : index
    %46 = arith.index_cast %45 : i32 to index
    %c0_30 = arith.constant 0 : index
    %c0_31 = arith.constant 0 : index
    %47 = vector.load %arg2[%c0_29, %46, %c0_30, %c0_31] : memref<1x16x16x4xbf16, #tpu.memory_space<vmem>>, vector<1x1x16x4xbf16>
    %48 = vector.shape_cast %47 : vector<1x1x16x4xbf16> to vector<1x16x4xbf16>
    %c0_i32_32 = arith.constant 0 : i32
    %49 = arith.cmpi sge, %43, %c0_i32_32 : i32
    %c16_i32_33 = arith.constant 16 : i32
    %50 = arith.cmpi slt, %43, %c16_i32_33 : i32
    %51 = arith.andi %49, %50 : i1
    %cst_34 = arith.constant 0.000000e+00 : bf16
    %52 = vector.broadcast %cst_34 : bf16 to vector<1x16x4xbf16>
    %53 = arith.select %51, %48, %52 : vector<1x16x4xbf16>
    %54 = tpu.concatenate %19, %30, %8, %41, %53 in 0 : vector<1x16x4xbf16>, vector<1x16x4xbf16>, vector<8x16x4xbf16>, vector<1x16x4xbf16>, vector<1x16x4xbf16> -> vector<12x16x4xbf16>
    %55 = arith.extf %54 : vector<12x16x4xbf16> to vector<12x16x4xf32>
    %56 = vector.extract_strided_slice %55 {offsets = [2, 0, 0], sizes = [8, 16, 4], strides = [1, 1, 1]} : vector<12x16x4xf32> to vector<8x16x4xf32>
    %c1_i32_35 = arith.constant 1 : i32
    %57 = tpu.dynamic_rotate %55 by %c1_i32_35 dim 1 : vector<12x16x4xf32>, i32 -> vector<12x16x4xf32>
    %cst_36 = arith.constant 0.000000e+00 : f32
    %58 = vector.shape_cast %3 : vector<1x16x1xi1> to vector<1x16x1xi1>
    %59 = vector.broadcast %58 : vector<1x16x1xi1> to vector<12x16x4xi1>
    %60 = vector.broadcast %cst_36 : f32 to vector<12x16x4xf32>
    %61 = arith.select %59, %60, %57 : vector<12x16x4xi1>, vector<12x16x4xf32>
    %c15_i32_37 = arith.constant 15 : i32
    %62 = tpu.dynamic_rotate %55 by %c15_i32_37 dim 1 : vector<12x16x4xf32>, i32 -> vector<12x16x4xf32>
    %cst_38 = arith.constant 0.000000e+00 : f32
    %63 = vector.shape_cast %5 : vector<1x16x1xi1> to vector<1x16x1xi1>
    %64 = vector.broadcast %63 : vector<1x16x1xi1> to vector<12x16x4xi1>
    %65 = vector.broadcast %cst_38 : f32 to vector<12x16x4xf32>
    %66 = arith.select %64, %65, %62 : vector<12x16x4xi1>, vector<12x16x4xf32>
    %67 = arith.truncf %61 : vector<12x16x4xf32> to vector<12x16x4xbf16>
    %68 = arith.truncf %55 : vector<12x16x4xf32> to vector<12x16x4xbf16>
    %69 = arith.truncf %66 : vector<12x16x4xf32> to vector<12x16x4xbf16>
    %cst_39 = arith.constant 0.000000e+00 : f32
    %70 = vector.broadcast %cst_39 : f32 to vector<160x4xf32>
    %71 = vector.extract_strided_slice %67 {offsets = [0, 0, 0], sizes = [10, 16, 4], strides = [1, 1, 1]} : vector<12x16x4xbf16> to vector<10x16x4xbf16>
    %72 = vector.shape_cast %71 : vector<10x16x4xbf16> to vector<160x4xbf16>
    %c0_40 = arith.constant 0 : index
    %c0_41 = arith.constant 0 : index
    %c0_42 = arith.constant 0 : index
    %c0_43 = arith.constant 0 : index
    %73 = vector.load %arg3[%c0_40, %c0_41, %c0_42, %c0_43] : memref<3x3x4x4xbf16, #tpu.memory_space<vmem>>, vector<1x1x4x4xbf16>
    %74 = vector.shape_cast %73 : vector<1x1x4x4xbf16> to vector<4x4xbf16>
    %cst_44 = arith.constant dense<0.000000e+00> : vector<160x4xf32>
    %75 = tpu.matmul %72, %74, %cst_44 {dimension_numbers = #tpu.dot_dimension_numbers<[1], [0], [0], [1], [0, 0, 1, 1], [], []>} : vector<160x4xbf16>, vector<4x4xbf16>, vector<160x4xf32> -> vector<160x4xf32>
    %76 = arith.addf %70, %75 : vector<160x4xf32>
    %77 = vector.extract_strided_slice %68 {offsets = [0, 0, 0], sizes = [10, 16, 4], strides = [1, 1, 1]} : vector<12x16x4xbf16> to vector<10x16x4xbf16>
    %78 = vector.shape_cast %77 : vector<10x16x4xbf16> to vector<160x4xbf16>
    %c0_45 = arith.constant 0 : index
    %c1 = arith.constant 1 : index
    %c0_46 = arith.constant 0 : index
    %c0_47 = arith.constant 0 : index
    %79 = vector.load %arg3[%c0_45, %c1, %c0_46, %c0_47] : memref<3x3x4x4xbf16, #tpu.memory_space<vmem>>, vector<1x1x4x4xbf16>
    %80 = vector.shape_cast %79 : vector<1x1x4x4xbf16> to vector<4x4xbf16>
    %cst_48 = arith.constant dense<0.000000e+00> : vector<160x4xf32>
    %81 = tpu.matmul %78, %80, %cst_48 {dimension_numbers = #tpu.dot_dimension_numbers<[1], [0], [0], [1], [0, 0, 1, 1], [], []>} : vector<160x4xbf16>, vector<4x4xbf16>, vector<160x4xf32> -> vector<160x4xf32>
    %82 = arith.addf %76, %81 : vector<160x4xf32>
    %83 = vector.extract_strided_slice %69 {offsets = [0, 0, 0], sizes = [10, 16, 4], strides = [1, 1, 1]} : vector<12x16x4xbf16> to vector<10x16x4xbf16>
    %84 = vector.shape_cast %83 : vector<10x16x4xbf16> to vector<160x4xbf16>
    %c0_49 = arith.constant 0 : index
    %c2 = arith.constant 2 : index
    %c0_50 = arith.constant 0 : index
    %c0_51 = arith.constant 0 : index
    %85 = vector.load %arg3[%c0_49, %c2, %c0_50, %c0_51] : memref<3x3x4x4xbf16, #tpu.memory_space<vmem>>, vector<1x1x4x4xbf16>
    %86 = vector.shape_cast %85 : vector<1x1x4x4xbf16> to vector<4x4xbf16>
    %cst_52 = arith.constant dense<0.000000e+00> : vector<160x4xf32>
    %87 = tpu.matmul %84, %86, %cst_52 {dimension_numbers = #tpu.dot_dimension_numbers<[1], [0], [0], [1], [0, 0, 1, 1], [], []>} : vector<160x4xbf16>, vector<4x4xbf16>, vector<160x4xf32> -> vector<160x4xf32>
    %88 = arith.addf %82, %87 : vector<160x4xf32>
    %89 = vector.extract_strided_slice %67 {offsets = [1, 0, 0], sizes = [10, 16, 4], strides = [1, 1, 1]} : vector<12x16x4xbf16> to vector<10x16x4xbf16>
    %90 = vector.shape_cast %89 : vector<10x16x4xbf16> to vector<160x4xbf16>
    %c1_53 = arith.constant 1 : index
    %c0_54 = arith.constant 0 : index
    %c0_55 = arith.constant 0 : index
    %c0_56 = arith.constant 0 : index
    %91 = vector.load %arg3[%c1_53, %c0_54, %c0_55, %c0_56] : memref<3x3x4x4xbf16, #tpu.memory_space<vmem>>, vector<1x1x4x4xbf16>
    %92 = vector.shape_cast %91 : vector<1x1x4x4xbf16> to vector<4x4xbf16>
    %cst_57 = arith.constant dense<0.000000e+00> : vector<160x4xf32>
    %93 = tpu.matmul %90, %92, %cst_57 {dimension_numbers = #tpu.dot_dimension_numbers<[1], [0], [0], [1], [0, 0, 1, 1], [], []>} : vector<160x4xbf16>, vector<4x4xbf16>, vector<160x4xf32> -> vector<160x4xf32>
    %94 = arith.addf %88, %93 : vector<160x4xf32>
    %95 = vector.extract_strided_slice %68 {offsets = [1, 0, 0], sizes = [10, 16, 4], strides = [1, 1, 1]} : vector<12x16x4xbf16> to vector<10x16x4xbf16>
    %96 = vector.shape_cast %95 : vector<10x16x4xbf16> to vector<160x4xbf16>
    %c1_58 = arith.constant 1 : index
    %c1_59 = arith.constant 1 : index
    %c0_60 = arith.constant 0 : index
    %c0_61 = arith.constant 0 : index
    %97 = vector.load %arg3[%c1_58, %c1_59, %c0_60, %c0_61] : memref<3x3x4x4xbf16, #tpu.memory_space<vmem>>, vector<1x1x4x4xbf16>
    %98 = vector.shape_cast %97 : vector<1x1x4x4xbf16> to vector<4x4xbf16>
    %cst_62 = arith.constant dense<0.000000e+00> : vector<160x4xf32>
    %99 = tpu.matmul %96, %98, %cst_62 {dimension_numbers = #tpu.dot_dimension_numbers<[1], [0], [0], [1], [0, 0, 1, 1], [], []>} : vector<160x4xbf16>, vector<4x4xbf16>, vector<160x4xf32> -> vector<160x4xf32>
    %100 = arith.addf %94, %99 : vector<160x4xf32>
    %101 = vector.extract_strided_slice %69 {offsets = [1, 0, 0], sizes = [10, 16, 4], strides = [1, 1, 1]} : vector<12x16x4xbf16> to vector<10x16x4xbf16>
    %102 = vector.shape_cast %101 : vector<10x16x4xbf16> to vector<160x4xbf16>
    %c1_63 = arith.constant 1 : index
    %c2_64 = arith.constant 2 : index
    %c0_65 = arith.constant 0 : index
    %c0_66 = arith.constant 0 : index
    %103 = vector.load %arg3[%c1_63, %c2_64, %c0_65, %c0_66] : memref<3x3x4x4xbf16, #tpu.memory_space<vmem>>, vector<1x1x4x4xbf16>
    %104 = vector.shape_cast %103 : vector<1x1x4x4xbf16> to vector<4x4xbf16>
    %cst_67 = arith.constant dense<0.000000e+00> : vector<160x4xf32>
    %105 = tpu.matmul %102, %104, %cst_67 {dimension_numbers = #tpu.dot_dimension_numbers<[1], [0], [0], [1], [0, 0, 1, 1], [], []>} : vector<160x4xbf16>, vector<4x4xbf16>, vector<160x4xf32> -> vector<160x4xf32>
    %106 = arith.addf %100, %105 : vector<160x4xf32>
    %107 = vector.extract_strided_slice %67 {offsets = [2, 0, 0], sizes = [10, 16, 4], strides = [1, 1, 1]} : vector<12x16x4xbf16> to vector<10x16x4xbf16>
    %108 = vector.shape_cast %107 : vector<10x16x4xbf16> to vector<160x4xbf16>
    %c2_68 = arith.constant 2 : index
    %c0_69 = arith.constant 0 : index
    %c0_70 = arith.constant 0 : index
    %c0_71 = arith.constant 0 : index
    %109 = vector.load %arg3[%c2_68, %c0_69, %c0_70, %c0_71] : memref<3x3x4x4xbf16, #tpu.memory_space<vmem>>, vector<1x1x4x4xbf16>
    %110 = vector.shape_cast %109 : vector<1x1x4x4xbf16> to vector<4x4xbf16>
    %cst_72 = arith.constant dense<0.000000e+00> : vector<160x4xf32>
    %111 = tpu.matmul %108, %110, %cst_72 {dimension_numbers = #tpu.dot_dimension_numbers<[1], [0], [0], [1], [0, 0, 1, 1], [], []>} : vector<160x4xbf16>, vector<4x4xbf16>, vector<160x4xf32> -> vector<160x4xf32>
    %112 = arith.addf %106, %111 : vector<160x4xf32>
    %113 = vector.extract_strided_slice %68 {offsets = [2, 0, 0], sizes = [10, 16, 4], strides = [1, 1, 1]} : vector<12x16x4xbf16> to vector<10x16x4xbf16>
    %114 = vector.shape_cast %113 : vector<10x16x4xbf16> to vector<160x4xbf16>
    %c2_73 = arith.constant 2 : index
    %c1_74 = arith.constant 1 : index
    %c0_75 = arith.constant 0 : index
    %c0_76 = arith.constant 0 : index
    %115 = vector.load %arg3[%c2_73, %c1_74, %c0_75, %c0_76] : memref<3x3x4x4xbf16, #tpu.memory_space<vmem>>, vector<1x1x4x4xbf16>
    %116 = vector.shape_cast %115 : vector<1x1x4x4xbf16> to vector<4x4xbf16>
    %cst_77 = arith.constant dense<0.000000e+00> : vector<160x4xf32>
    %117 = tpu.matmul %114, %116, %cst_77 {dimension_numbers = #tpu.dot_dimension_numbers<[1], [0], [0], [1], [0, 0, 1, 1], [], []>} : vector<160x4xbf16>, vector<4x4xbf16>, vector<160x4xf32> -> vector<160x4xf32>
    %118 = arith.addf %112, %117 : vector<160x4xf32>
    %119 = vector.extract_strided_slice %69 {offsets = [2, 0, 0], sizes = [10, 16, 4], strides = [1, 1, 1]} : vector<12x16x4xbf16> to vector<10x16x4xbf16>
    %120 = vector.shape_cast %119 : vector<10x16x4xbf16> to vector<160x4xbf16>
    %c2_78 = arith.constant 2 : index
    %c2_79 = arith.constant 2 : index
    %c0_80 = arith.constant 0 : index
    %c0_81 = arith.constant 0 : index
    %121 = vector.load %arg3[%c2_78, %c2_79, %c0_80, %c0_81] : memref<3x3x4x4xbf16, #tpu.memory_space<vmem>>, vector<1x1x4x4xbf16>
    %122 = vector.shape_cast %121 : vector<1x1x4x4xbf16> to vector<4x4xbf16>
    %cst_82 = arith.constant dense<0.000000e+00> : vector<160x4xf32>
    %123 = tpu.matmul %120, %122, %cst_82 {dimension_numbers = #tpu.dot_dimension_numbers<[1], [0], [0], [1], [0, 0, 1, 1], [], []>} : vector<160x4xbf16>, vector<4x4xbf16>, vector<160x4xf32> -> vector<160x4xf32>
    %124 = arith.addf %118, %123 : vector<160x4xf32>
    %125 = vector.shape_cast %124 : vector<160x4xf32> to vector<10x16x4xf32>
    %c0_83 = arith.constant 0 : index
    %c0_84 = arith.constant 0 : index
    %126 = vector.load %arg4[%c0_83, %c0_84] : memref<1x4xf32, #tpu.memory_space<vmem>>, vector<1x4xf32>
    %127 = vector.shape_cast %126 : vector<1x4xf32> to vector<1x1x4xf32>
    %128 = vector.broadcast %127 : vector<1x1x4xf32> to vector<10x16x4xf32>
    %129 = arith.addf %125, %128 : vector<10x16x4xf32>
    %cst_85 = arith.constant 0.000000e+00 : f32
    %130 = vector.broadcast %cst_85 : f32 to vector<10x16x4xf32>
    %131 = arith.maximumf %129, %130 : vector<10x16x4xf32>
    %c1_i32_86 = arith.constant 1 : i32
    %132 = arith.subi %0, %c1_i32_86 : i32
    %133 = tpu.iota {dimensions = array<i32: 0>} : vector<10x1x1xi32>
    %134 = vector.broadcast %132 : i32 to vector<10x1x1xi32>
    %135 = arith.addi %134, %133 : vector<10x1x1xi32>
    %c0_i32_87 = arith.constant 0 : i32
    %136 = vector.broadcast %c0_i32_87 : i32 to vector<10x1x1xi32>
    %137 = arith.cmpi sge, %135, %136 : vector<10x1x1xi32>
    %c16_i32_88 = arith.constant 16 : i32
    %138 = vector.broadcast %c16_i32_88 : i32 to vector<10x1x1xi32>
    %139 = arith.cmpi slt, %135, %138 : vector<10x1x1xi32>
    %140 = arith.andi %137, %139 : vector<10x1x1xi1>
    %cst_89 = arith.constant 0.000000e+00 : f32
    %141 = vector.shape_cast %140 : vector<10x1x1xi1> to vector<10x1x1xi1>
    %142 = vector.broadcast %141 : vector<10x1x1xi1> to vector<10x16x4xi1>
    %143 = vector.broadcast %cst_89 : f32 to vector<10x16x4xf32>
    %144 = arith.select %142, %131, %143 : vector<10x16x4xi1>, vector<10x16x4xf32>
    %c1_i32_90 = arith.constant 1 : i32
    %145 = tpu.dynamic_rotate %144 by %c1_i32_90 dim 1 : vector<10x16x4xf32>, i32 -> vector<10x16x4xf32>
    %cst_91 = arith.constant 0.000000e+00 : f32
    %146 = vector.shape_cast %3 : vector<1x16x1xi1> to vector<1x16x1xi1>
    %147 = vector.broadcast %146 : vector<1x16x1xi1> to vector<10x16x4xi1>
    %148 = vector.broadcast %cst_91 : f32 to vector<10x16x4xf32>
    %149 = arith.select %147, %148, %145 : vector<10x16x4xi1>, vector<10x16x4xf32>
    %c15_i32_92 = arith.constant 15 : i32
    %150 = tpu.dynamic_rotate %144 by %c15_i32_92 dim 1 : vector<10x16x4xf32>, i32 -> vector<10x16x4xf32>
    %cst_93 = arith.constant 0.000000e+00 : f32
    %151 = vector.shape_cast %5 : vector<1x16x1xi1> to vector<1x16x1xi1>
    %152 = vector.broadcast %151 : vector<1x16x1xi1> to vector<10x16x4xi1>
    %153 = vector.broadcast %cst_93 : f32 to vector<10x16x4xf32>
    %154 = arith.select %152, %153, %150 : vector<10x16x4xi1>, vector<10x16x4xf32>
    %155 = arith.truncf %149 : vector<10x16x4xf32> to vector<10x16x4xbf16>
    %156 = arith.truncf %144 : vector<10x16x4xf32> to vector<10x16x4xbf16>
    %157 = arith.truncf %154 : vector<10x16x4xf32> to vector<10x16x4xbf16>
    %cst_94 = arith.constant 0.000000e+00 : f32
    %158 = vector.broadcast %cst_94 : f32 to vector<128x4xf32>
    %159 = vector.extract_strided_slice %155 {offsets = [0, 0, 0], sizes = [8, 16, 4], strides = [1, 1, 1]} : vector<10x16x4xbf16> to vector<8x16x4xbf16>
    %160 = vector.shape_cast %159 : vector<8x16x4xbf16> to vector<128x4xbf16>
    %c0_95 = arith.constant 0 : index
    %c0_96 = arith.constant 0 : index
    %c0_97 = arith.constant 0 : index
    %c0_98 = arith.constant 0 : index
    %161 = vector.load %arg5[%c0_95, %c0_96, %c0_97, %c0_98] : memref<3x3x4x4xbf16, #tpu.memory_space<vmem>>, vector<1x1x4x4xbf16>
    %162 = vector.shape_cast %161 : vector<1x1x4x4xbf16> to vector<4x4xbf16>
    %cst_99 = arith.constant dense<0.000000e+00> : vector<128x4xf32>
    %163 = tpu.matmul %160, %162, %cst_99 {dimension_numbers = #tpu.dot_dimension_numbers<[1], [0], [0], [1], [0, 0, 1, 1], [], []>} : vector<128x4xbf16>, vector<4x4xbf16>, vector<128x4xf32> -> vector<128x4xf32>
    %164 = arith.addf %158, %163 : vector<128x4xf32>
    %165 = vector.extract_strided_slice %156 {offsets = [0, 0, 0], sizes = [8, 16, 4], strides = [1, 1, 1]} : vector<10x16x4xbf16> to vector<8x16x4xbf16>
    %166 = vector.shape_cast %165 : vector<8x16x4xbf16> to vector<128x4xbf16>
    %c0_100 = arith.constant 0 : index
    %c1_101 = arith.constant 1 : index
    %c0_102 = arith.constant 0 : index
    %c0_103 = arith.constant 0 : index
    %167 = vector.load %arg5[%c0_100, %c1_101, %c0_102, %c0_103] : memref<3x3x4x4xbf16, #tpu.memory_space<vmem>>, vector<1x1x4x4xbf16>
    %168 = vector.shape_cast %167 : vector<1x1x4x4xbf16> to vector<4x4xbf16>
    %cst_104 = arith.constant dense<0.000000e+00> : vector<128x4xf32>
    %169 = tpu.matmul %166, %168, %cst_104 {dimension_numbers = #tpu.dot_dimension_numbers<[1], [0], [0], [1], [0, 0, 1, 1], [], []>} : vector<128x4xbf16>, vector<4x4xbf16>, vector<128x4xf32> -> vector<128x4xf32>
    %170 = arith.addf %164, %169 : vector<128x4xf32>
    %171 = vector.extract_strided_slice %157 {offsets = [0, 0, 0], sizes = [8, 16, 4], strides = [1, 1, 1]} : vector<10x16x4xbf16> to vector<8x16x4xbf16>
    %172 = vector.shape_cast %171 : vector<8x16x4xbf16> to vector<128x4xbf16>
    %c0_105 = arith.constant 0 : index
    %c2_106 = arith.constant 2 : index
    %c0_107 = arith.constant 0 : index
    %c0_108 = arith.constant 0 : index
    %173 = vector.load %arg5[%c0_105, %c2_106, %c0_107, %c0_108] : memref<3x3x4x4xbf16, #tpu.memory_space<vmem>>, vector<1x1x4x4xbf16>
    %174 = vector.shape_cast %173 : vector<1x1x4x4xbf16> to vector<4x4xbf16>
    %cst_109 = arith.constant dense<0.000000e+00> : vector<128x4xf32>
    %175 = tpu.matmul %172, %174, %cst_109 {dimension_numbers = #tpu.dot_dimension_numbers<[1], [0], [0], [1], [0, 0, 1, 1], [], []>} : vector<128x4xbf16>, vector<4x4xbf16>, vector<128x4xf32> -> vector<128x4xf32>
    %176 = arith.addf %170, %175 : vector<128x4xf32>
    %177 = vector.extract_strided_slice %155 {offsets = [1, 0, 0], sizes = [8, 16, 4], strides = [1, 1, 1]} : vector<10x16x4xbf16> to vector<8x16x4xbf16>
    %178 = vector.shape_cast %177 : vector<8x16x4xbf16> to vector<128x4xbf16>
    %c1_110 = arith.constant 1 : index
    %c0_111 = arith.constant 0 : index
    %c0_112 = arith.constant 0 : index
    %c0_113 = arith.constant 0 : index
    %179 = vector.load %arg5[%c1_110, %c0_111, %c0_112, %c0_113] : memref<3x3x4x4xbf16, #tpu.memory_space<vmem>>, vector<1x1x4x4xbf16>
    %180 = vector.shape_cast %179 : vector<1x1x4x4xbf16> to vector<4x4xbf16>
    %cst_114 = arith.constant dense<0.000000e+00> : vector<128x4xf32>
    %181 = tpu.matmul %178, %180, %cst_114 {dimension_numbers = #tpu.dot_dimension_numbers<[1], [0], [0], [1], [0, 0, 1, 1], [], []>} : vector<128x4xbf16>, vector<4x4xbf16>, vector<128x4xf32> -> vector<128x4xf32>
    %182 = arith.addf %176, %181 : vector<128x4xf32>
    %183 = vector.extract_strided_slice %156 {offsets = [1, 0, 0], sizes = [8, 16, 4], strides = [1, 1, 1]} : vector<10x16x4xbf16> to vector<8x16x4xbf16>
    %184 = vector.shape_cast %183 : vector<8x16x4xbf16> to vector<128x4xbf16>
    %c1_115 = arith.constant 1 : index
    %c1_116 = arith.constant 1 : index
    %c0_117 = arith.constant 0 : index
    %c0_118 = arith.constant 0 : index
    %185 = vector.load %arg5[%c1_115, %c1_116, %c0_117, %c0_118] : memref<3x3x4x4xbf16, #tpu.memory_space<vmem>>, vector<1x1x4x4xbf16>
    %186 = vector.shape_cast %185 : vector<1x1x4x4xbf16> to vector<4x4xbf16>
    %cst_119 = arith.constant dense<0.000000e+00> : vector<128x4xf32>
    %187 = tpu.matmul %184, %186, %cst_119 {dimension_numbers = #tpu.dot_dimension_numbers<[1], [0], [0], [1], [0, 0, 1, 1], [], []>} : vector<128x4xbf16>, vector<4x4xbf16>, vector<128x4xf32> -> vector<128x4xf32>
    %188 = arith.addf %182, %187 : vector<128x4xf32>
    %189 = vector.extract_strided_slice %157 {offsets = [1, 0, 0], sizes = [8, 16, 4], strides = [1, 1, 1]} : vector<10x16x4xbf16> to vector<8x16x4xbf16>
    %190 = vector.shape_cast %189 : vector<8x16x4xbf16> to vector<128x4xbf16>
    %c1_120 = arith.constant 1 : index
    %c2_121 = arith.constant 2 : index
    %c0_122 = arith.constant 0 : index
    %c0_123 = arith.constant 0 : index
    %191 = vector.load %arg5[%c1_120, %c2_121, %c0_122, %c0_123] : memref<3x3x4x4xbf16, #tpu.memory_space<vmem>>, vector<1x1x4x4xbf16>
    %192 = vector.shape_cast %191 : vector<1x1x4x4xbf16> to vector<4x4xbf16>
    %cst_124 = arith.constant dense<0.000000e+00> : vector<128x4xf32>
    %193 = tpu.matmul %190, %192, %cst_124 {dimension_numbers = #tpu.dot_dimension_numbers<[1], [0], [0], [1], [0, 0, 1, 1], [], []>} : vector<128x4xbf16>, vector<4x4xbf16>, vector<128x4xf32> -> vector<128x4xf32>
    %194 = arith.addf %188, %193 : vector<128x4xf32>
    %195 = vector.extract_strided_slice %155 {offsets = [2, 0, 0], sizes = [8, 16, 4], strides = [1, 1, 1]} : vector<10x16x4xbf16> to vector<8x16x4xbf16>
    %196 = vector.shape_cast %195 : vector<8x16x4xbf16> to vector<128x4xbf16>
    %c2_125 = arith.constant 2 : index
    %c0_126 = arith.constant 0 : index
    %c0_127 = arith.constant 0 : index
    %c0_128 = arith.constant 0 : index
    %197 = vector.load %arg5[%c2_125, %c0_126, %c0_127, %c0_128] : memref<3x3x4x4xbf16, #tpu.memory_space<vmem>>, vector<1x1x4x4xbf16>
    %198 = vector.shape_cast %197 : vector<1x1x4x4xbf16> to vector<4x4xbf16>
    %cst_129 = arith.constant dense<0.000000e+00> : vector<128x4xf32>
    %199 = tpu.matmul %196, %198, %cst_129 {dimension_numbers = #tpu.dot_dimension_numbers<[1], [0], [0], [1], [0, 0, 1, 1], [], []>} : vector<128x4xbf16>, vector<4x4xbf16>, vector<128x4xf32> -> vector<128x4xf32>
    %200 = arith.addf %194, %199 : vector<128x4xf32>
    %201 = vector.extract_strided_slice %156 {offsets = [2, 0, 0], sizes = [8, 16, 4], strides = [1, 1, 1]} : vector<10x16x4xbf16> to vector<8x16x4xbf16>
    %202 = vector.shape_cast %201 : vector<8x16x4xbf16> to vector<128x4xbf16>
    %c2_130 = arith.constant 2 : index
    %c1_131 = arith.constant 1 : index
    %c0_132 = arith.constant 0 : index
    %c0_133 = arith.constant 0 : index
    %203 = vector.load %arg5[%c2_130, %c1_131, %c0_132, %c0_133] : memref<3x3x4x4xbf16, #tpu.memory_space<vmem>>, vector<1x1x4x4xbf16>
    %204 = vector.shape_cast %203 : vector<1x1x4x4xbf16> to vector<4x4xbf16>
    %cst_134 = arith.constant dense<0.000000e+00> : vector<128x4xf32>
    %205 = tpu.matmul %202, %204, %cst_134 {dimension_numbers = #tpu.dot_dimension_numbers<[1], [0], [0], [1], [0, 0, 1, 1], [], []>} : vector<128x4xbf16>, vector<4x4xbf16>, vector<128x4xf32> -> vector<128x4xf32>
    %206 = arith.addf %200, %205 : vector<128x4xf32>
    %207 = vector.extract_strided_slice %157 {offsets = [2, 0, 0], sizes = [8, 16, 4], strides = [1, 1, 1]} : vector<10x16x4xbf16> to vector<8x16x4xbf16>
    %208 = vector.shape_cast %207 : vector<8x16x4xbf16> to vector<128x4xbf16>
    %c2_135 = arith.constant 2 : index
    %c2_136 = arith.constant 2 : index
    %c0_137 = arith.constant 0 : index
    %c0_138 = arith.constant 0 : index
    %209 = vector.load %arg5[%c2_135, %c2_136, %c0_137, %c0_138] : memref<3x3x4x4xbf16, #tpu.memory_space<vmem>>, vector<1x1x4x4xbf16>
    %210 = vector.shape_cast %209 : vector<1x1x4x4xbf16> to vector<4x4xbf16>
    %cst_139 = arith.constant dense<0.000000e+00> : vector<128x4xf32>
    %211 = tpu.matmul %208, %210, %cst_139 {dimension_numbers = #tpu.dot_dimension_numbers<[1], [0], [0], [1], [0, 0, 1, 1], [], []>} : vector<128x4xbf16>, vector<4x4xbf16>, vector<128x4xf32> -> vector<128x4xf32>
    %212 = arith.addf %206, %211 : vector<128x4xf32>
    %213 = vector.shape_cast %212 : vector<128x4xf32> to vector<8x16x4xf32>
    %c0_140 = arith.constant 0 : index
    %c0_141 = arith.constant 0 : index
    %214 = vector.load %arg6[%c0_140, %c0_141] : memref<1x4xf32, #tpu.memory_space<vmem>>, vector<1x4xf32>
    %215 = vector.shape_cast %214 : vector<1x4xf32> to vector<1x1x4xf32>
    %216 = vector.broadcast %215 : vector<1x1x4xf32> to vector<8x16x4xf32>
    %217 = arith.addf %213, %216 : vector<8x16x4xf32>
    %218 = arith.addf %217, %56 : vector<8x16x4xf32>
    %cst_142 = arith.constant 0.000000e+00 : f32
    %219 = vector.broadcast %cst_142 : f32 to vector<8x16x4xf32>
    %220 = arith.maximumf %218, %219 : vector<8x16x4xf32>
    %c0_143 = arith.constant 0 : index
    %c0_144 = arith.constant 0 : index
    %c0_145 = arith.constant 0 : index
    %c0_146 = arith.constant 0 : index
    %221 = vector.load %arg7[%c0_143, %c0_144, %c0_145, %c0_146] : memref<1x8x16x4xf32, #tpu.memory_space<vmem>>, vector<1x8x16x4xf32>
    %222 = vector.shape_cast %221 : vector<1x8x16x4xf32> to vector<8x16x4xf32>
    %223 = vector.shape_cast %220 : vector<8x16x4xf32> to vector<1x8x16x4xf32>
    tpu.vector_store %arg7[%c0_143, %c0_144, %c0_145, %c0_146], %223 {strides = array<i32>} : memref<1x8x16x4xf32, #tpu.memory_space<vmem>>, vector<1x8x16x4xf32>,
    return
  }
  func.func @transform_0(%arg0: i32, %arg1: i32) -> (i32, i32, i32, i32) {
    %c0_i32 = arith.constant 0 : i32
    %c0_i32_0 = arith.constant 0 : i32
    %c0_i32_1 = arith.constant 0 : i32
    %c0_i32_2 = arith.constant 0 : i32
    return %arg0, %c0_i32, %c0_i32_0, %c0_i32_1 : i32, i32, i32, i32
  }
  func.func @transform_1(%arg0: i32, %arg1: i32) -> (i32, i32, i32, i32) {
    %c0_i32 = arith.constant 0 : i32
    %c0_i32_0 = arith.constant 0 : i32
    %c0_i32_1 = arith.constant 0 : i32
    %c0_i32_2 = arith.constant 0 : i32
    %c0_i32_3 = arith.constant 0 : i32
    return %c0_i32, %c0_i32_0, %c0_i32_1, %c0_i32_2 : i32, i32, i32, i32
  }
  func.func @transform_2(%arg0: i32, %arg1: i32) -> (i32, i32) {
    %c0_i32 = arith.constant 0 : i32
    %c0_i32_0 = arith.constant 0 : i32
    %c0_i32_1 = arith.constant 0 : i32
    return %c0_i32, %c0_i32_0 : i32, i32
  }
  func.func @transform_3(%arg0: i32, %arg1: i32) -> (i32, i32, i32, i32) {
    %c0_i32 = arith.constant 0 : i32
    %c0_i32_0 = arith.constant 0 : i32
    %c0_i32_1 = arith.constant 0 : i32
    %c0_i32_2 = arith.constant 0 : i32
    %c0_i32_3 = arith.constant 0 : i32
    return %c0_i32, %c0_i32_0, %c0_i32_1, %c0_i32_2 : i32, i32, i32, i32
  }
  func.func @transform_4(%arg0: i32, %arg1: i32) -> (i32, i32) {
    %c0_i32 = arith.constant 0 : i32
    %c0_i32_0 = arith.constant 0 : i32
    %c0_i32_1 = arith.constant 0 : i32
    return %c0_i32, %c0_i32_0 : i32, i32
  }
  func.func @transform_5(%arg0: i32, %arg1: i32) -> (i32, i32, i32, i32) {
    %c0_i32 = arith.constant 0 : i32
    %c0_i32_0 = arith.constant 0 : i32
    %c0_i32_1 = arith.constant 0 : i32
    return %arg0, %arg1, %c0_i32, %c0_i32_0 : i32, i32, i32, i32
  }
}

</mosaic_0001>

<llo_original>
// kernel: tpu_custom_call.1
$region0: #{tpu_custom_call.1}
  #allocation0 [shape = 'u32[]', space=smem, size = 0x4, offset = 0x4, fixed_abs, tag = 'smem constant byte address 0x4 - core index']
  #allocation1 [shape = 'u32[72,128]{1,0:T(1,128)}', space=vmem, size = 0x9000, scoped, tag = 'internal scratch']
  %s0 = inlined_call_operand.vmem [shape: bf16[2,16,16,4], index: 0, kind: input, shape index: {}]
  %s1 = inlined_call_operand.vmem [shape: bf16[3,3,4,4], index: 1, kind: input, shape index: {}]
  %s2 = inlined_call_operand.vmem [shape: f32[1,4], index: 2, kind: input, shape index: {}]
  %s3 = inlined_call_operand.vmem [shape: bf16[3,3,4,4], index: 3, kind: input, shape index: {}]
  %s4 = inlined_call_operand.vmem [shape: f32[1,4], index: 4, kind: input, shape index: {}]
  %s5 = inlined_call_operand.vmem [shape: f32[2,16,16,4], index: 5, kind: output, shape index: {}]
  %s6 = sld [smem:[#allocation0]]
  $region53: #{tpu_custom_call.1} parent=0
    _
  %s8 = ssub.s32 1, %s6
  %s9 = scalar_select 0, %s8, %s6
  loop: start=0, step=1, limit=6
  $region2: #{tpu_custom_call.1} parent=0 // loop_pre_header
    _
  $region3: #{tpu_custom_call.1} parent=0 // loop_header
    %s11 = sphi 0, %s15
    %p12 = scmp.ge.s32.totalorder %s11, 6
    %s18 = sphi 0, %s30
    %s19 = sphi 0, %s26
    %s20 = sphi 0, %s18
    %s21 = sphi 0, %s19
    %s22 = sphi 0, %s20
    %s23 = sphi 0, %s21
    %s33 = sphi 0, %s35
    %s36 = sphi 0, %s33
    %s37 = sphi 0, %s36
    %s53 = sphi 0, %s37
    %s57 = sphi 0, %s57
    %s59 = sphi 0, %s57
    %s60 = sphi 0, %s59
    %s74 = sphi 0, %s60
    %s78 = sphi 0, %s78
    %s80 = sphi 0, %s78
    %s81 = sphi 0, %s80
    %s95 = sphi 0, %s81
    %s99 = sphi 0, %s99
    %s101 = sphi 0, %s99
    %s102 = sphi 0, %s101
    %s116 = sphi 0, %s102
    %s120 = sphi 0, %s120
    %s122 = sphi 0, %s120
    %s123 = sphi 0, %s122
    %s137 = sphi 0, %s123
    %s145 = sphi 0, %s147
    %s148 = sphi 0, %s145
    %s149 = sphi 0, %s148
    %s165 = sphi 0, %s149
  $region4: #{tpu_custom_call.1} parent=0 // loop_header_branch
    %14 = sbr.rel (%p12) target = $region8
  $region5: #{tpu_custom_call.1} parent=0 // loop_body
    %s16 = ssub.s32 %s11, 1
    %s17 = ssub.s32 %s11, 2
    %s24 = sadd.s32 1, %s19
    %p25 = scmp.ge.s32.totalorder %s24, 2
    %s26 = scalar_select %p25, 0, %s24
    %s27 = sadd.s32 1, %s18
    %s28 = scalar_select %p25, %s27, %s18
    %p29 = scmp.ge.s32.totalorder %s28, 2
    %s30 = scalar_select %p29, 0, %s28
    %s31 = ssub.s32 %s18, %s30
    %p32 = scmp.eq.s32.totalorder %s31, 0
    %s34 = sadd.s32 %s33, 1
    %s35 = scalar_select %p32, %s33, %s34
    %p38 = pneg %p32
    %p39 = scmp.eq.s32.totalorder %s11, 3
    %p40 = por %p38, %p39
    %p41 = scmp.ne.s32.totalorder %s33, %s36
    %p42 = scmp.eq.s32.totalorder %s11, 0
    %p43 = por %p41, %p42
    %p44 = scmp.ne.s32.totalorder %s33, %s36
    %p45 = scmp.eq.s32.totalorder %s16, 3
    %p46 = por %p44, %p45
    %p47 = scmp.ne.s32.totalorder %s36, %s37
    %p48 = scmp.eq.s32.totalorder %s16, 0
    %p49 = por %p47, %p48
    %p50 = scmp.ne.s32.totalorder %s36, %s37
    %p51 = scmp.eq.s32.totalorder %s17, 3
    %p52 = por %p50, %p51
    %p54 = scmp.ne.s32.totalorder %s37, %s53
    %p55 = scmp.eq.s32.totalorder %s17, 0
    %p56 = por %p54, %p55
    %s58 = sadd.s32 %s57, 1
    %p61 = scmp.eq.s32.totalorder %s11, 3
    %p62 = scmp.ne.s32.totalorder %s57, %s59
    %p63 = scmp.eq.s32.totalorder %s11, 0
    %p64 = por %p62, %p63
    %p65 = scmp.ne.s32.totalorder %s57, %s59
    %p66 = scmp.eq.s32.totalorder %s16, 3
    %p67 = por %p65, %p66
    %p68 = scmp.ne.s32.totalorder %s59, %s60
    %p69 = scmp.eq.s32.totalorder %s16, 0
    %p70 = por %p68, %p69
    %p71 = scmp.ne.s32.totalorder %s59, %s60
    %p72 = scmp.eq.s32.totalorder %s17, 3
    %p73 = por %p71, %p72
    %p75 = scmp.ne.s32.totalorder %s60, %s74
    %p76 = scmp.eq.s32.totalorder %s17, 0
    %p77 = por %p75, %p76
    %s79 = sadd.s32 %s78, 1
    %p82 = scmp.eq.s32.totalorder %s11, 3
    %p83 = scmp.ne.s32.totalorder %s78, %s80
    %p84 = scmp.eq.s32.totalorder %s11, 0
    %p85 = por %p83, %p84
    %p86 = scmp.ne.s32.totalorder %s78, %s80
    %p87 = scmp.eq.s32.totalorder %s16, 3
    %p88 = por %p86, %p87
    %p89 = scmp.ne.s32.totalorder %s80, %s81
    %p90 = scmp.eq.s32.totalorder %s16, 0
    %p91 = por %p89, %p90
    %p92 = scmp.ne.s32.totalorder %s80, %s81
    %p93 = scmp.eq.s32.totalorder %s17, 3
    %p94 = por %p92, %p93
    %p96 = scmp.ne.s32.totalorder %s81, %s95
    %p97 = scmp.eq.s32.totalorder %s17, 0
    %p98 = por %p96, %p97
    %s100 = sadd.s32 %s99, 1
    %p103 = scmp.eq.s32.totalorder %s11, 3
    %p104 = scmp.ne.s32.totalorder %s99, %s101
    %p105 = scmp.eq.s32.totalorder %s11, 0
    %p106 = por %p104, %p105
    %p107 = scmp.ne.s32.totalorder %s99, %s101
    %p108 = scmp.eq.s32.totalorder %s16, 3
    %p109 = por %p107, %p108
    %p110 = scmp.ne.s32.totalorder %s101, %s102
    %p111 = scmp.eq.s32.totalorder %s16, 0
    %p112 = por %p110, %p111
    %p113 = scmp.ne.s32.totalorder %s101, %s102
    %p114 = scmp.eq.s32.totalorder %s17, 3
    %p115 = por %p113, %p114
    %p117 = scmp.ne.s32.totalorder %s102, %s116
    %p118 = scmp.eq.s32.totalorder %s17, 0
    %p119 = por %p117, %p118
    %s121 = sadd.s32 %s120, 1
    %p124 = scmp.eq.s32.totalorder %s11, 3
    %p125 = scmp.ne.s32.totalorder %s120, %s122
    %p126 = scmp.eq.s32.totalorder %s11, 0
    %p127 = por %p125, %p126
    %p128 = scmp.ne.s32.totalorder %s120, %s122
    %p129 = scmp.eq.s32.totalorder %s16, 3
    %p130 = por %p128, %p129
    %p131 = scmp.ne.s32.totalorder %s122, %s123
    %p132 = scmp.eq.s32.totalorder %s16, 0
    %p133 = por %p131, %p132
    %p134 = scmp.ne.s32.totalorder %s122, %s123
    %p135 = scmp.eq.s32.totalorder %s17, 3
    %p136 = por %p134, %p135
    %p138 = scmp.ne.s32.totalorder %s123, %s137
    %p139 = scmp.eq.s32.totalorder %s17, 0
    %p140 = por %p138, %p139
    %s141 = ssub.s32 %s18, %s30
    %s142 = ssub.s32 %s19, %s26
    %s143 = sor.u32 %s141, %s142
    %p144 = scmp.eq.s32.totalorder %s143, 0
    %s146 = sadd.s32 %s145, 1
    %s147 = scalar_select %p144, %s145, %s146
    %p150 = pneg %p144
    %p151 = scmp.eq.s32.totalorder %s11, 3
    %p152 = por %p150, %p151
    %p153 = scmp.ne.s32.totalorder %s145, %s148
    %p154 = scmp.eq.s32.totalorder %s11, 0
    %p155 = por %p153, %p154
    %p156 = scmp.ne.s32.totalorder %s145, %s148
    %p157 = scmp.eq.s32.totalorder %s16, 3
    %p158 = por %p156, %p157
    %p159 = scmp.ne.s32.totalorder %s148, %s149
    %p160 = scmp.eq.s32.totalorder %s16, 0
    %p161 = por %p159, %p160
    %p162 = scmp.ne.s32.totalorder %s148, %s149
    %p163 = scmp.eq.s32.totalorder %s17, 3
    %p164 = por %p162, %p163
    %p166 = scmp.ne.s32.totalorder %s149, %s165
    %p167 = scmp.eq.s32.totalorder %s17, 0
    %p168 = por %p166, %p167
    %p169 = scmp.le.s32.totalorder 1, %s11
    %p170 = scmp.lt.s32.totalorder %s11, 5
    %p171 = pnand %p169, %p170
    %p172 = pneg %p171
    // Predicated region
    $region9: #{tpu_custom_call.1} parent=5 // pred_check
      _
    $region10: #{tpu_custom_call.1} parent=5 // pred_check_branch
      %174 = sbr.rel (%p171) target = $region12
    $region11: #{tpu_custom_call.1} parent=5 // pred_region
      %s175 = ssub.s32 %s11, 1
      // Predicated region
      $region13: #{tpu_custom_call.1} parent=11 // pred_check
        %p176 = pneg %p70
      $region14: #{tpu_custom_call.1} parent=11 // pred_check_branch
        %178 = sbr.rel (%p176) target = $region16
      $region15: #{tpu_custom_call.1} parent=11 // pred_region
        _
      $region16: #{tpu_custom_call.1} parent=11 // pred_fallthru
        _
      // Predicated region
      $region17: #{tpu_custom_call.1} parent=11 // pred_check
        %p179 = pneg %p91
      $region18: #{tpu_custom_call.1} parent=11 // pred_check_branch
        %181 = sbr.rel (%p179) target = $region20
      $region19: #{tpu_custom_call.1} parent=11 // pred_region
        _
      $region20: #{tpu_custom_call.1} parent=11 // pred_fallthru
        _
      // Predicated region
      $region21: #{tpu_custom_call.1} parent=11 // pred_check
        %p182 = pneg %p112
      $region22: #{tpu_custom_call.1} parent=11 // pred_check_branch
        %184 = sbr.rel (%p182) target = $region24
      $region23: #{tpu_custom_call.1} parent=11 // pred_region
        _
      $region24: #{tpu_custom_call.1} parent=11 // pred_fallthru
        _
      // Predicated region
      $region25: #{tpu_custom_call.1} parent=11 // pred_check
        %p185 = pneg %p133
      $region26: #{tpu_custom_call.1} parent=11 // pred_check_branch
        %187 = sbr.rel (%p185) target = $region28
      $region27: #{tpu_custom_call.1} parent=11 // pred_region
        _
      $region28: #{tpu_custom_call.1} parent=11 // pred_fallthru
        _
    $region12: #{tpu_custom_call.1} parent=5 // pred_fallthru
      _
    %p188 = scmp.lt.s32.totalorder %s11, 4
    // Predicated region
    $region29: #{tpu_custom_call.1} parent=5 // pred_check
      %p189 = pneg %p188
    $region30: #{tpu_custom_call.1} parent=5 // pred_check_branch
      %191 = sbr.rel (%p189) target = $region32
    $region31: #{tpu_custom_call.1} parent=5 // pred_region
      // Predicated region
      $region33: #{tpu_custom_call.1} parent=31 // pred_check
        %p192 = pneg %p43
      $region34: #{tpu_custom_call.1} parent=31 // pred_check_branch
        %194 = sbr.rel (%p192) target = $region36
      $region35: #{tpu_custom_call.1} parent=31 // pred_region
        %p195 = scmp.lt.s32.totalorder %s18, 1
        %s196 = scalar_select %p195, %s18, 1
        %s197 = smul.addr %s196, 32
        %s198 = smul.addr %s197, 4
        %s199 = scalar_lea.vmem %s0, %s198
      $region36: #{tpu_custom_call.1} parent=31 // pred_fallthru
        _
    $region32: #{tpu_custom_call.1} parent=5 // pred_fallthru
      _
    %p200 = scmp.le.s32.totalorder 1, %s11
    %p201 = scmp.lt.s32.totalorder %s11, 5
    %p202 = pnand %p200, %p201
    %p203 = pneg %p202
    // Predicated region
    $region37: #{tpu_custom_call.1} parent=5 // pred_check
      _
    $region38: #{tpu_custom_call.1} parent=5 // pred_check_branch
      %205 = sbr.rel (%p202) target = $region40
    $region39: #{tpu_custom_call.1} parent=5 // pred_region
      %s206 = ssub.s32 %s11, 1
      %p207 = scmp.lt.s32.totalorder %s20, 1
      %s208 = scalar_select %p207, %s20, 1
      %s209 = smul.addr %s208, 32
      %s210 = smul.addr %s209, 4
      %s211 = scalar_lea.vmem %s0, %s210
      %p212 = pneg %p49
      %p213 = pneg %p46
      %p214 = pneg %p70
      %p215 = pneg %p67
      %p216 = pneg %p91
      %p217 = pneg %p88
      %p218 = pneg %p112
      %p219 = pneg %p109
      %p220 = pneg %p133
      %p221 = pneg %p130
      %p222 = pneg %p161
      %p223 = pneg %p158
      %s224 = smul.u32 8, %s21
      %p225 = scmp.lt.s32.totalorder %s20, 1
      %s226 = scalar_select %p225, %s20, 1
      %p227 = scmp.lt.s32.totalorder %s224, 15
      %s228 = scalar_select %p227, %s224, 15
      %s229 = smul.addr %s228, 2
      %s230 = smul.addr %s226, 32
      %s231 = sadd.s32 %s229, %s230
      %s232 = smul.addr %s231, 8
      %s233 = scalar_lea.vmem %s5, %s232
      %p234 = scmp.lt.s32.totalorder %s20, 1
      %s235 = scalar_select %p234, %s20, 1
      %s236 = smul.addr %s235, 32
      %s237 = smul.addr %s236, 4
      %s238 = scalar_lea.vmem %s0, %s237
      %s239 = smul.u32 8, %s21
      %p240 = scmp.lt.s32.totalorder %s20, 1
      %s241 = scalar_select %p240, %s20, 1
      %p242 = scmp.lt.s32.totalorder %s239, 15
      %s243 = scalar_select %p242, %s239, 15
      %s244 = smul.addr %s243, 2
      %s245 = smul.addr %s241, 32
      %s246 = sadd.s32 %s244, %s245
      %s247 = smul.addr %s246, 8
      %s248 = scalar_lea.vmem %s5, %s247
      %s249 = smul.u32 8, %s21
      %s251 = smul.u32 %s21, 8
      %v252 = vlaneseq
      %v253 = vshrl.u32 %v252, 7
      %v254 = vadd.s32 %v253, 8
      %vm255 = vcmp.eq.s32.totalorder %v253, 0
      %vm256 = vcmp.eq.s32.totalorder %v254, 0
      %vm257 = vcmp.eq.s32.totalorder %v253, 15
      %vm258 = vcmp.eq.s32.totalorder %v254, 15
      %s259 = smul.u32 %s251, 2
      %s260 = smul.addr %s259, 4
      %s261 = scalar_lea.vmem %s238, %s260
      %v262 = vld [vmem:[%s261] sm:$0xf]
      %v263 = vld [vmem:[%s261 + $0x4] sm:$0xf]
      %v264 = vld [vmem:[%s261 + $0x8] sm:$0xf]
      %v265 = vld [vmem:[%s261 + $0xc] sm:$0xf]
      %v266 = vld [vmem:[%s261 + $0x10] sm:$0xf]
      %v267 = vld [vmem:[%s261 + $0x14] sm:$0xf]
      %v268 = vld [vmem:[%s261 + $0x18] sm:$0xf]
      %v269 = vld [vmem:[%s261 + $0x1c] sm:$0xf]
      %v270 = vld [vmem:[%s261 + $0x20] sm:$0xf]
      %v271 = vld [vmem:[%s261 + $0x24] sm:$0xf]
      %v272 = vld [vmem:[%s261 + $0x28] sm:$0xf]
      %v273 = vld [vmem:[%s261 + $0x2c] sm:$0xf]
      %v274 = vld [vmem:[%s261 + $0x30] sm:$0xf]
      %v275 = vld [vmem:[%s261 + $0x34] sm:$0xf]
      %v276 = vld [vmem:[%s261 + $0x38] sm:$0xf]
      %v277 = vld [vmem:[%s261 + $0x3c] sm:$0xf]
      %s278 = ssub.s32 %s251, 2
      %p279 = scmp.gt.s32.totalorder %s278, 0
      %s280 = scalar_select %p279, %s278, 0
      %p281 = scmp.lt.s32.totalorder %s280, 15
      %s282 = scalar_select %p281, %s280, 15
      %s283 = smul.u32 %s282, 2
      %s284 = smul.addr %s283, 4
      %s285 = scalar_lea.vmem %s238, %s284
      %v286 = vld [vmem:[%s285] sm:$0xf]
      %v287 = vld [vmem:[%s285 + $0x4] sm:$0xf]
      %p288 = scmp.ge.s32.totalorder %s278, 0
      %p289 = scmp.lt.s32.totalorder %s278, 16
      %p290 = pnand %p288, %p289
      %p291 = pneg %p290
      %s292 = scalar_select %p291, 1, 0
      %v293 = vstv %s292
      %vm294 = vcmp.eq.s32.totalorder %v293, 1
      %v295 = vsel %vm294, %v286, 0
      %v296 = vsel %vm294, %v287, 0
      %s297 = ssub.s32 %s251, 1
      %p298 = scmp.gt.s32.totalorder %s297, 0
      %s299 = scalar_select %p298, %s297, 0
      %p300 = scmp.lt.s32.totalorder %s299, 15
      %s301 = scalar_select %p300, %s299, 15
      %s302 = smul.u32 %s301, 2
      %s303 = smul.addr %s302, 4
      %s304 = scalar_lea.vmem %s238, %s303
      %v305 = vld [vmem:[%s304] sm:$0xf]
      %v306 = vld [vmem:[%s304 + $0x4] sm:$0xf]
      %p307 = scmp.ge.s32.totalorder %s297, 0
      %p308 = scmp.lt.s32.totalorder %s297, 16
      %p309 = pnand %p307, %p308
      %p310 = pneg %p309
      %s311 = scalar_select %p310, 1, 0
      %v312 = vstv %s311
      %vm313 = vcmp.eq.s32.totalorder %v312, 1
      %v314 = vsel %vm313, %v305, 0
      %v315 = vsel %vm313, %v306, 0
      %s316 = sadd.s32 %s251, 8
      %p317 = scmp.gt.s32.totalorder %s316, 0
      %s318 = scalar_select %p317, %s316, 0
      %p319 = scmp.lt.s32.totalorder %s318, 15
      %s320 = scalar_select %p319, %s318, 15
      %s321 = smul.u32 %s320, 2
      %s322 = smul.addr %s321, 4
      %s323 = scalar_lea.vmem %s238, %s322
      %v324 = vld [vmem:[%s323] sm:$0xf]
      %v325 = vld [vmem:[%s323 + $0x4] sm:$0xf]
      %p326 = scmp.ge.s32.totalorder %s316, 0
      %p327 = scmp.lt.s32.totalorder %s316, 16
      %p328 = pnand %p326, %p327
      %p329 = pneg %p328
      %s330 = scalar_select %p329, 1, 0
      %v331 = vstv %s330
      %vm332 = vcmp.eq.s32.totalorder %v331, 1
      %v333 = vsel %vm332, %v324, 0
      %v334 = vsel %vm332, %v325, 0
      %s335 = sadd.s32 %s251, 9
      %p336 = scmp.gt.s32.totalorder %s335, 0
      %s337 = scalar_select %p336, %s335, 0
      %p338 = scmp.lt.s32.totalorder %s337, 15
      %s339 = scalar_select %p338, %s337, 15
      %s340 = smul.u32 %s339, 2
      %s341 = smul.addr %s340, 4
      %s342 = scalar_lea.vmem %s238, %s341
      %v343 = vld [vmem:[%s342] sm:$0xf]
      %v344 = vld [vmem:[%s342 + $0x4] sm:$0xf]
      %p345 = scmp.ge.s32.totalorder %s335, 0
      %p346 = scmp.lt.s32.totalorder %s335, 16
      %p347 = pnand %p345, %p346
      %p348 = pneg %p347
      %s349 = scalar_select %p348, 1, 0
      %v350 = vstv %s349
      %vm351 = vcmp.eq.s32.totalorder %v350, 1
      %v352 = vsel %vm351, %v343, 0
      %v353 = vsel %vm351, %v344, 0
      %v354 = vunpack.c.l.bf16 %v295
      %v355 = vunpack.c.l.bf16 %v296
      %v356 = vunpack.c.l.bf16 %v314
      %v357 = vunpack.c.l.bf16 %v315
      %v358 = vunpack.c.l.bf16 %v262
      %v359 = vunpack.c.l.bf16 %v263
      %v360 = vunpack.c.l.bf16 %v264
      %v361 = vunpack.c.l.bf16 %v265
      %v362 = vunpack.c.l.bf16 %v266
      %v363 = vunpack.c.l.bf16 %v267
      %v364 = vunpack.c.l.bf16 %v268
      %v365 = vunpack.c.l.bf16 %v269
      %v366 = vunpack.c.l.bf16 %v270
      %v367 = vunpack.c.l.bf16 %v271
      %v368 = vunpack.c.l.bf16 %v272
      %v369 = vunpack.c.l.bf16 %v273
      %v370 = vunpack.c.l.bf16 %v274
      %v371 = vunpack.c.l.bf16 %v275
      %v372 = vunpack.c.l.bf16 %v276
      %v373 = vunpack.c.l.bf16 %v277
      %v374 = vunpack.c.l.bf16 %v333
      %v375 = vunpack.c.l.bf16 %v334
      %v376 = vunpack.c.l.bf16 %v352
      %v377 = vunpack.c.l.bf16 %v353
      %v378 = vrot.slane %v354, 7
      %v379 = vrot.slane %v356, 7
      %v380 = vrot.slane %v358, 7
      %v381 = vrot.slane %v360, 7
      %v382 = vrot.slane %v362, 7
      %v383 = vrot.slane %v364, 7
      %v384 = vrot.slane %v366, 7
      %v385 = vrot.slane %v368, 7
      %v386 = vrot.slane %v370, 7
      %v387 = vrot.slane %v372, 7
      %v388 = vrot.slane %v374, 7
      %v389 = vrot.slane %v376, 7
      %v390 = vrot.slane %v355, 7
      %v391 = vrot.slane %v357, 7
      %v392 = vrot.slane %v359, 7
      %v393 = vrot.slane %v361, 7
      %v394 = vrot.slane %v363, 7
      %v395 = vrot.slane %v365, 7
      %v396 = vrot.slane %v367, 7
      %v397 = vrot.slane %v369, 7
      %v398 = vrot.slane %v371, 7
      %v399 = vrot.slane %v373, 7
      %v400 = vrot.slane %v375, 7
      %v401 = vrot.slane %v377, 7
      %vm402 = vcmp.lt.s32.totalorder %v253, 1
      %v403 = vsel %vm402, %v378, %v390
      %v404 = vsel %vm402, %v379, %v391
      %v405 = vsel %vm402, %v380, %v392
      %v406 = vsel %vm402, %v381, %v393
      %v407 = vsel %vm402, %v382, %v394
      %v408 = vsel %vm402, %v383, %v395
      %v409 = vsel %vm402, %v384, %v396
      %v410 = vsel %vm402, %v385, %v397
      %v411 = vsel %vm402, %v386, %v398
      %v412 = vsel %vm402, %v387, %v399
      %v413 = vsel %vm402, %v388, %v400
      %v414 = vsel %vm402, %v389, %v401
      %v415 = vsel %vm402, %v390, %v378
      %v416 = vsel %vm402, %v391, %v379
      %v417 = vsel %vm402, %v392, %v380
      %v418 = vsel %vm402, %v393, %v381
      %v419 = vsel %vm402, %v394, %v382
      %v420 = vsel %vm402, %v395, %v383
      %v421 = vsel %vm402, %v396, %v384
      %v422 = vsel %vm402, %v397, %v385
      %v423 = vsel %vm402, %v398, %v386
      %v424 = vsel %vm402, %v399, %v387
      %v425 = vsel %vm402, %v400, %v388
      %v426 = vsel %vm402, %v401, %v389
      %v427 = vsel %vm255, 1, 0
      %v428 = vsel %vm256, 1, 0
      %vm429 = vcmp.eq.s32.totalorder %v427, 1
      %vm430 = vcmp.eq.s32.totalorder %v428, 1
      %v431 = vsel %vm429, 0.0, %v415
      %v432 = vsel %vm430, 0.0, %v403
      %v433 = vsel %vm429, 0.0, %v416
      %v434 = vsel %vm430, 0.0, %v404
      %v435 = vsel %vm429, 0.0, %v417
      %v436 = vsel %vm430, 0.0, %v405
      %v437 = vsel %vm429, 0.0, %v418
      %v438 = vsel %vm430, 0.0, %v406
      %v439 = vsel %vm429, 0.0, %v419
      %v440 = vsel %vm430, 0.0, %v407
      %v441 = vsel %vm429, 0.0, %v420
      %v442 = vsel %vm430, 0.0, %v408
      %v443 = vsel %vm429, 0.0, %v421
      %v444 = vsel %vm430, 0.0, %v409
      %v445 = vsel %vm429, 0.0, %v422
      %v446 = vsel %vm430, 0.0, %v410
      %v447 = vsel %vm429, 0.0, %v423
      %v448 = vsel %vm430, 0.0, %v411
      %v449 = vsel %vm429, 0.0, %v424
      %v450 = vsel %vm430, 0.0, %v412
      %v451 = vsel %vm429, 0.0, %v425
      %v452 = vsel %vm430, 0.0, %v413
      %v453 = vsel %vm429, 0.0, %v426
      %v454 = vsel %vm430, 0.0, %v414
      %v455 = vrot.slane %v354, 1
      %v456 = vrot.slane %v356, 1
      %v457 = vrot.slane %v358, 1
      %v458 = vrot.slane %v360, 1
      %v459 = vrot.slane %v362, 1
      %v460 = vrot.slane %v364, 1
      %v461 = vrot.slane %v366, 1
      %v462 = vrot.slane %v368, 1
      %v463 = vrot.slane %v370, 1
      %v464 = vrot.slane %v372, 1
      %v465 = vrot.slane %v374, 1
      %v466 = vrot.slane %v376, 1
      %v467 = vrot.slane %v355, 1
      %v468 = vrot.slane %v357, 1
      %v469 = vrot.slane %v359, 1
      %v470 = vrot.slane %v361, 1
      %v471 = vrot.slane %v363, 1
      %v472 = vrot.slane %v365, 1
      %v473 = vrot.slane %v367, 1
      %v474 = vrot.slane %v369, 1
      %v475 = vrot.slane %v371, 1
      %v476 = vrot.slane %v373, 1
      %v477 = vrot.slane %v375, 1
      %v478 = vrot.slane %v377, 1
      %vm479 = vcmp.lt.s32.totalorder %v253, 7
      %v480 = vsel %vm479, %v455, %v467
      %v481 = vsel %vm479, %v456, %v468
      %v482 = vsel %vm479, %v457, %v469
      %v483 = vsel %vm479, %v458, %v470
      %v484 = vsel %vm479, %v459, %v471
      %v485 = vsel %vm479, %v460, %v472
      %v486 = vsel %vm479, %v461, %v473
      %v487 = vsel %vm479, %v462, %v474
      %v488 = vsel %vm479, %v463, %v475
      %v489 = vsel %vm479, %v464, %v476
      %v490 = vsel %vm479, %v465, %v477
      %v491 = vsel %vm479, %v466, %v478
      %v492 = vsel %vm479, %v467, %v455
      %v493 = vsel %vm479, %v468, %v456
      %v494 = vsel %vm479, %v469, %v457
      %v495 = vsel %vm479, %v470, %v458
      %v496 = vsel %vm479, %v471, %v459
      %v497 = vsel %vm479, %v472, %v460
      %v498 = vsel %vm479, %v473, %v461
      %v499 = vsel %vm479, %v474, %v462
      %v500 = vsel %vm479, %v475, %v463
      %v501 = vsel %vm479, %v476, %v464
      %v502 = vsel %vm479, %v477, %v465
      %v503 = vsel %vm479, %v478, %v466
      %v504 = vsel %vm257, 1, 0
      %v505 = vsel %vm258, 1, 0
      %vm506 = vcmp.eq.s32.totalorder %v504, 1
      %vm507 = vcmp.eq.s32.totalorder %v505, 1
      %v508 = vsel %vm506, 0.0, %v480
      %v509 = vsel %vm507, 0.0, %v492
      %v510 = vsel %vm506, 0.0, %v481
      %v511 = vsel %vm507, 0.0, %v493
      %v512 = vsel %vm506, 0.0, %v482
      %v513 = vsel %vm507, 0.0, %v494
      %v514 = vsel %vm506, 0.0, %v483
      %v515 = vsel %vm507, 0.0, %v495
      %v516 = vsel %vm506, 0.0, %v484
      %v517 = vsel %vm507, 0.0, %v496
      %v518 = vsel %vm506, 0.0, %v485
      %v519 = vsel %vm507, 0.0, %v497
      %v520 = vsel %vm506, 0.0, %v486
      %v521 = vsel %vm507, 0.0, %v498
      %v522 = vsel %vm506, 0.0, %v487
      %v523 = vsel %vm507, 0.0, %v499
      %v524 = vsel %vm506, 0.0, %v488
      %v525 = vsel %vm507, 0.0, %v500
      %v526 = vsel %vm506, 0.0, %v489
      %v527 = vsel %vm507, 0.0, %v501
      %v528 = vsel %vm506, 0.0, %v490
      %v529 = vsel %vm507, 0.0, %v502
      %v530 = vsel %vm506, 0.0, %v491
      %v531 = vsel %vm507, 0.0, %v503
      %v532 = vpack.c.bf16 %v431, %v431
      %v533 = vpack.c.bf16 %v432, %v432
      %v534 = vpack.c.bf16 %v433, %v433
      %v535 = vpack.c.bf16 %v434, %v434
      %v536 = vpack.c.bf16 %v435, %v435
      %v537 = vpack.c.bf16 %v436, %v436
      %v538 = vpack.c.bf16 %v437, %v437
      %v539 = vpack.c.bf16 %v438, %v438
      %v540 = vpack.c.bf16 %v439, %v439
      %v541 = vpack.c.bf16 %v440, %v440
      %v542 = vpack.c.bf16 %v441, %v441
      %v543 = vpack.c.bf16 %v442, %v442
      %v544 = vpack.c.bf16 %v443, %v443
      %v545 = vpack.c.bf16 %v444, %v444
      %v546 = vpack.c.bf16 %v445, %v445
      %v547 = vpack.c.bf16 %v446, %v446
      %v548 = vpack.c.bf16 %v447, %v447
      %v549 = vpack.c.bf16 %v448, %v448
      %v550 = vpack.c.bf16 %v449, %v449
      %v551 = vpack.c.bf16 %v450, %v450
      %v552 = vpack.c.bf16 %v451, %v451
      %v553 = vpack.c.bf16 %v452, %v452
      %v554 = vpack.c.bf16 %v453, %v453
      %v555 = vpack.c.bf16 %v454, %v454
      %v556 = vpack.c.bf16 %v508, %v508
      %v557 = vpack.c.bf16 %v509, %v509
      %v558 = vpack.c.bf16 %v510, %v510
      %v559 = vpack.c.bf16 %v511, %v511
      %v560 = vpack.c.bf16 %v512, %v512
      %v561 = vpack.c.bf16 %v513, %v513
      %v562 = vpack.c.bf16 %v514, %v514
      %v563 = vpack.c.bf16 %v515, %v515
      %v564 = vpack.c.bf16 %v516, %v516
      %v565 = vpack.c.bf16 %v517, %v517
      %v566 = vpack.c.bf16 %v518, %v518
      %v567 = vpack.c.bf16 %v519, %v519
      %v568 = vpack.c.bf16 %v520, %v520
      %v569 = vpack.c.bf16 %v521, %v521
      %v570 = vpack.c.bf16 %v522, %v522
      %v571 = vpack.c.bf16 %v523, %v523
      %v572 = vpack.c.bf16 %v524, %v524
      %v573 = vpack.c.bf16 %v525, %v525
      %v574 = vpack.c.bf16 %v526, %v526
      %v575 = vpack.c.bf16 %v527, %v527
      %v576 = vpack.c.bf16 %v528, %v528
      %v577 = vpack.c.bf16 %v529, %v529
      %v578 = vpack.c.bf16 %v530, %v530
      %v579 = vpack.c.bf16 %v531, %v531
      %v580 = vld [vmem:[%s1] sm:$0x3]
      %s581 = scalar_lea.vmem %s1, 2
      %v582 = vld [vmem:[%s581] sm:$0x3]
      %v603 = vunpack.c.l.b16 %v295
      %v604 = vunpack.c.l.b16 %v296
      %v605 = vunpack.c.l.b16 %v314
      %v606 = vunpack.c.l.b16 %v315
      %v607 = vunpack.c.l.b16 %v262
      %v608 = vunpack.c.l.b16 %v263
      %v609 = vunpack.c.l.b16 %v264
      %v610 = vunpack.c.l.b16 %v265
      %v611 = vunpack.c.l.b16 %v266
      %v612 = vunpack.c.l.b16 %v267
      %v613 = vunpack.c.l.b16 %v268
      %v614 = vunpack.c.l.b16 %v269
      %v615 = vunpack.c.l.b16 %v270
      %v616 = vunpack.c.l.b16 %v271
      %v617 = vunpack.c.l.b16 %v272
      %v618 = vunpack.c.l.b16 %v273
      %v619 = vunpack.c.l.b16 %v274
      %v620 = vunpack.c.l.b16 %v275
      %v621 = vunpack.c.l.b16 %v276
      %v622 = vunpack.c.l.b16 %v277
      %v623 = vpack.c.b16 %v604, %v603
      %v624 = vpack.c.b16 %v606, %v605
      %v625 = vpack.c.b16 %v608, %v607
      %v626 = vpack.c.b16 %v610, %v609
      %v627 = vpack.c.b16 %v612, %v611
      %v628 = vpack.c.b16 %v614, %v613
      %v629 = vpack.c.b16 %v616, %v615
      %v630 = vpack.c.b16 %v618, %v617
      %v631 = vpack.c.b16 %v620, %v619
      %v632 = vpack.c.b16 %v622, %v621
      %vm633 = vcmask 31744
      %v635 = vsel %vm633, %v623, 0
      %v638 = vsel %vm633, %v624, 0
      %v641 = vsel %vm633, %v625, 0
      %v644 = vsel %vm633, %v626, 0
      %v647 = vsel %vm633, %v627, 0
      %v650 = vsel %vm633, %v628, 0
      %v653 = vsel %vm633, %v629, 0
      %v656 = vsel %vm633, %v630, 0
      %v659 = vsel %vm633, %v631, 0
      %v662 = vsel %vm633, %v632, 0
      %vm664 = vcmask 1041408
      %v666 = vsel %vm664, %v582, 0
      %668 = vmatpush.bf16.msra.mxu0 0
      %669 = vmatpush.bf16.msra.mxu0 0
      %670 = vmatpush.bf16.msra.mxu0 0
      %671 = vmatpush.bf16.msra.mxu0 0
      %672 = vmatpush.bf16.msra.mxu0 0
      %673 = vmatpush.bf16.msra.mxu0 0
      %674 = vmatpush.bf16.msra.mxu0 0
      %675 = vmatpush.bf16.msra.mxu0 %v666
      %676 = vmatmul.bf16.gmra.mxu0 %v635
      %v677 = vpop.f32.mrf.mxu0
      %v678 = vadd.f32 0.0, %v677
      %v679 = vpop.f32.mrf.mxu0
      %v680 = vadd.f32 0.0, %v679
      %681 = vmatmul.bf16.gmra.mxu0 %v638
      %v682 = vpop.f32.mrf.mxu0
      %v683 = vadd.f32 0.0, %v682
      %v684 = vpop.f32.mrf.mxu0
      %v685 = vadd.f32 0.0, %v684
      %686 = vmatmul.bf16.gmra.mxu0 %v641
      %v687 = vpop.f32.mrf.mxu0
      %v688 = vadd.f32 0.0, %v687
      %v689 = vpop.f32.mrf.mxu0
      %v690 = vadd.f32 0.0, %v689
      %691 = vmatmul.bf16.gmra.mxu0 %v644
      %v692 = vpop.f32.mrf.mxu0
      %v693 = vadd.f32 0.0, %v692
      %v694 = vpop.f32.mrf.mxu0
      %v695 = vadd.f32 0.0, %v694
      %696 = vmatmul.bf16.gmra.mxu0 %v647
      %v697 = vpop.f32.mrf.mxu0
      %v698 = vadd.f32 0.0, %v697
      %v699 = vpop.f32.mrf.mxu0
      %v700 = vadd.f32 0.0, %v699
      %701 = vmatmul.bf16.gmra.mxu0 %v650
      %v702 = vpop.f32.mrf.mxu0
      %v703 = vadd.f32 0.0, %v702
      %v704 = vpop.f32.mrf.mxu0
      %v705 = vadd.f32 0.0, %v704
      %706 = vmatmul.bf16.gmra.mxu0 %v653
      %v707 = vpop.f32.mrf.mxu0
      %v708 = vadd.f32 0.0, %v707
      %v709 = vpop.f32.mrf.mxu0
      %v710 = vadd.f32 0.0, %v709
      %711 = vmatmul.bf16.gmra.mxu0 %v656
      %v712 = vpop.f32.mrf.mxu0
      %v713 = vadd.f32 0.0, %v712
      %v714 = vpop.f32.mrf.mxu0
      %v715 = vadd.f32 0.0, %v714
      %716 = vmatmul.bf16.gmra.mxu0 %v659
      %v717 = vpop.f32.mrf.mxu0
      %v718 = vadd.f32 0.0, %v717
      %v719 = vpop.f32.mrf.mxu0
      %v720 = vadd.f32 0.0, %v719
      %721 = vmatmul.bf16.gmra.mxu0 %v662
      %v722 = vpop.f32.mrf.mxu0
      %v723 = vadd.f32 0.0, %v722
      %v724 = vpop.f32.mrf.mxu0
      %v725 = vadd.f32 0.0, %v724
      %726 = vdwg.mxu0
      %v747 = vunpack.c.l.b16 %v532
      %v748 = vunpack.c.l.b16 %v533
      %v749 = vunpack.c.l.b16 %v534
      %v750 = vunpack.c.l.b16 %v535
      %v751 = vunpack.c.l.b16 %v536
      %v752 = vunpack.c.l.b16 %v537
      %v753 = vunpack.c.l.b16 %v538
      %v754 = vunpack.c.l.b16 %v539
      %v755 = vunpack.c.l.b16 %v540
      %v756 = vunpack.c.l.b16 %v541
      %v757 = vunpack.c.l.b16 %v542
      %v758 = vunpack.c.l.b16 %v543
      %v759 = vunpack.c.l.b16 %v544
      %v760 = vunpack.c.l.b16 %v545
      %v761 = vunpack.c.l.b16 %v546
      %v762 = vunpack.c.l.b16 %v547
      %v763 = vunpack.c.l.b16 %v548
      %v764 = vunpack.c.l.b16 %v549
      %v765 = vunpack.c.l.b16 %v550
      %v766 = vunpack.c.l.b16 %v551
      %v767 = vpack.c.b16 %v748, %v747
      %v768 = vpack.c.b16 %v750, %v749
      %v769 = vpack.c.b16 %v752, %v751
      %v770 = vpack.c.b16 %v754, %v753
      %v771 = vpack.c.b16 %v756, %v755
      %v772 = vpack.c.b16 %v758, %v757
      %v773 = vpack.c.b16 %v760, %v759
      %v774 = vpack.c.b16 %v762, %v761
      %v775 = vpack.c.b16 %v764, %v763
      %v776 = vpack.c.b16 %v766, %v765
      %v778 = vsel %vm633, %v767, 0
      %v781 = vsel %vm633, %v768, 0
      %v784 = vsel %vm633, %v769, 0
      %v787 = vsel %vm633, %v770, 0
      %v790 = vsel %vm633, %v771, 0
      %v793 = vsel %vm633, %v772, 0
      %v796 = vsel %vm633, %v773, 0
      %v799 = vsel %vm633, %v774, 0
      %v802 = vsel %vm633, %v775, 0
      %v805 = vsel %vm633, %v776, 0
      %v808 = vsel %vm664, %v580, 0
      %810 = vmatpush.bf16.msra.mxu0 0
      %811 = vmatpush.bf16.msra.mxu0 0
      %812 = vmatpush.bf16.msra.mxu0 0
      %813 = vmatpush.bf16.msra.mxu0 0
      %814 = vmatpush.bf16.msra.mxu0 0
      %815 = vmatpush.bf16.msra.mxu0 0
      %816 = vmatpush.bf16.msra.mxu0 0
      %817 = vmatpush.bf16.msra.mxu0 %v808
      %818 = vmatmul.bf16.gmra.mxu0 %v778
      %v819 = vpop.f32.mrf.mxu0
      %v820 = vadd.f32 %v678, %v819
      %v821 = vpop.f32.mrf.mxu0
      %v822 = vadd.f32 %v680, %v821
      %823 = vmatmul.bf16.gmra.mxu0 %v781
      %v824 = vpop.f32.mrf.mxu0
      %v825 = vadd.f32 %v683, %v824
      %v826 = vpop.f32.mrf.mxu0
      %v827 = vadd.f32 %v685, %v826
      %828 = vmatmul.bf16.gmra.mxu0 %v784
      %v829 = vpop.f32.mrf.mxu0
      %v830 = vadd.f32 %v688, %v829
      %v831 = vpop.f32.mrf.mxu0
      %v832 = vadd.f32 %v690, %v831
      %833 = vmatmul.bf16.gmra.mxu0 %v787
      %v834 = vpop.f32.mrf.mxu0
      %v835 = vadd.f32 %v693, %v834
      %v836 = vpop.f32.mrf.mxu0
      %v837 = vadd.f32 %v695, %v836
      %838 = vmatmul.bf16.gmra.mxu0 %v790
      %v839 = vpop.f32.mrf.mxu0
      %v840 = vadd.f32 %v698, %v839
      %v841 = vpop.f32.mrf.mxu0
      %v842 = vadd.f32 %v700, %v841
      %843 = vmatmul.bf16.gmra.mxu0 %v793
      %v844 = vpop.f32.mrf.mxu0
      %v845 = vadd.f32 %v703, %v844
      %v846 = vpop.f32.mrf.mxu0
      %v847 = vadd.f32 %v705, %v846
      %848 = vmatmul.bf16.gmra.mxu0 %v796
      %v849 = vpop.f32.mrf.mxu0
      %v850 = vadd.f32 %v708, %v849
      %v851 = vpop.f32.mrf.mxu0
      %v852 = vadd.f32 %v710, %v851
      %853 = vmatmul.bf16.gmra.mxu0 %v799
      %v854 = vpop.f32.mrf.mxu0
      %v855 = vadd.f32 %v713, %v854
      %v856 = vpop.f32.mrf.mxu0
      %v857 = vadd.f32 %v715, %v856
      %858 = vmatmul.bf16.gmra.mxu0 %v802
      %v859 = vpop.f32.mrf.mxu0
      %v860 = vadd.f32 %v718, %v859
      %v861 = vpop.f32.mrf.mxu0
      %v862 = vadd.f32 %v720, %v861
      %863 = vmatmul.bf16.gmra.mxu0 %v805
      %v864 = vpop.f32.mrf.mxu0
      %v865 = vadd.f32 %v723, %v864
      %v866 = vpop.f32.mrf.mxu0
      %v867 = vadd.f32 %v725, %v866
      %868 = vdwg.mxu0
      %s869 = scalar_lea.vmem %s1, 4
      %v870 = vld [vmem:[%s869] sm:$0x3]
      %v891 = vunpack.c.l.b16 %v556
      %v892 = vunpack.c.l.b16 %v557
      %v893 = vunpack.c.l.b16 %v558
      %v894 = vunpack.c.l.b16 %v559
      %v895 = vunpack.c.l.b16 %v560
      %v896 = vunpack.c.l.b16 %v561
      %v897 = vunpack.c.l.b16 %v562
      %v898 = vunpack.c.l.b16 %v563
      %v899 = vunpack.c.l.b16 %v564
      %v900 = vunpack.c.l.b16 %v565
      %v901 = vunpack.c.l.b16 %v566
      %v902 = vunpack.c.l.b16 %v567
      %v903 = vunpack.c.l.b16 %v568
      %v904 = vunpack.c.l.b16 %v569
      %v905 = vunpack.c.l.b16 %v570
      %v906 = vunpack.c.l.b16 %v571
      %v907 = vunpack.c.l.b16 %v572
      %v908 = vunpack.c.l.b16 %v573
      %v909 = vunpack.c.l.b16 %v574
      %v910 = vunpack.c.l.b16 %v575
      %v911 = vpack.c.b16 %v892, %v891
      %v912 = vpack.c.b16 %v894, %v893
      %v913 = vpack.c.b16 %v896, %v895
      %v914 = vpack.c.b16 %v898, %v897
      %v915 = vpack.c.b16 %v900, %v899
      %v916 = vpack.c.b16 %v902, %v901
      %v917 = vpack.c.b16 %v904, %v903
      %v918 = vpack.c.b16 %v906, %v905
      %v919 = vpack.c.b16 %v908, %v907
      %v920 = vpack.c.b16 %v910, %v909
      %v922 = vsel %vm633, %v911, 0
      %v925 = vsel %vm633, %v912, 0
      %v928 = vsel %vm633, %v913, 0
      %v931 = vsel %vm633, %v914, 0
      %v934 = vsel %vm633, %v915, 0
      %v937 = vsel %vm633, %v916, 0
      %v940 = vsel %vm633, %v917, 0
      %v943 = vsel %vm633, %v918, 0
      %v946 = vsel %vm633, %v919, 0
      %v949 = vsel %vm633, %v920, 0
      %v952 = vsel %vm664, %v870, 0
      %954 = vmatpush.bf16.msra.mxu0 0
      %955 = vmatpush.bf16.msra.mxu0 0
      %956 = vmatpush.bf16.msra.mxu0 0
      %957 = vmatpush.bf16.msra.mxu0 0
      %958 = vmatpush.bf16.msra.mxu0 0
      %959 = vmatpush.bf16.msra.mxu0 0
      %960 = vmatpush.bf16.msra.mxu0 0
      %961 = vmatpush.bf16.msra.mxu0 %v952
      %962 = vmatmul.bf16.gmra.mxu0 %v922
      %v963 = vpop.f32.mrf.mxu0
      %v964 = vadd.f32 0.0, %v963
      %v965 = vpop.f32.mrf.mxu0
      %v966 = vadd.f32 0.0, %v965
      %967 = vmatmul.bf16.gmra.mxu0 %v925
      %v968 = vpop.f32.mrf.mxu0
      %v969 = vadd.f32 0.0, %v968
      %v970 = vpop.f32.mrf.mxu0
      %v971 = vadd.f32 0.0, %v970
      %972 = vmatmul.bf16.gmra.mxu0 %v928
      %v973 = vpop.f32.mrf.mxu0
      %v974 = vadd.f32 0.0, %v973
      %v975 = vpop.f32.mrf.mxu0
      %v976 = vadd.f32 0.0, %v975
      %977 = vmatmul.bf16.gmra.mxu0 %v931
      %v978 = vpop.f32.mrf.mxu0
      %v979 = vadd.f32 0.0, %v978
      %v980 = vpop.f32.mrf.mxu0
      %v981 = vadd.f32 0.0, %v980
      %982 = vmatmul.bf16.gmra.mxu0 %v934
      %v983 = vpop.f32.mrf.mxu0
      %v984 = vadd.f32 0.0, %v983
      %v985 = vpop.f32.mrf.mxu0
      %v986 = vadd.f32 0.0, %v985
      %987 = vmatmul.bf16.gmra.mxu0 %v937
      %v988 = vpop.f32.mrf.mxu0
      %v989 = vadd.f32 0.0, %v988
      %v990 = vpop.f32.mrf.mxu0
      %v991 = vadd.f32 0.0, %v990
      %992 = vmatmul.bf16.gmra.mxu0 %v940
      %v993 = vpop.f32.mrf.mxu0
      %v994 = vadd.f32 0.0, %v993
      %v995 = vpop.f32.mrf.mxu0
      %v996 = vadd.f32 0.0, %v995
      %997 = vmatmul.bf16.gmra.mxu0 %v943
      %v998 = vpop.f32.mrf.mxu0
      %v999 = vadd.f32 0.0, %v998
      %v1000 = vpop.f32.mrf.mxu0
      %v1001 = vadd.f32 0.0, %v1000
      %1002 = vmatmul.bf16.gmra.mxu0 %v946
      %v1003 = vpop.f32.mrf.mxu0
      %v1004 = vadd.f32 0.0, %v1003
      %v1005 = vpop.f32.mrf.mxu0
      %v1006 = vadd.f32 0.0, %v1005
      %1007 = vmatmul.bf16.gmra.mxu0 %v949
      %v1008 = vpop.f32.mrf.mxu0
      %v1009 = vadd.f32 0.0, %v1008
      %v1010 = vpop.f32.mrf.mxu0
      %v1011 = vadd.f32 0.0, %v1010
      %1012 = vdwg.mxu0
      %v1013 = vadd.f32 %v820, %v964
      %v1014 = vadd.f32 %v822, %v966
      %v1015 = vadd.f32 %v825, %v969
      %v1016 = vadd.f32 %v827, %v971
      %v1017 = vadd.f32 %v830, %v974
      %v1018 = vadd.f32 %v832, %v976
      %v1019 = vadd.f32 %v835, %v979
      %v1020 = vadd.f32 %v837, %v981
      %v1021 = vadd.f32 %v840, %v984
      %v1022 = vadd.f32 %v842, %v986
      %v1023 = vadd.f32 %v845, %v989
      %v1024 = vadd.f32 %v847, %v991
      %v1025 = vadd.f32 %v850, %v994
      %v1026 = vadd.f32 %v852, %v996
      %v1027 = vadd.f32 %v855, %v999
      %v1028 = vadd.f32 %v857, %v1001
      %v1029 = vadd.f32 %v860, %v1004
      %v1030 = vadd.f32 %v862, %v1006
      %v1031 = vadd.f32 %v865, %v1009
      %v1032 = vadd.f32 %v867, %v1011
      %s1033 = scalar_lea.vmem %s1, 6
      %v1034 = vld [vmem:[%s1033] sm:$0x3]
      %v1037 = vunpack.c.l.b16 %v552
      %v1038 = vunpack.c.l.b16 %v553
      %v1039 = vpack.c.b16 %v1038, %v1037
      %v1041 = vsel %vm633, %v1039, 0
      %v1044 = vsel %vm664, %v1034, 0
      %1046 = vmatpush.bf16.msra.mxu0 0
      %1047 = vmatpush.bf16.msra.mxu0 0
      %1048 = vmatpush.bf16.msra.mxu0 0
      %1049 = vmatpush.bf16.msra.mxu0 0
      %1050 = vmatpush.bf16.msra.mxu0 0
      %1051 = vmatpush.bf16.msra.mxu0 0
      %1052 = vmatpush.bf16.msra.mxu0 0
      %1053 = vmatpush.bf16.msra.mxu0 %v1044
      %1054 = vmatmul.bf16.gmra.mxu0 %v781
      %v1055 = vpop.f32.mrf.mxu0
      %v1056 = vadd.f32 0.0, %v1055
      %v1057 = vpop.f32.mrf.mxu0
      %v1058 = vadd.f32 0.0, %v1057
      %1059 = vmatmul.bf16.gmra.mxu0 %v784
      %v1060 = vpop.f32.mrf.mxu0
      %v1061 = vadd.f32 0.0, %v1060
      %v1062 = vpop.f32.mrf.mxu0
      %v1063 = vadd.f32 0.0, %v1062
      %1064 = vmatmul.bf16.gmra.mxu0 %v787
      %v1065 = vpop.f32.mrf.mxu0
      %v1066 = vadd.f32 0.0, %v1065
      %v1067 = vpop.f32.mrf.mxu0
      %v1068 = vadd.f32 0.0, %v1067
      %1069 = vmatmul.bf16.gmra.mxu0 %v790
      %v1070 = vpop.f32.mrf.mxu0
      %v1071 = vadd.f32 0.0, %v1070
      %v1072 = vpop.f32.mrf.mxu0
      %v1073 = vadd.f32 0.0, %v1072
      %1074 = vmatmul.bf16.gmra.mxu0 %v793
      %v1075 = vpop.f32.mrf.mxu0
      %v1076 = vadd.f32 0.0, %v1075
      %v1077 = vpop.f32.mrf.mxu0
      %v1078 = vadd.f32 0.0, %v1077
      %1079 = vmatmul.bf16.gmra.mxu0 %v796
      %v1080 = vpop.f32.mrf.mxu0
      %v1081 = vadd.f32 0.0, %v1080
      %v1082 = vpop.f32.mrf.mxu0
      %v1083 = vadd.f32 0.0, %v1082
      %1084 = vmatmul.bf16.gmra.mxu0 %v799
      %v1085 = vpop.f32.mrf.mxu0
      %v1086 = vadd.f32 0.0, %v1085
      %v1087 = vpop.f32.mrf.mxu0
      %v1088 = vadd.f32 0.0, %v1087
      %1089 = vmatmul.bf16.gmra.mxu0 %v802
      %v1090 = vpop.f32.mrf.mxu0
      %v1091 = vadd.f32 0.0, %v1090
      %v1092 = vpop.f32.mrf.mxu0
      %v1093 = vadd.f32 0.0, %v1092
      %1094 = vmatmul.bf16.gmra.mxu0 %v805
      %v1095 = vpop.f32.mrf.mxu0
      %v1096 = vadd.f32 0.0, %v1095
      %v1097 = vpop.f32.mrf.mxu0
      %v1098 = vadd.f32 0.0, %v1097
      %1099 = vmatmul.bf16.gmra.mxu0 %v1041
      %v1100 = vpop.f32.mrf.mxu0
      %v1101 = vadd.f32 0.0, %v1100
      %v1102 = vpop.f32.mrf.mxu0
      %v1103 = vadd.f32 0.0, %v1102
      %1104 = vdwg.mxu0
      %v1105 = vadd.f32 %v1013, %v1056
      %v1106 = vadd.f32 %v1014, %v1058
      %v1107 = vadd.f32 %v1015, %v1061
      %v1108 = vadd.f32 %v1016, %v1063
      %v1109 = vadd.f32 %v1017, %v1066
      %v1110 = vadd.f32 %v1018, %v1068
      %v1111 = vadd.f32 %v1019, %v1071
      %v1112 = vadd.f32 %v1020, %v1073
      %v1113 = vadd.f32 %v1021, %v1076
      %v1114 = vadd.f32 %v1022, %v1078
      %v1115 = vadd.f32 %v1023, %v1081
      %v1116 = vadd.f32 %v1024, %v1083
      %v1117 = vadd.f32 %v1025, %v1086
      %v1118 = vadd.f32 %v1026, %v1088
      %v1119 = vadd.f32 %v1027, %v1091
      %v1120 = vadd.f32 %v1028, %v1093
      %v1121 = vadd.f32 %v1029, %v1096
      %v1122 = vadd.f32 %v1030, %v1098
      %v1123 = vadd.f32 %v1031, %v1101
      %v1124 = vadd.f32 %v1032, %v1103
      %s1125 = scalar_lea.vmem %s1, 8
      %v1126 = vld [vmem:[%s1125] sm:$0x3]
      %v1129 = vunpack.c.l.b16 %v333
      %v1130 = vunpack.c.l.b16 %v334
      %v1131 = vpack.c.b16 %v1130, %v1129
      %v1133 = vsel %vm633, %v1131, 0
      %v1136 = vsel %vm664, %v1126, 0
      %1138 = vmatpush.bf16.msra.mxu0 0
      %1139 = vmatpush.bf16.msra.mxu0 0
      %1140 = vmatpush.bf16.msra.mxu0 0
      %1141 = vmatpush.bf16.msra.mxu0 0
      %1142 = vmatpush.bf16.msra.mxu0 0
      %1143 = vmatpush.bf16.msra.mxu0 0
      %1144 = vmatpush.bf16.msra.mxu0 0
      %1145 = vmatpush.bf16.msra.mxu0 %v1136
      %1146 = vmatmul.bf16.gmra.mxu0 %v638
      %v1147 = vpop.f32.mrf.mxu0
      %v1148 = vadd.f32 0.0, %v1147
      %v1149 = vpop.f32.mrf.mxu0
      %v1150 = vadd.f32 0.0, %v1149
      %1151 = vmatmul.bf16.gmra.mxu0 %v641
      %v1152 = vpop.f32.mrf.mxu0
      %v1153 = vadd.f32 0.0, %v1152
      %v1154 = vpop.f32.mrf.mxu0
      %v1155 = vadd.f32 0.0, %v1154
      %1156 = vmatmul.bf16.gmra.mxu0 %v644
      %v1157 = vpop.f32.mrf.mxu0
      %v1158 = vadd.f32 0.0, %v1157
      %v1159 = vpop.f32.mrf.mxu0
      %v1160 = vadd.f32 0.0, %v1159
      %1161 = vmatmul.bf16.gmra.mxu0 %v647
      %v1162 = vpop.f32.mrf.mxu0
      %v1163 = vadd.f32 0.0, %v1162
      %v1164 = vpop.f32.mrf.mxu0
      %v1165 = vadd.f32 0.0, %v1164
      %1166 = vmatmul.bf16.gmra.mxu0 %v650
      %v1167 = vpop.f32.mrf.mxu0
      %v1168 = vadd.f32 0.0, %v1167
      %v1169 = vpop.f32.mrf.mxu0
      %v1170 = vadd.f32 0.0, %v1169
      %1171 = vmatmul.bf16.gmra.mxu0 %v653
      %v1172 = vpop.f32.mrf.mxu0
      %v1173 = vadd.f32 0.0, %v1172
      %v1174 = vpop.f32.mrf.mxu0
      %v1175 = vadd.f32 0.0, %v1174
      %1176 = vmatmul.bf16.gmra.mxu0 %v656
      %v1177 = vpop.f32.mrf.mxu0
      %v1178 = vadd.f32 0.0, %v1177
      %v1179 = vpop.f32.mrf.mxu0
      %v1180 = vadd.f32 0.0, %v1179
      %1181 = vmatmul.bf16.gmra.mxu0 %v659
      %v1182 = vpop.f32.mrf.mxu0
      %v1183 = vadd.f32 0.0, %v1182
      %v1184 = vpop.f32.mrf.mxu0
      %v1185 = vadd.f32 0.0, %v1184
      %1186 = vmatmul.bf16.gmra.mxu0 %v662
      %v1187 = vpop.f32.mrf.mxu0
      %v1188 = vadd.f32 0.0, %v1187
      %v1189 = vpop.f32.mrf.mxu0
      %v1190 = vadd.f32 0.0, %v1189
      %1191 = vmatmul.bf16.gmra.mxu0 %v1133
      %v1192 = vpop.f32.mrf.mxu0
      %v1193 = vadd.f32 0.0, %v1192
      %v1194 = vpop.f32.mrf.mxu0
      %v1195 = vadd.f32 0.0, %v1194
      %1196 = vdwg.mxu0
      %v1197 = vadd.f32 %v1105, %v1148
      %v1198 = vadd.f32 %v1106, %v1150
      %v1199 = vadd.f32 %v1107, %v1153
      %v1200 = vadd.f32 %v1108, %v1155
      %v1201 = vadd.f32 %v1109, %v1158
      %v1202 = vadd.f32 %v1110, %v1160
      %v1203 = vadd.f32 %v1111, %v1163
      %v1204 = vadd.f32 %v1112, %v1165
      %v1205 = vadd.f32 %v1113, %v1168
      %v1206 = vadd.f32 %v1114, %v1170
      %v1207 = vadd.f32 %v1115, %v1173
      %v1208 = vadd.f32 %v1116, %v1175
      %v1209 = vadd.f32 %v1117, %v1178
      %v1210 = vadd.f32 %v1118, %v1180
      %v1211 = vadd.f32 %v1119, %v1183
      %v1212 = vadd.f32 %v1120, %v1185
      %v1213 = vadd.f32 %v1121, %v1188
      %v1214 = vadd.f32 %v1122, %v1190
      %v1215 = vadd.f32 %v1123, %v1193
      %v1216 = vadd.f32 %v1124, %v1195
      %s1217 = scalar_lea.vmem %s1, 10
      %v1218 = vld [vmem:[%s1217] sm:$0x3]
      %v1221 = vunpack.c.l.b16 %v576
      %v1222 = vunpack.c.l.b16 %v577
      %v1223 = vpack.c.b16 %v1222, %v1221
      %v1225 = vsel %vm633, %v1223, 0
      %v1228 = vsel %vm664, %v1218, 0
      %1230 = vmatpush.bf16.msra.mxu0 0
      %1231 = vmatpush.bf16.msra.mxu0 0
      %1232 = vmatpush.bf16.msra.mxu0 0
      %1233 = vmatpush.bf16.msra.mxu0 0
      %1234 = vmatpush.bf16.msra.mxu0 0
      %1235 = vmatpush.bf16.msra.mxu0 0
      %1236 = vmatpush.bf16.msra.mxu0 0
      %1237 = vmatpush.bf16.msra.mxu0 %v1228
      %1238 = vmatmul.bf16.gmra.mxu0 %v925
      %v1239 = vpop.f32.mrf.mxu0
      %v1240 = vadd.f32 0.0, %v1239
      %v1241 = vpop.f32.mrf.mxu0
      %v1242 = vadd.f32 0.0, %v1241
      %1243 = vmatmul.bf16.gmra.mxu0 %v928
      %v1244 = vpop.f32.mrf.mxu0
      %v1245 = vadd.f32 0.0, %v1244
      %v1246 = vpop.f32.mrf.mxu0
      %v1247 = vadd.f32 0.0, %v1246
      %1248 = vmatmul.bf16.gmra.mxu0 %v931
      %v1249 = vpop.f32.mrf.mxu0
      %v1250 = vadd.f32 0.0, %v1249
      %v1251 = vpop.f32.mrf.mxu0
      %v1252 = vadd.f32 0.0, %v1251
      %1253 = vmatmul.bf16.gmra.mxu0 %v934
      %v1254 = vpop.f32.mrf.mxu0
      %v1255 = vadd.f32 0.0, %v1254
      %v1256 = vpop.f32.mrf.mxu0
      %v1257 = vadd.f32 0.0, %v1256
      %1258 = vmatmul.bf16.gmra.mxu0 %v937
      %v1259 = vpop.f32.mrf.mxu0
      %v1260 = vadd.f32 0.0, %v1259
      %v1261 = vpop.f32.mrf.mxu0
      %v1262 = vadd.f32 0.0, %v1261
      %1263 = vmatmul.bf16.gmra.mxu0 %v940
      %v1264 = vpop.f32.mrf.mxu0
      %v1265 = vadd.f32 0.0, %v1264
      %v1266 = vpop.f32.mrf.mxu0
      %v1267 = vadd.f32 0.0, %v1266
      %1268 = vmatmul.bf16.gmra.mxu0 %v943
      %v1269 = vpop.f32.mrf.mxu0
      %v1270 = vadd.f32 0.0, %v1269
      %v1271 = vpop.f32.mrf.mxu0
      %v1272 = vadd.f32 0.0, %v1271
      %1273 = vmatmul.bf16.gmra.mxu0 %v946
      %v1274 = vpop.f32.mrf.mxu0
      %v1275 = vadd.f32 0.0, %v1274
      %v1276 = vpop.f32.mrf.mxu0
      %v1277 = vadd.f32 0.0, %v1276
      %1278 = vmatmul.bf16.gmra.mxu0 %v949
      %v1279 = vpop.f32.mrf.mxu0
      %v1280 = vadd.f32 0.0, %v1279
      %v1281 = vpop.f32.mrf.mxu0
      %v1282 = vadd.f32 0.0, %v1281
      %1283 = vmatmul.bf16.gmra.mxu0 %v1225
      %v1284 = vpop.f32.mrf.mxu0
      %v1285 = vadd.f32 0.0, %v1284
      %v1286 = vpop.f32.mrf.mxu0
      %v1287 = vadd.f32 0.0, %v1286
      %1288 = vdwg.mxu0
      %v1289 = vadd.f32 %v1197, %v1240
      %v1290 = vadd.f32 %v1198, %v1242
      %v1291 = vadd.f32 %v1199, %v1245
      %v1292 = vadd.f32 %v1200, %v1247
      %v1293 = vadd.f32 %v1201, %v1250
      %v1294 = vadd.f32 %v1202, %v1252
      %v1295 = vadd.f32 %v1203, %v1255
      %v1296 = vadd.f32 %v1204, %v1257
      %v1297 = vadd.f32 %v1205, %v1260
      %v1298 = vadd.f32 %v1206, %v1262
      %v1299 = vadd.f32 %v1207, %v1265
      %v1300 = vadd.f32 %v1208, %v1267
      %v1301 = vadd.f32 %v1209, %v1270
      %v1302 = vadd.f32 %v1210, %v1272
      %v1303 = vadd.f32 %v1211, %v1275
      %v1304 = vadd.f32 %v1212, %v1277
      %v1305 = vadd.f32 %v1213, %v1280
      %v1306 = vadd.f32 %v1214, %v1282
      %v1307 = vadd.f32 %v1215, %v1285
      %v1308 = vadd.f32 %v1216, %v1287
      %s1309 = scalar_lea.vmem %s1, 12
      %v1310 = vld [vmem:[%s1309] sm:$0x3]
      %v1313 = vunpack.c.l.b16 %v554
      %v1314 = vunpack.c.l.b16 %v555
      %v1315 = vpack.c.b16 %v1314, %v1313
      %v1317 = vsel %vm633, %v1315, 0
      %v1320 = vsel %vm664, %v1310, 0
      %1322 = vmatpush.bf16.msra.mxu0 0
      %1323 = vmatpush.bf16.msra.mxu0 0
      %1324 = vmatpush.bf16.msra.mxu0 0
      %1325 = vmatpush.bf16.msra.mxu0 0
      %1326 = vmatpush.bf16.msra.mxu0 0
      %1327 = vmatpush.bf16.msra.mxu0 0
      %1328 = vmatpush.bf16.msra.mxu0 0
      %1329 = vmatpush.bf16.msra.mxu0 %v1320
      %1330 = vmatmul.bf16.gmra.mxu0 %v784
      %v1331 = vpop.f32.mrf.mxu0
      %v1332 = vadd.f32 0.0, %v1331
      %v1333 = vpop.f32.mrf.mxu0
      %v1334 = vadd.f32 0.0, %v1333
      %1335 = vmatmul.bf16.gmra.mxu0 %v787
      %v1336 = vpop.f32.mrf.mxu0
      %v1337 = vadd.f32 0.0, %v1336
      %v1338 = vpop.f32.mrf.mxu0
      %v1339 = vadd.f32 0.0, %v1338
      %1340 = vmatmul.bf16.gmra.mxu0 %v790
      %v1341 = vpop.f32.mrf.mxu0
      %v1342 = vadd.f32 0.0, %v1341
      %v1343 = vpop.f32.mrf.mxu0
      %v1344 = vadd.f32 0.0, %v1343
      %1345 = vmatmul.bf16.gmra.mxu0 %v793
      %v1346 = vpop.f32.mrf.mxu0
      %v1347 = vadd.f32 0.0, %v1346
      %v1348 = vpop.f32.mrf.mxu0
      %v1349 = vadd.f32 0.0, %v1348
      %1350 = vmatmul.bf16.gmra.mxu0 %v796
      %v1351 = vpop.f32.mrf.mxu0
      %v1352 = vadd.f32 0.0, %v1351
      %v1353 = vpop.f32.mrf.mxu0
      %v1354 = vadd.f32 0.0, %v1353
      %1355 = vmatmul.bf16.gmra.mxu0 %v799
      %v1356 = vpop.f32.mrf.mxu0
      %v1357 = vadd.f32 0.0, %v1356
      %v1358 = vpop.f32.mrf.mxu0
      %v1359 = vadd.f32 0.0, %v1358
      %1360 = vmatmul.bf16.gmra.mxu0 %v802
      %v1361 = vpop.f32.mrf.mxu0
      %v1362 = vadd.f32 0.0, %v1361
      %v1363 = vpop.f32.mrf.mxu0
      %v1364 = vadd.f32 0.0, %v1363
      %1365 = vmatmul.bf16.gmra.mxu0 %v805
      %v1366 = vpop.f32.mrf.mxu0
      %v1367 = vadd.f32 0.0, %v1366
      %v1368 = vpop.f32.mrf.mxu0
      %v1369 = vadd.f32 0.0, %v1368
      %1370 = vmatmul.bf16.gmra.mxu0 %v1041
      %v1371 = vpop.f32.mrf.mxu0
      %v1372 = vadd.f32 0.0, %v1371
      %v1373 = vpop.f32.mrf.mxu0
      %v1374 = vadd.f32 0.0, %v1373
      %1375 = vmatmul.bf16.gmra.mxu0 %v1317
      %v1376 = vpop.f32.mrf.mxu0
      %v1377 = vadd.f32 0.0, %v1376
      %v1378 = vpop.f32.mrf.mxu0
      %v1379 = vadd.f32 0.0, %v1378
      %1380 = vdwg.mxu0
      %v1381 = vadd.f32 %v1289, %v1332
      %v1382 = vadd.f32 %v1290, %v1334
      %v1383 = vadd.f32 %v1291, %v1337
      %v1384 = vadd.f32 %v1292, %v1339
      %v1385 = vadd.f32 %v1293, %v1342
      %v1386 = vadd.f32 %v1294, %v1344
      %v1387 = vadd.f32 %v1295, %v1347
      %v1388 = vadd.f32 %v1296, %v1349
      %v1389 = vadd.f32 %v1297, %v1352
      %v1390 = vadd.f32 %v1298, %v1354
      %v1391 = vadd.f32 %v1299, %v1357
      %v1392 = vadd.f32 %v1300, %v1359
      %v1393 = vadd.f32 %v1301, %v1362
      %v1394 = vadd.f32 %v1302, %v1364
      %v1395 = vadd.f32 %v1303, %v1367
      %v1396 = vadd.f32 %v1304, %v1369
      %v1397 = vadd.f32 %v1305, %v1372
      %v1398 = vadd.f32 %v1306, %v1374
      %v1399 = vadd.f32 %v1307, %v1377
      %v1400 = vadd.f32 %v1308, %v1379
      %s1401 = scalar_lea.vmem %s1, 14
      %v1402 = vld [vmem:[%s1401] sm:$0x3]
      %v1405 = vunpack.c.l.b16 %v352
      %v1406 = vunpack.c.l.b16 %v353
      %v1407 = vpack.c.b16 %v1406, %v1405
      %v1409 = vsel %vm633, %v1407, 0
      %v1412 = vsel %vm664, %v1402, 0
      %1414 = vmatpush.bf16.msra.mxu0 0
      %1415 = vmatpush.bf16.msra.mxu0 0
      %1416 = vmatpush.bf16.msra.mxu0 0
      %1417 = vmatpush.bf16.msra.mxu0 0
      %1418 = vmatpush.bf16.msra.mxu0 0
      %1419 = vmatpush.bf16.msra.mxu0 0
      %1420 = vmatpush.bf16.msra.mxu0 0
      %1421 = vmatpush.bf16.msra.mxu0 %v1412
      %1422 = vmatmul.bf16.gmra.mxu0 %v641
      %v1423 = vpop.f32.mrf.mxu0
      %v1424 = vadd.f32 0.0, %v1423
      %v1425 = vpop.f32.mrf.mxu0
      %v1426 = vadd.f32 0.0, %v1425
      %1427 = vmatmul.bf16.gmra.mxu0 %v644
      %v1428 = vpop.f32.mrf.mxu0
      %v1429 = vadd.f32 0.0, %v1428
      %v1430 = vpop.f32.mrf.mxu0
      %v1431 = vadd.f32 0.0, %v1430
      %1432 = vmatmul.bf16.gmra.mxu0 %v647
      %v1433 = vpop.f32.mrf.mxu0
      %v1434 = vadd.f32 0.0, %v1433
      %v1435 = vpop.f32.mrf.mxu0
      %v1436 = vadd.f32 0.0, %v1435
      %1437 = vmatmul.bf16.gmra.mxu0 %v650
      %v1438 = vpop.f32.mrf.mxu0
      %v1439 = vadd.f32 0.0, %v1438
      %v1440 = vpop.f32.mrf.mxu0
      %v1441 = vadd.f32 0.0, %v1440
      %1442 = vmatmul.bf16.gmra.mxu0 %v653
      %v1443 = vpop.f32.mrf.mxu0
      %v1444 = vadd.f32 0.0, %v1443
      %v1445 = vpop.f32.mrf.mxu0
      %v1446 = vadd.f32 0.0, %v1445
      %1447 = vmatmul.bf16.gmra.mxu0 %v656
      %v1448 = vpop.f32.mrf.mxu0
      %v1449 = vadd.f32 0.0, %v1448
      %v1450 = vpop.f32.mrf.mxu0
      %v1451 = vadd.f32 0.0, %v1450
      %1452 = vmatmul.bf16.gmra.mxu0 %v659
      %v1453 = vpop.f32.mrf.mxu0
      %v1454 = vadd.f32 0.0, %v1453
      %v1455 = vpop.f32.mrf.mxu0
      %v1456 = vadd.f32 0.0, %v1455
      %1457 = vmatmul.bf16.gmra.mxu0 %v662
      %v1458 = vpop.f32.mrf.mxu0
      %v1459 = vadd.f32 0.0, %v1458
      %v1460 = vpop.f32.mrf.mxu0
      %v1461 = vadd.f32 0.0, %v1460
      %1462 = vmatmul.bf16.gmra.mxu0 %v1133
      %v1463 = vpop.f32.mrf.mxu0
      %v1464 = vadd.f32 0.0, %v1463
      %v1465 = vpop.f32.mrf.mxu0
      %v1466 = vadd.f32 0.0, %v1465
      %1467 = vmatmul.bf16.gmra.mxu0 %v1409
      %v1468 = vpop.f32.mrf.mxu0
      %v1469 = vadd.f32 0.0, %v1468
      %v1470 = vpop.f32.mrf.mxu0
      %v1471 = vadd.f32 0.0, %v1470
      %1472 = vdwg.mxu0
      %v1473 = vadd.f32 %v1381, %v1424
      %v1474 = vadd.f32 %v1382, %v1426
      %v1475 = vadd.f32 %v1383, %v1429
      %v1476 = vadd.f32 %v1384, %v1431
      %v1477 = vadd.f32 %v1385, %v1434
      %v1478 = vadd.f32 %v1386, %v1436
      %v1479 = vadd.f32 %v1387, %v1439
      %v1480 = vadd.f32 %v1388, %v1441
      %v1481 = vadd.f32 %v1389, %v1444
      %v1482 = vadd.f32 %v1390, %v1446
      %v1483 = vadd.f32 %v1391, %v1449
      %v1484 = vadd.f32 %v1392, %v1451
      %v1485 = vadd.f32 %v1393, %v1454
      %v1486 = vadd.f32 %v1394, %v1456
      %v1487 = vadd.f32 %v1395, %v1459
      %v1488 = vadd.f32 %v1396, %v1461
      %v1489 = vadd.f32 %v1397, %v1464
      %v1490 = vadd.f32 %v1398, %v1466
      %v1491 = vadd.f32 %v1399, %v1469
      %v1492 = vadd.f32 %v1400, %v1471
      %s1493 = scalar_lea.vmem %s1, 16
      %v1494 = vld [vmem:[%s1493] sm:$0x3]
      %v1497 = vunpack.c.l.b16 %v578
      %v1498 = vunpack.c.l.b16 %v579
      %v1499 = vpack.c.b16 %v1498, %v1497
      %v1501 = vsel %vm633, %v1499, 0
      %v1504 = vsel %vm664, %v1494, 0
      %1506 = vmatpush.bf16.msra.mxu0 0
      %1507 = vmatpush.bf16.msra.mxu0 0
      %1508 = vmatpush.bf16.msra.mxu0 0
      %1509 = vmatpush.bf16.msra.mxu0 0
      %1510 = vmatpush.bf16.msra.mxu0 0
      %1511 = vmatpush.bf16.msra.mxu0 0
      %1512 = vmatpush.bf16.msra.mxu0 0
      %1513 = vmatpush.bf16.msra.mxu0 %v1504
      %1514 = vmatmul.bf16.gmra.mxu0 %v928
      %v1515 = vpop.f32.mrf.mxu0
      %v1516 = vadd.f32 0.0, %v1515
      %v1517 = vpop.f32.mrf.mxu0
      %v1518 = vadd.f32 0.0, %v1517
      %1519 = vmatmul.bf16.gmra.mxu0 %v931
      %v1520 = vpop.f32.mrf.mxu0
      %v1521 = vadd.f32 0.0, %v1520
      %v1522 = vpop.f32.mrf.mxu0
      %v1523 = vadd.f32 0.0, %v1522
      %1524 = vmatmul.bf16.gmra.mxu0 %v934
      %v1525 = vpop.f32.mrf.mxu0
      %v1526 = vadd.f32 0.0, %v1525
      %v1527 = vpop.f32.mrf.mxu0
      %v1528 = vadd.f32 0.0, %v1527
      %1529 = vmatmul.bf16.gmra.mxu0 %v937
      %v1530 = vpop.f32.mrf.mxu0
      %v1531 = vadd.f32 0.0, %v1530
      %v1532 = vpop.f32.mrf.mxu0
      %v1533 = vadd.f32 0.0, %v1532
      %1534 = vmatmul.bf16.gmra.mxu0 %v940
      %v1535 = vpop.f32.mrf.mxu0
      %v1536 = vadd.f32 0.0, %v1535
      %v1537 = vpop.f32.mrf.mxu0
      %v1538 = vadd.f32 0.0, %v1537
      %1539 = vmatmul.bf16.gmra.mxu0 %v943
      %v1540 = vpop.f32.mrf.mxu0
      %v1541 = vadd.f32 0.0, %v1540
      %v1542 = vpop.f32.mrf.mxu0
      %v1543 = vadd.f32 0.0, %v1542
      %1544 = vmatmul.bf16.gmra.mxu0 %v946
      %v1545 = vpop.f32.mrf.mxu0
      %v1546 = vadd.f32 0.0, %v1545
      %v1547 = vpop.f32.mrf.mxu0
      %v1548 = vadd.f32 0.0, %v1547
      %1549 = vmatmul.bf16.gmra.mxu0 %v949
      %v1550 = vpop.f32.mrf.mxu0
      %v1551 = vadd.f32 0.0, %v1550
      %v1552 = vpop.f32.mrf.mxu0
      %v1553 = vadd.f32 0.0, %v1552
      %1554 = vmatmul.bf16.gmra.mxu0 %v1225
      %v1555 = vpop.f32.mrf.mxu0
      %v1556 = vadd.f32 0.0, %v1555
      %v1557 = vpop.f32.mrf.mxu0
      %v1558 = vadd.f32 0.0, %v1557
      %1559 = vmatmul.bf16.gmra.mxu0 %v1501
      %v1560 = vpop.f32.mrf.mxu0
      %v1561 = vadd.f32 0.0, %v1560
      %v1562 = vpop.f32.mrf.mxu0
      %v1563 = vadd.f32 0.0, %v1562
      %1564 = vdwg.mxu0
      %v1565 = vadd.f32 %v1473, %v1516
      %v1566 = vadd.f32 %v1474, %v1518
      %v1567 = vadd.f32 %v1475, %v1521
      %v1568 = vadd.f32 %v1476, %v1523
      %v1569 = vadd.f32 %v1477, %v1526
      %v1570 = vadd.f32 %v1478, %v1528
      %v1571 = vadd.f32 %v1479, %v1531
      %v1572 = vadd.f32 %v1480, %v1533
      %v1573 = vadd.f32 %v1481, %v1536
      %v1574 = vadd.f32 %v1482, %v1538
      %v1575 = vadd.f32 %v1483, %v1541
      %v1576 = vadd.f32 %v1484, %v1543
      %v1577 = vadd.f32 %v1485, %v1546
      %v1578 = vadd.f32 %v1486, %v1548
      %v1579 = vadd.f32 %v1487, %v1551
      %v1580 = vadd.f32 %v1488, %v1553
      %v1581 = vadd.f32 %v1489, %v1556
      %v1582 = vadd.f32 %v1490, %v1558
      %v1583 = vadd.f32 %v1491, %v1561
      %v1584 = vadd.f32 %v1492, %v1563
      %v1585 = vld [vmem:[%s2] sm:$0x1]
      %v1587 = vperm.slane %v1585, 0
      %v1589 = vadd.f32 %v1565, %v1587
      %v1590 = vadd.f32 %v1566, %v1587
      %v1591 = vadd.f32 %v1567, %v1587
      %v1592 = vadd.f32 %v1568, %v1587
      %v1593 = vadd.f32 %v1569, %v1587
      %v1594 = vadd.f32 %v1570, %v1587
      %v1595 = vadd.f32 %v1571, %v1587
      %v1596 = vadd.f32 %v1572, %v1587
      %v1597 = vadd.f32 %v1573, %v1587
      %v1598 = vadd.f32 %v1574, %v1587
      %v1599 = vadd.f32 %v1575, %v1587
      %v1600 = vadd.f32 %v1576, %v1587
      %v1601 = vadd.f32 %v1577, %v1587
      %v1602 = vadd.f32 %v1578, %v1587
      %v1603 = vadd.f32 %v1579, %v1587
      %v1604 = vadd.f32 %v1580, %v1587
      %v1605 = vadd.f32 %v1581, %v1587
      %v1606 = vadd.f32 %v1582, %v1587
      %v1607 = vadd.f32 %v1583, %v1587
      %v1608 = vadd.f32 %v1584, %v1587
      %v1609 = vmax.f32 %v1589, 0.0
      %v1610 = vmax.f32 %v1590, 0.0
      %v1611 = vmax.f32 %v1591, 0.0
      %v1612 = vmax.f32 %v1592, 0.0
      %v1613 = vmax.f32 %v1593, 0.0
      %v1614 = vmax.f32 %v1594, 0.0
      %v1615 = vmax.f32 %v1595, 0.0
      %v1616 = vmax.f32 %v1596, 0.0
      %v1617 = vmax.f32 %v1597, 0.0
      %v1618 = vmax.f32 %v1598, 0.0
      %v1619 = vmax.f32 %v1599, 0.0
      %v1620 = vmax.f32 %v1600, 0.0
      %v1621 = vmax.f32 %v1601, 0.0
      %v1622 = vmax.f32 %v1602, 0.0
      %v1623 = vmax.f32 %v1603, 0.0
      %v1624 = vmax.f32 %v1604, 0.0
      %v1625 = vmax.f32 %v1605, 0.0
      %v1626 = vmax.f32 %v1606, 0.0
      %v1627 = vmax.f32 %v1607, 0.0
      %v1628 = vmax.f32 %v1608, 0.0
      %v1629 = vstv %s297
      %v1630 = vadd.s32 %v1629, 1
      %v1631 = vadd.s32 %v1629, 2
      %v1632 = vadd.s32 %v1629, 3
      %v1633 = vadd.s32 %v1629, 4
      %v1634 = vadd.s32 %v1629, 5
      %v1635 = vadd.s32 %v1629, 6
      %v1636 = vadd.s32 %v1629, 7
      %v1637 = vadd.s32 %v1629, 8
      %v1638 = vadd.s32 %v1629, 9
      %vm1639 = vcmp.ge.s32.totalorder %v1629, 0
      %vm1640 = vcmp.ge.s32.totalorder %v1630, 0
      %vm1641 = vcmp.ge.s32.totalorder %v1631, 0
      %vm1642 = vcmp.ge.s32.totalorder %v1632, 0
      %vm1643 = vcmp.ge.s32.totalorder %v1633, 0
      %vm1644 = vcmp.ge.s32.totalorder %v1634, 0
      %vm1645 = vcmp.ge.s32.totalorder %v1635, 0
      %vm1646 = vcmp.ge.s32.totalorder %v1636, 0
      %vm1647 = vcmp.ge.s32.totalorder %v1637, 0
      %vm1648 = vcmp.ge.s32.totalorder %v1638, 0
      %vm1649 = vcmp.lt.s32.totalorder %v1629, 16
      %vm1650 = vcmp.lt.s32.totalorder %v1630, 16
      %vm1651 = vcmp.lt.s32.totalorder %v1631, 16
      %vm1652 = vcmp.lt.s32.totalorder %v1632, 16
      %vm1653 = vcmp.lt.s32.totalorder %v1633, 16
      %vm1654 = vcmp.lt.s32.totalorder %v1634, 16
      %vm1655 = vcmp.lt.s32.totalorder %v1635, 16
      %vm1656 = vcmp.lt.s32.totalorder %v1636, 16
      %vm1657 = vcmp.lt.s32.totalorder %v1637, 16
      %vm1658 = vcmp.lt.s32.totalorder %v1638, 16
      %vm1659 = vmand %vm1639, %vm1649
      %vm1660 = vmand %vm1640, %vm1650
      %vm1661 = vmand %vm1641, %vm1651
      %vm1662 = vmand %vm1642, %vm1652
      %vm1663 = vmand %vm1643, %vm1653
      %vm1664 = vmand %vm1644, %vm1654
      %vm1665 = vmand %vm1645, %vm1655
      %vm1666 = vmand %vm1646, %vm1656
      %vm1667 = vmand %vm1647, %vm1657
      %vm1668 = vmand %vm1648, %vm1658
      %v1669 = vsel %vm1659, 1, 0
      %v1670 = vsel %vm1660, 1, 0
      %v1671 = vsel %vm1661, 1, 0
      %v1672 = vsel %vm1662, 1, 0
      %v1673 = vsel %vm1663, 1, 0
      %v1674 = vsel %vm1664, 1, 0
      %v1675 = vsel %vm1665, 1, 0
      %v1676 = vsel %vm1666, 1, 0
      %v1677 = vsel %vm1667, 1, 0
      %v1678 = vsel %vm1668, 1, 0
      %vm1679 = vcmp.eq.s32.totalorder %v1669, 1
      %vm1680 = vcmp.eq.s32.totalorder %v1670, 1
      %vm1681 = vcmp.eq.s32.totalorder %v1671, 1
      %vm1682 = vcmp.eq.s32.totalorder %v1672, 1
      %vm1683 = vcmp.eq.s32.totalorder %v1673, 1
      %vm1684 = vcmp.eq.s32.totalorder %v1674, 1
      %vm1685 = vcmp.eq.s32.totalorder %v1675, 1
      %vm1686 = vcmp.eq.s32.totalorder %v1676, 1
      %vm1687 = vcmp.eq.s32.totalorder %v1677, 1
      %vm1688 = vcmp.eq.s32.totalorder %v1678, 1
      %v1689 = vsel %vm1679, %v1609, 0.0
      %v1690 = vsel %vm1679, %v1610, 0.0
      %v1691 = vsel %vm1680, %v1611, 0.0
      %v1692 = vsel %vm1680, %v1612, 0.0
      %v1693 = vsel %vm1681, %v1613, 0.0
      %v1694 = vsel %vm1681, %v1614, 0.0
      %v1695 = vsel %vm1682, %v1615, 0.0
      %v1696 = vsel %vm1682, %v1616, 0.0
      %v1697 = vsel %vm1683, %v1617, 0.0
      %v1698 = vsel %vm1683, %v1618, 0.0
      %v1699 = vsel %vm1684, %v1619, 0.0
      %v1700 = vsel %vm1684, %v1620, 0.0
      %v1701 = vsel %vm1685, %v1621, 0.0
      %v1702 = vsel %vm1685, %v1622, 0.0
      %v1703 = vsel %vm1686, %v1623, 0.0
      %v1704 = vsel %vm1686, %v1624, 0.0
      %v1705 = vsel %vm1687, %v1625, 0.0
      %v1706 = vsel %vm1687, %v1626, 0.0
      %v1707 = vsel %vm1688, %v1627, 0.0
      %v1708 = vsel %vm1688, %v1628, 0.0
      %v1709 = vrot.slane %v1689, 7
      %v1710 = vrot.slane %v1691, 7
      %v1711 = vrot.slane %v1693, 7
      %v1712 = vrot.slane %v1695, 7
      %v1713 = vrot.slane %v1697, 7
      %v1714 = vrot.slane %v1699, 7
      %v1715 = vrot.slane %v1701, 7
      %v1716 = vrot.slane %v1703, 7
      %v1717 = vrot.slane %v1705, 7
      %v1718 = vrot.slane %v1707, 7
      %v1719 = vrot.slane %v1690, 7
      %v1720 = vrot.slane %v1692, 7
      %v1721 = vrot.slane %v1694, 7
      %v1722 = vrot.slane %v1696, 7
      %v1723 = vrot.slane %v1698, 7
      %v1724 = vrot.slane %v1700, 7
      %v1725 = vrot.slane %v1702, 7
      %v1726 = vrot.slane %v1704, 7
      %v1727 = vrot.slane %v1706, 7
      %v1728 = vrot.slane %v1708, 7
      %v1729 = vsel %vm402, %v1709, %v1719
      %v1730 = vsel %vm402, %v1710, %v1720
      %v1731 = vsel %vm402, %v1711, %v1721
      %v1732 = vsel %vm402, %v1712, %v1722
      %v1733 = vsel %vm402, %v1713, %v1723
      %v1734 = vsel %vm402, %v1714, %v1724
      %v1735 = vsel %vm402, %v1715, %v1725
      %v1736 = vsel %vm402, %v1716, %v1726
      %v1737 = vsel %vm402, %v1717, %v1727
      %v1738 = vsel %vm402, %v1718, %v1728
      %v1739 = vsel %vm402, %v1719, %v1709
      %v1740 = vsel %vm402, %v1720, %v1710
      %v1741 = vsel %vm402, %v1721, %v1711
      %v1742 = vsel %vm402, %v1722, %v1712
      %v1743 = vsel %vm402, %v1723, %v1713
      %v1744 = vsel %vm402, %v1724, %v1714
      %v1745 = vsel %vm402, %v1725, %v1715
      %v1746 = vsel %vm402, %v1726, %v1716
      %v1747 = vsel %vm402, %v1727, %v1717
      %v1748 = vsel %vm402, %v1728, %v1718
      %v1749 = vsel %vm429, 0.0, %v1739
      %v1750 = vsel %vm430, 0.0, %v1729
      %v1751 = vsel %vm429, 0.0, %v1740
      %v1752 = vsel %vm430, 0.0, %v1730
      %v1753 = vsel %vm429, 0.0, %v1741
      %v1754 = vsel %vm430, 0.0, %v1731
      %v1755 = vsel %vm429, 0.0, %v1742
      %v1756 = vsel %vm430, 0.0, %v1732
      %v1757 = vsel %vm429, 0.0, %v1743
      %v1758 = vsel %vm430, 0.0, %v1733
      %v1759 = vsel %vm429, 0.0, %v1744
      %v1760 = vsel %vm430, 0.0, %v1734
      %v1761 = vsel %vm429, 0.0, %v1745
      %v1762 = vsel %vm430, 0.0, %v1735
      %v1763 = vsel %vm429, 0.0, %v1746
      %v1764 = vsel %vm430, 0.0, %v1736
      %v1765 = vsel %vm429, 0.0, %v1747
      %v1766 = vsel %vm430, 0.0, %v1737
      %v1767 = vsel %vm429, 0.0, %v1748
      %v1768 = vsel %vm430, 0.0, %v1738
      %v1769 = vrot.slane %v1689, 1
      %v1770 = vrot.slane %v1691, 1
      %v1771 = vrot.slane %v1693, 1
      %v1772 = vrot.slane %v1695, 1
      %v1773 = vrot.slane %v1697, 1
      %v1774 = vrot.slane %v1699, 1
      %v1775 = vrot.slane %v1701, 1
      %v1776 = vrot.slane %v1703, 1
      %v1777 = vrot.slane %v1705, 1
      %v1778 = vrot.slane %v1707, 1
      %v1779 = vrot.slane %v1690, 1
      %v1780 = vrot.slane %v1692, 1
      %v1781 = vrot.slane %v1694, 1
      %v1782 = vrot.slane %v1696, 1
      %v1783 = vrot.slane %v1698, 1
      %v1784 = vrot.slane %v1700, 1
      %v1785 = vrot.slane %v1702, 1
      %v1786 = vrot.slane %v1704, 1
      %v1787 = vrot.slane %v1706, 1
      %v1788 = vrot.slane %v1708, 1
      %v1789 = vsel %vm479, %v1769, %v1779
      %v1790 = vsel %vm479, %v1770, %v1780
      %v1791 = vsel %vm479, %v1771, %v1781
      %v1792 = vsel %vm479, %v1772, %v1782
      %v1793 = vsel %vm479, %v1773, %v1783
      %v1794 = vsel %vm479, %v1774, %v1784
      %v1795 = vsel %vm479, %v1775, %v1785
      %v1796 = vsel %vm479, %v1776, %v1786
      %v1797 = vsel %vm479, %v1777, %v1787
      %v1798 = vsel %vm479, %v1778, %v1788
      %v1799 = vsel %vm479, %v1779, %v1769
      %v1800 = vsel %vm479, %v1780, %v1770
      %v1801 = vsel %vm479, %v1781, %v1771
      %v1802 = vsel %vm479, %v1782, %v1772
      %v1803 = vsel %vm479, %v1783, %v1773
      %v1804 = vsel %vm479, %v1784, %v1774
      %v1805 = vsel %vm479, %v1785, %v1775
      %v1806 = vsel %vm479, %v1786, %v1776
      %v1807 = vsel %vm479, %v1787, %v1777
      %v1808 = vsel %vm479, %v1788, %v1778
      %v1809 = vsel %vm506, 0.0, %v1789
      %v1810 = vsel %vm507, 0.0, %v1799
      %v1811 = vsel %vm506, 0.0, %v1790
      %v1812 = vsel %vm507, 0.0, %v1800
      %v1813 = vsel %vm506, 0.0, %v1791
      %v1814 = vsel %vm507, 0.0, %v1801
      %v1815 = vsel %vm506, 0.0, %v1792
      %v1816 = vsel %vm507, 0.0, %v1802
      %v1817 = vsel %vm506, 0.0, %v1793
      %v1818 = vsel %vm507, 0.0, %v1803
      %v1819 = vsel %vm506, 0.0, %v1794
      %v1820 = vsel %vm507, 0.0, %v1804
      %v1821 = vsel %vm506, 0.0, %v1795
      %v1822 = vsel %vm507, 0.0, %v1805
      %v1823 = vsel %vm506, 0.0, %v1796
      %v1824 = vsel %vm507, 0.0, %v1806
      %v1825 = vsel %vm506, 0.0, %v1797
      %v1826 = vsel %vm507, 0.0, %v1807
      %v1827 = vsel %vm506, 0.0, %v1798
      %v1828 = vsel %vm507, 0.0, %v1808
      %v1829 = vpack.c.bf16 %v1749, %v1749
      %v1830 = vpack.c.bf16 %v1750, %v1750
      %v1831 = vpack.c.bf16 %v1751, %v1751
      %v1832 = vpack.c.bf16 %v1752, %v1752
      %v1833 = vpack.c.bf16 %v1753, %v1753
      %v1834 = vpack.c.bf16 %v1754, %v1754
      %v1835 = vpack.c.bf16 %v1755, %v1755
      %v1836 = vpack.c.bf16 %v1756, %v1756
      %v1837 = vpack.c.bf16 %v1757, %v1757
      %v1838 = vpack.c.bf16 %v1758, %v1758
      %v1839 = vpack.c.bf16 %v1759, %v1759
      %v1840 = vpack.c.bf16 %v1760, %v1760
      %v1841 = vpack.c.bf16 %v1761, %v1761
      %v1842 = vpack.c.bf16 %v1762, %v1762
      %v1843 = vpack.c.bf16 %v1763, %v1763
      %v1844 = vpack.c.bf16 %v1764, %v1764
      %v1845 = vpack.c.bf16 %v1765, %v1765
      %v1846 = vpack.c.bf16 %v1766, %v1766
      %v1847 = vpack.c.bf16 %v1767, %v1767
      %v1848 = vpack.c.bf16 %v1768, %v1768
      %v1849 = vpack.c.bf16 %v1689, %v1689
      %v1850 = vpack.c.bf16 %v1690, %v1690
      %v1851 = vpack.c.bf16 %v1691, %v1691
      %v1852 = vpack.c.bf16 %v1692, %v1692
      %v1853 = vpack.c.bf16 %v1693, %v1693
      %v1854 = vpack.c.bf16 %v1694, %v1694
      %v1855 = vpack.c.bf16 %v1695, %v1695
      %v1856 = vpack.c.bf16 %v1696, %v1696
      %v1857 = vpack.c.bf16 %v1697, %v1697
      %v1858 = vpack.c.bf16 %v1698, %v1698
      %v1859 = vpack.c.bf16 %v1699, %v1699
      %v1860 = vpack.c.bf16 %v1700, %v1700
      %v1861 = vpack.c.bf16 %v1701, %v1701
      %v1862 = vpack.c.bf16 %v1702, %v1702
      %v1863 = vpack.c.bf16 %v1703, %v1703
      %v1864 = vpack.c.bf16 %v1704, %v1704
      %v1865 = vpack.c.bf16 %v1705, %v1705
      %v1866 = vpack.c.bf16 %v1706, %v1706
      %v1867 = vpack.c.bf16 %v1707, %v1707
      %v1868 = vpack.c.bf16 %v1708, %v1708
      %v1869 = vpack.c.bf16 %v1809, %v1809
      %v1870 = vpack.c.bf16 %v1810, %v1810
      %v1871 = vpack.c.bf16 %v1811, %v1811
      %v1872 = vpack.c.bf16 %v1812, %v1812
      %v1873 = vpack.c.bf16 %v1813, %v1813
      %v1874 = vpack.c.bf16 %v1814, %v1814
      %v1875 = vpack.c.bf16 %v1815, %v1815
      %v1876 = vpack.c.bf16 %v1816, %v1816
      %v1877 = vpack.c.bf16 %v1817, %v1817
      %v1878 = vpack.c.bf16 %v1818, %v1818
      %v1879 = vpack.c.bf16 %v1819, %v1819
      %v1880 = vpack.c.bf16 %v1820, %v1820
      %v1881 = vpack.c.bf16 %v1821, %v1821
      %v1882 = vpack.c.bf16 %v1822, %v1822
      %v1883 = vpack.c.bf16 %v1823, %v1823
      %v1884 = vpack.c.bf16 %v1824, %v1824
      %v1885 = vpack.c.bf16 %v1825, %v1825
      %v1886 = vpack.c.bf16 %v1826, %v1826
      %v1887 = vpack.c.bf16 %v1827, %v1827
      %v1888 = vpack.c.bf16 %v1828, %v1828
      %v1889 = vld [vmem:[%s3] sm:$0x3]
      %s1890 = scalar_lea.vmem %s3, 2
      %v1891 = vld [vmem:[%s1890] sm:$0x3]
      %v1908 = vunpack.c.l.b16 %v1849
      %v1909 = vunpack.c.l.b16 %v1850
      %v1910 = vunpack.c.l.b16 %v1851
      %v1911 = vunpack.c.l.b16 %v1852
      %v1912 = vunpack.c.l.b16 %v1853
      %v1913 = vunpack.c.l.b16 %v1854
      %v1914 = vunpack.c.l.b16 %v1855
      %v1915 = vunpack.c.l.b16 %v1856
      %v1916 = vunpack.c.l.b16 %v1857
      %v1917 = vunpack.c.l.b16 %v1858
      %v1918 = vunpack.c.l.b16 %v1859
      %v1919 = vunpack.c.l.b16 %v1860
      %v1920 = vunpack.c.l.b16 %v1861
      %v1921 = vunpack.c.l.b16 %v1862
      %v1922 = vunpack.c.l.b16 %v1863
      %v1923 = vunpack.c.l.b16 %v1864
      %v1924 = vpack.c.b16 %v1909, %v1908
      %v1925 = vpack.c.b16 %v1911, %v1910
      %v1926 = vpack.c.b16 %v1913, %v1912
      %v1927 = vpack.c.b16 %v1915, %v1914
      %v1928 = vpack.c.b16 %v1917, %v1916
      %v1929 = vpack.c.b16 %v1919, %v1918
      %v1930 = vpack.c.b16 %v1921, %v1920
      %v1931 = vpack.c.b16 %v1923, %v1922
      %v1933 = vsel %vm633, %v1924, 0
      %v1936 = vsel %vm633, %v1925, 0
      %v1939 = vsel %vm633, %v1926, 0
      %v1942 = vsel %vm633, %v1927, 0
      %v1945 = vsel %vm633, %v1928, 0
      %v1948 = vsel %vm633, %v1929, 0
      %v1951 = vsel %vm633, %v1930, 0
      %v1954 = vsel %vm633, %v1931, 0
      %v1957 = vsel %vm664, %v1891, 0
      %1959 = vmatpush.bf16.msra.mxu0 0
      %1960 = vmatpush.bf16.msra.mxu0 0
      %1961 = vmatpush.bf16.msra.mxu0 0
      %1962 = vmatpush.bf16.msra.mxu0 0
      %1963 = vmatpush.bf16.msra.mxu0 0
      %1964 = vmatpush.bf16.msra.mxu0 0
      %1965 = vmatpush.bf16.msra.mxu0 0
      %1966 = vmatpush.bf16.msra.mxu0 %v1957
      %1967 = vmatmul.bf16.gmra.mxu0 %v1933
      %v1968 = vpop.f32.mrf.mxu0
      %v1969 = vadd.f32 0.0, %v1968
      %v1970 = vpop.f32.mrf.mxu0
      %v1971 = vadd.f32 0.0, %v1970
      %1972 = vmatmul.bf16.gmra.mxu0 %v1936
      %v1973 = vpop.f32.mrf.mxu0
      %v1974 = vadd.f32 0.0, %v1973
      %v1975 = vpop.f32.mrf.mxu0
      %v1976 = vadd.f32 0.0, %v1975
      %1977 = vmatmul.bf16.gmra.mxu0 %v1939
      %v1978 = vpop.f32.mrf.mxu0
      %v1979 = vadd.f32 0.0, %v1978
      %v1980 = vpop.f32.mrf.mxu0
      %v1981 = vadd.f32 0.0, %v1980
      %1982 = vmatmul.bf16.gmra.mxu0 %v1942
      %v1983 = vpop.f32.mrf.mxu0
      %v1984 = vadd.f32 0.0, %v1983
      %v1985 = vpop.f32.mrf.mxu0
      %v1986 = vadd.f32 0.0, %v1985
      %1987 = vmatmul.bf16.gmra.mxu0 %v1945
      %v1988 = vpop.f32.mrf.mxu0
      %v1989 = vadd.f32 0.0, %v1988
      %v1990 = vpop.f32.mrf.mxu0
      %v1991 = vadd.f32 0.0, %v1990
      %1992 = vmatmul.bf16.gmra.mxu0 %v1948
      %v1993 = vpop.f32.mrf.mxu0
      %v1994 = vadd.f32 0.0, %v1993
      %v1995 = vpop.f32.mrf.mxu0
      %v1996 = vadd.f32 0.0, %v1995
      %1997 = vmatmul.bf16.gmra.mxu0 %v1951
      %v1998 = vpop.f32.mrf.mxu0
      %v1999 = vadd.f32 0.0, %v1998
      %v2000 = vpop.f32.mrf.mxu0
      %v2001 = vadd.f32 0.0, %v2000
      %2002 = vmatmul.bf16.gmra.mxu0 %v1954
      %v2003 = vpop.f32.mrf.mxu0
      %v2004 = vadd.f32 0.0, %v2003
      %v2005 = vpop.f32.mrf.mxu0
      %v2006 = vadd.f32 0.0, %v2005
      %2007 = vdwg.mxu0
      %v2024 = vunpack.c.l.b16 %v1829
      %v2025 = vunpack.c.l.b16 %v1830
      %v2026 = vunpack.c.l.b16 %v1831
      %v2027 = vunpack.c.l.b16 %v1832
      %v2028 = vunpack.c.l.b16 %v1833
      %v2029 = vunpack.c.l.b16 %v1834
      %v2030 = vunpack.c.l.b16 %v1835
      %v2031 = vunpack.c.l.b16 %v1836
      %v2032 = vunpack.c.l.b16 %v1837
      %v2033 = vunpack.c.l.b16 %v1838
      %v2034 = vunpack.c.l.b16 %v1839
      %v2035 = vunpack.c.l.b16 %v1840
      %v2036 = vunpack.c.l.b16 %v1841
      %v2037 = vunpack.c.l.b16 %v1842
      %v2038 = vunpack.c.l.b16 %v1843
      %v2039 = vunpack.c.l.b16 %v1844
      %v2040 = vpack.c.b16 %v2025, %v2024
      %v2041 = vpack.c.b16 %v2027, %v2026
      %v2042 = vpack.c.b16 %v2029, %v2028
      %v2043 = vpack.c.b16 %v2031, %v2030
      %v2044 = vpack.c.b16 %v2033, %v2032
      %v2045 = vpack.c.b16 %v2035, %v2034
      %v2046 = vpack.c.b16 %v2037, %v2036
      %v2047 = vpack.c.b16 %v2039, %v2038
      %v2049 = vsel %vm633, %v2040, 0
      %v2052 = vsel %vm633, %v2041, 0
      %v2055 = vsel %vm633, %v2042, 0
      %v2058 = vsel %vm633, %v2043, 0
      %v2061 = vsel %vm633, %v2044, 0
      %v2064 = vsel %vm633, %v2045, 0
      %v2067 = vsel %vm633, %v2046, 0
      %v2070 = vsel %vm633, %v2047, 0
      %v2073 = vsel %vm664, %v1889, 0
      %2075 = vmatpush.bf16.msra.mxu0 0
      %2076 = vmatpush.bf16.msra.mxu0 0
      %2077 = vmatpush.bf16.msra.mxu0 0
      %2078 = vmatpush.bf16.msra.mxu0 0
      %2079 = vmatpush.bf16.msra.mxu0 0
      %2080 = vmatpush.bf16.msra.mxu0 0
      %2081 = vmatpush.bf16.msra.mxu0 0
      %2082 = vmatpush.bf16.msra.mxu0 %v2073
      %2083 = vmatmul.bf16.gmra.mxu0 %v2049
      %v2084 = vpop.f32.mrf.mxu0
      %v2085 = vadd.f32 %v1969, %v2084
      %v2086 = vpop.f32.mrf.mxu0
      %v2087 = vadd.f32 %v1971, %v2086
      %2088 = vmatmul.bf16.gmra.mxu0 %v2052
      %v2089 = vpop.f32.mrf.mxu0
      %v2090 = vadd.f32 %v1974, %v2089
      %v2091 = vpop.f32.mrf.mxu0
      %v2092 = vadd.f32 %v1976, %v2091
      %2093 = vmatmul.bf16.gmra.mxu0 %v2055
      %v2094 = vpop.f32.mrf.mxu0
      %v2095 = vadd.f32 %v1979, %v2094
      %v2096 = vpop.f32.mrf.mxu0
      %v2097 = vadd.f32 %v1981, %v2096
      %2098 = vmatmul.bf16.gmra.mxu0 %v2058
      %v2099 = vpop.f32.mrf.mxu0
      %v2100 = vadd.f32 %v1984, %v2099
      %v2101 = vpop.f32.mrf.mxu0
      %v2102 = vadd.f32 %v1986, %v2101
      %2103 = vmatmul.bf16.gmra.mxu0 %v2061
      %v2104 = vpop.f32.mrf.mxu0
      %v2105 = vadd.f32 %v1989, %v2104
      %v2106 = vpop.f32.mrf.mxu0
      %v2107 = vadd.f32 %v1991, %v2106
      %2108 = vmatmul.bf16.gmra.mxu0 %v2064
      %v2109 = vpop.f32.mrf.mxu0
      %v2110 = vadd.f32 %v1994, %v2109
      %v2111 = vpop.f32.mrf.mxu0
      %v2112 = vadd.f32 %v1996, %v2111
      %2113 = vmatmul.bf16.gmra.mxu0 %v2067
      %v2114 = vpop.f32.mrf.mxu0
      %v2115 = vadd.f32 %v1999, %v2114
      %v2116 = vpop.f32.mrf.mxu0
      %v2117 = vadd.f32 %v2001, %v2116
      %2118 = vmatmul.bf16.gmra.mxu0 %v2070
      %v2119 = vpop.f32.mrf.mxu0
      %v2120 = vadd.f32 %v2004, %v2119
      %v2121 = vpop.f32.mrf.mxu0
      %v2122 = vadd.f32 %v2006, %v2121
      %2123 = vdwg.mxu0
      %s2124 = scalar_lea.vmem %s3, 4
      %v2125 = vld [vmem:[%s2124] sm:$0x3]
      %v2142 = vunpack.c.l.b16 %v1869
      %v2143 = vunpack.c.l.b16 %v1870
      %v2144 = vunpack.c.l.b16 %v1871
      %v2145 = vunpack.c.l.b16 %v1872
      %v2146 = vunpack.c.l.b16 %v1873
      %v2147 = vunpack.c.l.b16 %v1874
      %v2148 = vunpack.c.l.b16 %v1875
      %v2149 = vunpack.c.l.b16 %v1876
      %v2150 = vunpack.c.l.b16 %v1877
      %v2151 = vunpack.c.l.b16 %v1878
      %v2152 = vunpack.c.l.b16 %v1879
      %v2153 = vunpack.c.l.b16 %v1880
      %v2154 = vunpack.c.l.b16 %v1881
      %v2155 = vunpack.c.l.b16 %v1882
      %v2156 = vunpack.c.l.b16 %v1883
      %v2157 = vunpack.c.l.b16 %v1884
      %v2158 = vpack.c.b16 %v2143, %v2142
      %v2159 = vpack.c.b16 %v2145, %v2144
      %v2160 = vpack.c.b16 %v2147, %v2146
      %v2161 = vpack.c.b16 %v2149, %v2148
      %v2162 = vpack.c.b16 %v2151, %v2150
      %v2163 = vpack.c.b16 %v2153, %v2152
      %v2164 = vpack.c.b16 %v2155, %v2154
      %v2165 = vpack.c.b16 %v2157, %v2156
      %v2167 = vsel %vm633, %v2158, 0
      %v2170 = vsel %vm633, %v2159, 0
      %v2173 = vsel %vm633, %v2160, 0
      %v2176 = vsel %vm633, %v2161, 0
      %v2179 = vsel %vm633, %v2162, 0
      %v2182 = vsel %vm633, %v2163, 0
      %v2185 = vsel %vm633, %v2164, 0
      %v2188 = vsel %vm633, %v2165, 0
      %v2191 = vsel %vm664, %v2125, 0
      %2193 = vmatpush.bf16.msra.mxu0 0
      %2194 = vmatpush.bf16.msra.mxu0 0
      %2195 = vmatpush.bf16.msra.mxu0 0
      %2196 = vmatpush.bf16.msra.mxu0 0
      %2197 = vmatpush.bf16.msra.mxu0 0
      %2198 = vmatpush.bf16.msra.mxu0 0
      %2199 = vmatpush.bf16.msra.mxu0 0
      %2200 = vmatpush.bf16.msra.mxu0 %v2191
      %2201 = vmatmul.bf16.gmra.mxu0 %v2167
      %v2202 = vpop.f32.mrf.mxu0
      %v2203 = vadd.f32 0.0, %v2202
      %v2204 = vpop.f32.mrf.mxu0
      %v2205 = vadd.f32 0.0, %v2204
      %2206 = vmatmul.bf16.gmra.mxu0 %v2170
      %v2207 = vpop.f32.mrf.mxu0
      %v2208 = vadd.f32 0.0, %v2207
      %v2209 = vpop.f32.mrf.mxu0
      %v2210 = vadd.f32 0.0, %v2209
      %2211 = vmatmul.bf16.gmra.mxu0 %v2173
      %v2212 = vpop.f32.mrf.mxu0
      %v2213 = vadd.f32 0.0, %v2212
      %v2214 = vpop.f32.mrf.mxu0
      %v2215 = vadd.f32 0.0, %v2214
      %2216 = vmatmul.bf16.gmra.mxu0 %v2176
      %v2217 = vpop.f32.mrf.mxu0
      %v2218 = vadd.f32 0.0, %v2217
      %v2219 = vpop.f32.mrf.mxu0
      %v2220 = vadd.f32 0.0, %v2219
      %2221 = vmatmul.bf16.gmra.mxu0 %v2179
      %v2222 = vpop.f32.mrf.mxu0
      %v2223 = vadd.f32 0.0, %v2222
      %v2224 = vpop.f32.mrf.mxu0
      %v2225 = vadd.f32 0.0, %v2224
      %2226 = vmatmul.bf16.gmra.mxu0 %v2182
      %v2227 = vpop.f32.mrf.mxu0
      %v2228 = vadd.f32 0.0, %v2227
      %v2229 = vpop.f32.mrf.mxu0
      %v2230 = vadd.f32 0.0, %v2229
      %2231 = vmatmul.bf16.gmra.mxu0 %v2185
      %v2232 = vpop.f32.mrf.mxu0
      %v2233 = vadd.f32 0.0, %v2232
      %v2234 = vpop.f32.mrf.mxu0
      %v2235 = vadd.f32 0.0, %v2234
      %2236 = vmatmul.bf16.gmra.mxu0 %v2188
      %v2237 = vpop.f32.mrf.mxu0
      %v2238 = vadd.f32 0.0, %v2237
      %v2239 = vpop.f32.mrf.mxu0
      %v2240 = vadd.f32 0.0, %v2239
      %2241 = vdwg.mxu0
      %v2242 = vadd.f32 %v2085, %v2203
      %v2243 = vadd.f32 %v2087, %v2205
      %v2244 = vadd.f32 %v2090, %v2208
      %v2245 = vadd.f32 %v2092, %v2210
      %v2246 = vadd.f32 %v2095, %v2213
      %v2247 = vadd.f32 %v2097, %v2215
      %v2248 = vadd.f32 %v2100, %v2218
      %v2249 = vadd.f32 %v2102, %v2220
      %v2250 = vadd.f32 %v2105, %v2223
      %v2251 = vadd.f32 %v2107, %v2225
      %v2252 = vadd.f32 %v2110, %v2228
      %v2253 = vadd.f32 %v2112, %v2230
      %v2254 = vadd.f32 %v2115, %v2233
      %v2255 = vadd.f32 %v2117, %v2235
      %v2256 = vadd.f32 %v2120, %v2238
      %v2257 = vadd.f32 %v2122, %v2240
      %s2258 = scalar_lea.vmem %s3, 6
      %v2259 = vld [vmem:[%s2258] sm:$0x3]
      %v2262 = vunpack.c.l.b16 %v1845
      %v2263 = vunpack.c.l.b16 %v1846
      %v2264 = vpack.c.b16 %v2263, %v2262
      %v2266 = vsel %vm633, %v2264, 0
      %v2269 = vsel %vm664, %v2259, 0
      %2271 = vmatpush.bf16.msra.mxu0 0
      %2272 = vmatpush.bf16.msra.mxu0 0
      %2273 = vmatpush.bf16.msra.mxu0 0
      %2274 = vmatpush.bf16.msra.mxu0 0
      %2275 = vmatpush.bf16.msra.mxu0 0
      %2276 = vmatpush.bf16.msra.mxu0 0
      %2277 = vmatpush.bf16.msra.mxu0 0
      %2278 = vmatpush.bf16.msra.mxu0 %v2269
      %2279 = vmatmul.bf16.gmra.mxu0 %v2052
      %v2280 = vpop.f32.mrf.mxu0
      %v2281 = vadd.f32 0.0, %v2280
      %v2282 = vpop.f32.mrf.mxu0
      %v2283 = vadd.f32 0.0, %v2282
      %2284 = vmatmul.bf16.gmra.mxu0 %v2055
      %v2285 = vpop.f32.mrf.mxu0
      %v2286 = vadd.f32 0.0, %v2285
      %v2287 = vpop.f32.mrf.mxu0
      %v2288 = vadd.f32 0.0, %v2287
      %2289 = vmatmul.bf16.gmra.mxu0 %v2058
      %v2290 = vpop.f32.mrf.mxu0
      %v2291 = vadd.f32 0.0, %v2290
      %v2292 = vpop.f32.mrf.mxu0
      %v2293 = vadd.f32 0.0, %v2292
      %2294 = vmatmul.bf16.gmra.mxu0 %v2061
      %v2295 = vpop.f32.mrf.mxu0
      %v2296 = vadd.f32 0.0, %v2295
      %v2297 = vpop.f32.mrf.mxu0
      %v2298 = vadd.f32 0.0, %v2297
      %2299 = vmatmul.bf16.gmra.mxu0 %v2064
      %v2300 = vpop.f32.mrf.mxu0
      %v2301 = vadd.f32 0.0, %v2300
      %v2302 = vpop.f32.mrf.mxu0
      %v2303 = vadd.f32 0.0, %v2302
      %2304 = vmatmul.bf16.gmra.mxu0 %v2067
      %v2305 = vpop.f32.mrf.mxu0
      %v2306 = vadd.f32 0.0, %v2305
      %v2307 = vpop.f32.mrf.mxu0
      %v2308 = vadd.f32 0.0, %v2307
      %2309 = vmatmul.bf16.gmra.mxu0 %v2070
      %v2310 = vpop.f32.mrf.mxu0
      %v2311 = vadd.f32 0.0, %v2310
      %v2312 = vpop.f32.mrf.mxu0
      %v2313 = vadd.f32 0.0, %v2312
      %2314 = vmatmul.bf16.gmra.mxu0 %v2266
      %v2315 = vpop.f32.mrf.mxu0
      %v2316 = vadd.f32 0.0, %v2315
      %v2317 = vpop.f32.mrf.mxu0
      %v2318 = vadd.f32 0.0, %v2317
      %2319 = vdwg.mxu0
      %v2320 = vadd.f32 %v2242, %v2281
      %v2321 = vadd.f32 %v2243, %v2283
      %v2322 = vadd.f32 %v2244, %v2286
      %v2323 = vadd.f32 %v2245, %v2288
      %v2324 = vadd.f32 %v2246, %v2291
      %v2325 = vadd.f32 %v2247, %v2293
      %v2326 = vadd.f32 %v2248, %v2296
      %v2327 = vadd.f32 %v2249, %v2298
      %v2328 = vadd.f32 %v2250, %v2301
      %v2329 = vadd.f32 %v2251, %v2303
      %v2330 = vadd.f32 %v2252, %v2306
      %v2331 = vadd.f32 %v2253, %v2308
      %v2332 = vadd.f32 %v2254, %v2311
      %v2333 = vadd.f32 %v2255, %v2313
      %v2334 = vadd.f32 %v2256, %v2316
      %v2335 = vadd.f32 %v2257, %v2318
      %s2336 = scalar_lea.vmem %s3, 8
      %v2337 = vld [vmem:[%s2336] sm:$0x3]
      %v2340 = vunpack.c.l.b16 %v1865
      %v2341 = vunpack.c.l.b16 %v1866
      %v2342 = vpack.c.b16 %v2341, %v2340
      %v2344 = vsel %vm633, %v2342, 0
      %v2347 = vsel %vm664, %v2337, 0
      %2349 = vmatpush.bf16.msra.mxu0 0
      %2350 = vmatpush.bf16.msra.mxu0 0
      %2351 = vmatpush.bf16.msra.mxu0 0
      %2352 = vmatpush.bf16.msra.mxu0 0
      %2353 = vmatpush.bf16.msra.mxu0 0
      %2354 = vmatpush.bf16.msra.mxu0 0
      %2355 = vmatpush.bf16.msra.mxu0 0
      %2356 = vmatpush.bf16.msra.mxu0 %v2347
      %2357 = vmatmul.bf16.gmra.mxu0 %v1936
      %v2358 = vpop.f32.mrf.mxu0
      %v2359 = vadd.f32 0.0, %v2358
      %v2360 = vpop.f32.mrf.mxu0
      %v2361 = vadd.f32 0.0, %v2360
      %2362 = vmatmul.bf16.gmra.mxu0 %v1939
      %v2363 = vpop.f32.mrf.mxu0
      %v2364 = vadd.f32 0.0, %v2363
      %v2365 = vpop.f32.mrf.mxu0
      %v2366 = vadd.f32 0.0, %v2365
      %2367 = vmatmul.bf16.gmra.mxu0 %v1942
      %v2368 = vpop.f32.mrf.mxu0
      %v2369 = vadd.f32 0.0, %v2368
      %v2370 = vpop.f32.mrf.mxu0
      %v2371 = vadd.f32 0.0, %v2370
      %2372 = vmatmul.bf16.gmra.mxu0 %v1945
      %v2373 = vpop.f32.mrf.mxu0
      %v2374 = vadd.f32 0.0, %v2373
      %v2375 = vpop.f32.mrf.mxu0
      %v2376 = vadd.f32 0.0, %v2375
      %2377 = vmatmul.bf16.gmra.mxu0 %v1948
      %v2378 = vpop.f32.mrf.mxu0
      %v2379 = vadd.f32 0.0, %v2378
      %v2380 = vpop.f32.mrf.mxu0
      %v2381 = vadd.f32 0.0, %v2380
      %2382 = vmatmul.bf16.gmra.mxu0 %v1951
      %v2383 = vpop.f32.mrf.mxu0
      %v2384 = vadd.f32 0.0, %v2383
      %v2385 = vpop.f32.mrf.mxu0
      %v2386 = vadd.f32 0.0, %v2385
      %2387 = vmatmul.bf16.gmra.mxu0 %v1954
      %v2388 = vpop.f32.mrf.mxu0
      %v2389 = vadd.f32 0.0, %v2388
      %v2390 = vpop.f32.mrf.mxu0
      %v2391 = vadd.f32 0.0, %v2390
      %2392 = vmatmul.bf16.gmra.mxu0 %v2344
      %v2393 = vpop.f32.mrf.mxu0
      %v2394 = vadd.f32 0.0, %v2393
      %v2395 = vpop.f32.mrf.mxu0
      %v2396 = vadd.f32 0.0, %v2395
      %2397 = vdwg.mxu0
      %v2398 = vadd.f32 %v2320, %v2359
      %v2399 = vadd.f32 %v2321, %v2361
      %v2400 = vadd.f32 %v2322, %v2364
      %v2401 = vadd.f32 %v2323, %v2366
      %v2402 = vadd.f32 %v2324, %v2369
      %v2403 = vadd.f32 %v2325, %v2371
      %v2404 = vadd.f32 %v2326, %v2374
      %v2405 = vadd.f32 %v2327, %v2376
      %v2406 = vadd.f32 %v2328, %v2379
      %v2407 = vadd.f32 %v2329, %v2381
      %v2408 = vadd.f32 %v2330, %v2384
      %v2409 = vadd.f32 %v2331, %v2386
      %v2410 = vadd.f32 %v2332, %v2389
      %v2411 = vadd.f32 %v2333, %v2391
      %v2412 = vadd.f32 %v2334, %v2394
      %v2413 = vadd.f32 %v2335, %v2396
      %s2414 = scalar_lea.vmem %s3, 10
      %v2415 = vld [vmem:[%s2414] sm:$0x3]
      %v2418 = vunpack.c.l.b16 %v1885
      %v2419 = vunpack.c.l.b16 %v1886
      %v2420 = vpack.c.b16 %v2419, %v2418
      %v2422 = vsel %vm633, %v2420, 0
      %v2425 = vsel %vm664, %v2415, 0
      %2427 = vmatpush.bf16.msra.mxu0 0
      %2428 = vmatpush.bf16.msra.mxu0 0
      %2429 = vmatpush.bf16.msra.mxu0 0
      %2430 = vmatpush.bf16.msra.mxu0 0
      %2431 = vmatpush.bf16.msra.mxu0 0
      %2432 = vmatpush.bf16.msra.mxu0 0
      %2433 = vmatpush.bf16.msra.mxu0 0
      %2434 = vmatpush.bf16.msra.mxu0 %v2425
      %2435 = vmatmul.bf16.gmra.mxu0 %v2170
      %v2436 = vpop.f32.mrf.mxu0
      %v2437 = vadd.f32 0.0, %v2436
      %v2438 = vpop.f32.mrf.mxu0
      %v2439 = vadd.f32 0.0, %v2438
      %2440 = vmatmul.bf16.gmra.mxu0 %v2173
      %v2441 = vpop.f32.mrf.mxu0
      %v2442 = vadd.f32 0.0, %v2441
      %v2443 = vpop.f32.mrf.mxu0
      %v2444 = vadd.f32 0.0, %v2443
      %2445 = vmatmul.bf16.gmra.mxu0 %v2176
      %v2446 = vpop.f32.mrf.mxu0
      %v2447 = vadd.f32 0.0, %v2446
      %v2448 = vpop.f32.mrf.mxu0
      %v2449 = vadd.f32 0.0, %v2448
      %2450 = vmatmul.bf16.gmra.mxu0 %v2179
      %v2451 = vpop.f32.mrf.mxu0
      %v2452 = vadd.f32 0.0, %v2451
      %v2453 = vpop.f32.mrf.mxu0
      %v2454 = vadd.f32 0.0, %v2453
      %2455 = vmatmul.bf16.gmra.mxu0 %v2182
      %v2456 = vpop.f32.mrf.mxu0
      %v2457 = vadd.f32 0.0, %v2456
      %v2458 = vpop.f32.mrf.mxu0
      %v2459 = vadd.f32 0.0, %v2458
      %2460 = vmatmul.bf16.gmra.mxu0 %v2185
      %v2461 = vpop.f32.mrf.mxu0
      %v2462 = vadd.f32 0.0, %v2461
      %v2463 = vpop.f32.mrf.mxu0
      %v2464 = vadd.f32 0.0, %v2463
      %2465 = vmatmul.bf16.gmra.mxu0 %v2188
      %v2466 = vpop.f32.mrf.mxu0
      %v2467 = vadd.f32 0.0, %v2466
      %v2468 = vpop.f32.mrf.mxu0
      %v2469 = vadd.f32 0.0, %v2468
      %2470 = vmatmul.bf16.gmra.mxu0 %v2422
      %v2471 = vpop.f32.mrf.mxu0
      %v2472 = vadd.f32 0.0, %v2471
      %v2473 = vpop.f32.mrf.mxu0
      %v2474 = vadd.f32 0.0, %v2473
      %2475 = vdwg.mxu0
      %v2476 = vadd.f32 %v2398, %v2437
      %v2477 = vadd.f32 %v2399, %v2439
      %v2478 = vadd.f32 %v2400, %v2442
      %v2479 = vadd.f32 %v2401, %v2444
      %v2480 = vadd.f32 %v2402, %v2447
      %v2481 = vadd.f32 %v2403, %v2449
      %v2482 = vadd.f32 %v2404, %v2452
      %v2483 = vadd.f32 %v2405, %v2454
      %v2484 = vadd.f32 %v2406, %v2457
      %v2485 = vadd.f32 %v2407, %v2459
      %v2486 = vadd.f32 %v2408, %v2462
      %v2487 = vadd.f32 %v2409, %v2464
      %v2488 = vadd.f32 %v2410, %v2467
      %v2489 = vadd.f32 %v2411, %v2469
      %v2490 = vadd.f32 %v2412, %v2472
      %v2491 = vadd.f32 %v2413, %v2474
      %s2492 = scalar_lea.vmem %s3, 12
      %v2493 = vld [vmem:[%s2492] sm:$0x3]
      %v2496 = vunpack.c.l.b16 %v1847
      %v2497 = vunpack.c.l.b16 %v1848
      %v2498 = vpack.c.b16 %v2497, %v2496
      %v2500 = vsel %vm633, %v2498, 0
      %v2503 = vsel %vm664, %v2493, 0
      %2505 = vmatpush.bf16.msra.mxu0 0
      %2506 = vmatpush.bf16.msra.mxu0 0
      %2507 = vmatpush.bf16.msra.mxu0 0
      %2508 = vmatpush.bf16.msra.mxu0 0
      %2509 = vmatpush.bf16.msra.mxu0 0
      %2510 = vmatpush.bf16.msra.mxu0 0
      %2511 = vmatpush.bf16.msra.mxu0 0
      %2512 = vmatpush.bf16.msra.mxu0 %v2503
      %2513 = vmatmul.bf16.gmra.mxu0 %v2055
      %v2514 = vpop.f32.mrf.mxu0
      %v2515 = vadd.f32 0.0, %v2514
      %v2516 = vpop.f32.mrf.mxu0
      %v2517 = vadd.f32 0.0, %v2516
      %2518 = vmatmul.bf16.gmra.mxu0 %v2058
      %v2519 = vpop.f32.mrf.mxu0
      %v2520 = vadd.f32 0.0, %v2519
      %v2521 = vpop.f32.mrf.mxu0
      %v2522 = vadd.f32 0.0, %v2521
      %2523 = vmatmul.bf16.gmra.mxu0 %v2061
      %v2524 = vpop.f32.mrf.mxu0
      %v2525 = vadd.f32 0.0, %v2524
      %v2526 = vpop.f32.mrf.mxu0
      %v2527 = vadd.f32 0.0, %v2526
      %2528 = vmatmul.bf16.gmra.mxu0 %v2064
      %v2529 = vpop.f32.mrf.mxu0
      %v2530 = vadd.f32 0.0, %v2529
      %v2531 = vpop.f32.mrf.mxu0
      %v2532 = vadd.f32 0.0, %v2531
      %2533 = vmatmul.bf16.gmra.mxu0 %v2067
      %v2534 = vpop.f32.mrf.mxu0
      %v2535 = vadd.f32 0.0, %v2534
      %v2536 = vpop.f32.mrf.mxu0
      %v2537 = vadd.f32 0.0, %v2536
      %2538 = vmatmul.bf16.gmra.mxu0 %v2070
      %v2539 = vpop.f32.mrf.mxu0
      %v2540 = vadd.f32 0.0, %v2539
      %v2541 = vpop.f32.mrf.mxu0
      %v2542 = vadd.f32 0.0, %v2541
      %2543 = vmatmul.bf16.gmra.mxu0 %v2266
      %v2544 = vpop.f32.mrf.mxu0
      %v2545 = vadd.f32 0.0, %v2544
      %v2546 = vpop.f32.mrf.mxu0
      %v2547 = vadd.f32 0.0, %v2546
      %2548 = vmatmul.bf16.gmra.mxu0 %v2500
      %v2549 = vpop.f32.mrf.mxu0
      %v2550 = vadd.f32 0.0, %v2549
      %v2551 = vpop.f32.mrf.mxu0
      %v2552 = vadd.f32 0.0, %v2551
      %2553 = vdwg.mxu0
      %v2554 = vadd.f32 %v2476, %v2515
      %v2555 = vadd.f32 %v2477, %v2517
      %v2556 = vadd.f32 %v2478, %v2520
      %v2557 = vadd.f32 %v2479, %v2522
      %v2558 = vadd.f32 %v2480, %v2525
      %v2559 = vadd.f32 %v2481, %v2527
      %v2560 = vadd.f32 %v2482, %v2530
      %v2561 = vadd.f32 %v2483, %v2532
      %v2562 = vadd.f32 %v2484, %v2535
      %v2563 = vadd.f32 %v2485, %v2537
      %v2564 = vadd.f32 %v2486, %v2540
      %v2565 = vadd.f32 %v2487, %v2542
      %v2566 = vadd.f32 %v2488, %v2545
      %v2567 = vadd.f32 %v2489, %v2547
      %v2568 = vadd.f32 %v2490, %v2550
      %v2569 = vadd.f32 %v2491, %v2552
      %s2570 = scalar_lea.vmem %s3, 14
      %v2571 = vld [vmem:[%s2570] sm:$0x3]
      %v2574 = vunpack.c.l.b16 %v1867
      %v2575 = vunpack.c.l.b16 %v1868
      %v2576 = vpack.c.b16 %v2575, %v2574
      %v2578 = vsel %vm633, %v2576, 0
      %v2581 = vsel %vm664, %v2571, 0
      %2583 = vmatpush.bf16.msra.mxu0 0
      %2584 = vmatpush.bf16.msra.mxu0 0
      %2585 = vmatpush.bf16.msra.mxu0 0
      %2586 = vmatpush.bf16.msra.mxu0 0
      %2587 = vmatpush.bf16.msra.mxu0 0
      %2588 = vmatpush.bf16.msra.mxu0 0
      %2589 = vmatpush.bf16.msra.mxu0 0
      %2590 = vmatpush.bf16.msra.mxu0 %v2581
      %2591 = vmatmul.bf16.gmra.mxu0 %v1939
      %v2592 = vpop.f32.mrf.mxu0
      %v2593 = vadd.f32 0.0, %v2592
      %v2594 = vpop.f32.mrf.mxu0
      %v2595 = vadd.f32 0.0, %v2594
      %2596 = vmatmul.bf16.gmra.mxu0 %v1942
      %v2597 = vpop.f32.mrf.mxu0
      %v2598 = vadd.f32 0.0, %v2597
      %v2599 = vpop.f32.mrf.mxu0
      %v2600 = vadd.f32 0.0, %v2599
      %2601 = vmatmul.bf16.gmra.mxu0 %v1945
      %v2602 = vpop.f32.mrf.mxu0
      %v2603 = vadd.f32 0.0, %v2602
      %v2604 = vpop.f32.mrf.mxu0
      %v2605 = vadd.f32 0.0, %v2604
      %2606 = vmatmul.bf16.gmra.mxu0 %v1948
      %v2607 = vpop.f32.mrf.mxu0
      %v2608 = vadd.f32 0.0, %v2607
      %v2609 = vpop.f32.mrf.mxu0
      %v2610 = vadd.f32 0.0, %v2609
      %2611 = vmatmul.bf16.gmra.mxu0 %v1951
      %v2612 = vpop.f32.mrf.mxu0
      %v2613 = vadd.f32 0.0, %v2612
      %v2614 = vpop.f32.mrf.mxu0
      %v2615 = vadd.f32 0.0, %v2614
      %2616 = vmatmul.bf16.gmra.mxu0 %v1954
      %v2617 = vpop.f32.mrf.mxu0
      %v2618 = vadd.f32 0.0, %v2617
      %v2619 = vpop.f32.mrf.mxu0
      %v2620 = vadd.f32 0.0, %v2619
      %2621 = vmatmul.bf16.gmra.mxu0 %v2344
      %v2622 = vpop.f32.mrf.mxu0
      %v2623 = vadd.f32 0.0, %v2622
      %v2624 = vpop.f32.mrf.mxu0
      %v2625 = vadd.f32 0.0, %v2624
      %2626 = vmatmul.bf16.gmra.mxu0 %v2578
      %v2627 = vpop.f32.mrf.mxu0
      %v2628 = vadd.f32 0.0, %v2627
      %v2629 = vpop.f32.mrf.mxu0
      %v2630 = vadd.f32 0.0, %v2629
      %2631 = vdwg.mxu0
      %v2632 = vadd.f32 %v2554, %v2593
      %v2633 = vadd.f32 %v2555, %v2595
      %v2634 = vadd.f32 %v2556, %v2598
      %v2635 = vadd.f32 %v2557, %v2600
      %v2636 = vadd.f32 %v2558, %v2603
      %v2637 = vadd.f32 %v2559, %v2605
      %v2638 = vadd.f32 %v2560, %v2608
      %v2639 = vadd.f32 %v2561, %v2610
      %v2640 = vadd.f32 %v2562, %v2613
      %v2641 = vadd.f32 %v2563, %v2615
      %v2642 = vadd.f32 %v2564, %v2618
      %v2643 = vadd.f32 %v2565, %v2620
      %v2644 = vadd.f32 %v2566, %v2623
      %v2645 = vadd.f32 %v2567, %v2625
      %v2646 = vadd.f32 %v2568, %v2628
      %v2647 = vadd.f32 %v2569, %v2630
      %s2648 = scalar_lea.vmem %s3, 16
      %v2649 = vld [vmem:[%s2648] sm:$0x3]
      %v2652 = vunpack.c.l.b16 %v1887
      %v2653 = vunpack.c.l.b16 %v1888
      %v2654 = vpack.c.b16 %v2653, %v2652
      %v2656 = vsel %vm633, %v2654, 0
      %v2659 = vsel %vm664, %v2649, 0
      %2661 = vmatpush.bf16.msra.mxu0 0
      %2662 = vmatpush.bf16.msra.mxu0 0
      %2663 = vmatpush.bf16.msra.mxu0 0
      %2664 = vmatpush.bf16.msra.mxu0 0
      %2665 = vmatpush.bf16.msra.mxu0 0
      %2666 = vmatpush.bf16.msra.mxu0 0
      %2667 = vmatpush.bf16.msra.mxu0 0
      %2668 = vmatpush.bf16.msra.mxu0 %v2659
      %2669 = vmatmul.bf16.gmra.mxu0 %v2173
      %v2670 = vpop.f32.mrf.mxu0
      %v2671 = vadd.f32 0.0, %v2670
      %v2672 = vpop.f32.mrf.mxu0
      %v2673 = vadd.f32 0.0, %v2672
      %2674 = vmatmul.bf16.gmra.mxu0 %v2176
      %v2675 = vpop.f32.mrf.mxu0
      %v2676 = vadd.f32 0.0, %v2675
      %v2677 = vpop.f32.mrf.mxu0
      %v2678 = vadd.f32 0.0, %v2677
      %2679 = vmatmul.bf16.gmra.mxu0 %v2179
      %v2680 = vpop.f32.mrf.mxu0
      %v2681 = vadd.f32 0.0, %v2680
      %v2682 = vpop.f32.mrf.mxu0
      %v2683 = vadd.f32 0.0, %v2682
      %2684 = vmatmul.bf16.gmra.mxu0 %v2182
      %v2685 = vpop.f32.mrf.mxu0
      %v2686 = vadd.f32 0.0, %v2685
      %v2687 = vpop.f32.mrf.mxu0
      %v2688 = vadd.f32 0.0, %v2687
      %2689 = vmatmul.bf16.gmra.mxu0 %v2185
      %v2690 = vpop.f32.mrf.mxu0
      %v2691 = vadd.f32 0.0, %v2690
      %v2692 = vpop.f32.mrf.mxu0
      %v2693 = vadd.f32 0.0, %v2692
      %2694 = vmatmul.bf16.gmra.mxu0 %v2188
      %v2695 = vpop.f32.mrf.mxu0
      %v2696 = vadd.f32 0.0, %v2695
      %v2697 = vpop.f32.mrf.mxu0
      %v2698 = vadd.f32 0.0, %v2697
      %2699 = vmatmul.bf16.gmra.mxu0 %v2422
      %v2700 = vpop.f32.mrf.mxu0
      %v2701 = vadd.f32 0.0, %v2700
      %v2702 = vpop.f32.mrf.mxu0
      %v2703 = vadd.f32 0.0, %v2702
      %2704 = vmatmul.bf16.gmra.mxu0 %v2656
      %v2705 = vpop.f32.mrf.mxu0
      %v2706 = vadd.f32 0.0, %v2705
      %v2707 = vpop.f32.mrf.mxu0
      %v2708 = vadd.f32 0.0, %v2707
      %2709 = vdwg.mxu0
      %v2710 = vadd.f32 %v2632, %v2671
      %v2711 = vadd.f32 %v2633, %v2673
      %v2712 = vadd.f32 %v2634, %v2676
      %v2713 = vadd.f32 %v2635, %v2678
      %v2714 = vadd.f32 %v2636, %v2681
      %v2715 = vadd.f32 %v2637, %v2683
      %v2716 = vadd.f32 %v2638, %v2686
      %v2717 = vadd.f32 %v2639, %v2688
      %v2718 = vadd.f32 %v2640, %v2691
      %v2719 = vadd.f32 %v2641, %v2693
      %v2720 = vadd.f32 %v2642, %v2696
      %v2721 = vadd.f32 %v2643, %v2698
      %v2722 = vadd.f32 %v2644, %v2701
      %v2723 = vadd.f32 %v2645, %v2703
      %v2724 = vadd.f32 %v2646, %v2706
      %v2725 = vadd.f32 %v2647, %v2708
      %v2726 = vld [vmem:[%s4] sm:$0x1]
      %v2728 = vperm.slane %v2726, 0
      %v2730 = vadd.f32 %v2710, %v2728
      %v2731 = vadd.f32 %v2711, %v2728
      %v2732 = vadd.f32 %v2712, %v2728
      %v2733 = vadd.f32 %v2713, %v2728
      %v2734 = vadd.f32 %v2714, %v2728
      %v2735 = vadd.f32 %v2715, %v2728
      %v2736 = vadd.f32 %v2716, %v2728
      %v2737 = vadd.f32 %v2717, %v2728
      %v2738 = vadd.f32 %v2718, %v2728
      %v2739 = vadd.f32 %v2719, %v2728
      %v2740 = vadd.f32 %v2720, %v2728
      %v2741 = vadd.f32 %v2721, %v2728
      %v2742 = vadd.f32 %v2722, %v2728
      %v2743 = vadd.f32 %v2723, %v2728
      %v2744 = vadd.f32 %v2724, %v2728
      %v2745 = vadd.f32 %v2725, %v2728
      %v2746 = vadd.f32 %v2730, %v358
      %v2747 = vadd.f32 %v2731, %v359
      %v2748 = vadd.f32 %v2732, %v360
      %v2749 = vadd.f32 %v2733, %v361
      %v2750 = vadd.f32 %v2734, %v362
      %v2751 = vadd.f32 %v2735, %v363
      %v2752 = vadd.f32 %v2736, %v364
      %v2753 = vadd.f32 %v2737, %v365
      %v2754 = vadd.f32 %v2738, %v366
      %v2755 = vadd.f32 %v2739, %v367
      %v2756 = vadd.f32 %v2740, %v368
      %v2757 = vadd.f32 %v2741, %v369
      %v2758 = vadd.f32 %v2742, %v370
      %v2759 = vadd.f32 %v2743, %v371
      %v2760 = vadd.f32 %v2744, %v372
      %v2761 = vadd.f32 %v2745, %v373
      %v2762 = vmax.f32 %v2746, 0.0
      %v2763 = vmax.f32 %v2747, 0.0
      %v2764 = vmax.f32 %v2748, 0.0
      %v2765 = vmax.f32 %v2749, 0.0
      %v2766 = vmax.f32 %v2750, 0.0
      %v2767 = vmax.f32 %v2751, 0.0
      %v2768 = vmax.f32 %v2752, 0.0
      %v2769 = vmax.f32 %v2753, 0.0
      %v2770 = vmax.f32 %v2754, 0.0
      %v2771 = vmax.f32 %v2755, 0.0
      %v2772 = vmax.f32 %v2756, 0.0
      %v2773 = vmax.f32 %v2757, 0.0
      %v2774 = vmax.f32 %v2758, 0.0
      %v2775 = vmax.f32 %v2759, 0.0
      %v2776 = vmax.f32 %v2760, 0.0
      %v2777 = vmax.f32 %v2761, 0.0
      %2778 = vst.msk [vmem:[%s248] sm:$0xff] %vm633, %v2762
      %2779 = vst.msk [vmem:[%s248 + $0x8] sm:$0xff] %vm633, %v2763
      %2780 = vst.msk [vmem:[%s248 + $0x10] sm:$0xff] %vm633, %v2764
      %2781 = vst.msk [vmem:[%s248 + $0x18] sm:$0xff] %vm633, %v2765
      %2782 = vst.msk [vmem:[%s248 + $0x20] sm:$0xff] %vm633, %v2766
      %2783 = vst.msk [vmem:[%s248 + $0x28] sm:$0xff] %vm633, %v2767
      %2784 = vst.msk [vmem:[%s248 + $0x30] sm:$0xff] %vm633, %v2768
      %2785 = vst.msk [vmem:[%s248 + $0x38] sm:$0xff] %vm633, %v2769
      %2786 = vst.msk [vmem:[%s248 + $0x40] sm:$0xff] %vm633, %v2770
      %2787 = vst.msk [vmem:[%s248 + $0x48] sm:$0xff] %vm633, %v2771
      %2788 = vst.msk [vmem:[%s248 + $0x50] sm:$0xff] %vm633, %v2772
      %2789 = vst.msk [vmem:[%s248 + $0x58] sm:$0xff] %vm633, %v2773
      %2790 = vst.msk [vmem:[%s248 + $0x60] sm:$0xff] %vm633, %v2774
      %2791 = vst.msk [vmem:[%s248 + $0x68] sm:$0xff] %vm633, %v2775
      %2792 = vst.msk [vmem:[%s248 + $0x70] sm:$0xff] %vm633, %v2776
      %2793 = vst.msk [vmem:[%s248 + $0x78] sm:$0xff] %vm633, %v2777
      %s2794 = smul.u32 8, %s21
      %p2795 = scmp.lt.s32.totalorder %s20, 1
      %s2796 = scalar_select %p2795, %s20, 1
      %p2797 = scmp.lt.s32.totalorder %s2794, 15
      %s2798 = scalar_select %p2797, %s2794, 15
      %s2799 = smul.addr %s2798, 2
      %s2800 = smul.addr %s2796, 32
      %s2801 = sadd.s32 %s2799, %s2800
      %s2802 = smul.addr %s2801, 8
      %s2803 = scalar_lea.vmem %s5, %s2802
      // Predicated region
      $region41: #{tpu_custom_call.1} parent=39 // pred_check
        %p2804 = pneg %p158
      $region42: #{tpu_custom_call.1} parent=39 // pred_check_branch
        %2806 = sbr.rel (%p2804) target = $region44
      $region43: #{tpu_custom_call.1} parent=39 // pred_region
        %s2807 = smul.u32 8, %s21
      $region44: #{tpu_custom_call.1} parent=39 // pred_fallthru
        _
    $region40: #{tpu_custom_call.1} parent=5 // pred_fallthru
      _
    %p2808 = scmp.le.s32.totalorder 2, %s11
    // Predicated region
    $region45: #{tpu_custom_call.1} parent=5 // pred_check
      %p2809 = pneg %p2808
    $region46: #{tpu_custom_call.1} parent=5 // pred_check_branch
      %2811 = sbr.rel (%p2809) target = $region48
    $region47: #{tpu_custom_call.1} parent=5 // pred_region
      %s2812 = ssub.s32 %s11, 2
      // Predicated region
      $region49: #{tpu_custom_call.1} parent=47 // pred_check
        %p2813 = pneg %p164
      $region50: #{tpu_custom_call.1} parent=47 // pred_check_branch
        %2815 = sbr.rel (%p2813) target = $region52
      $region51: #{tpu_custom_call.1} parent=47 // pred_region
        %s2816 = smul.u32 8, %s23
        %p2817 = scmp.lt.s32.totalorder %s22, 1
        %s2818 = scalar_select %p2817, %s22, 1
        %p2819 = scmp.lt.s32.totalorder %s2816, 15
        %s2820 = scalar_select %p2819, %s2816, 15
        %s2821 = smul.addr %s2820, 2
        %s2822 = smul.addr %s2818, 32
        %s2823 = sadd.s32 %s2821, %s2822
        %s2824 = smul.addr %s2823, 8
        %s2825 = scalar_lea.vmem %s5, %s2824
      $region52: #{tpu_custom_call.1} parent=47 // pred_fallthru
        _
    $region48: #{tpu_custom_call.1} parent=5 // pred_fallthru
      _
  $region6: #{tpu_custom_call.1} parent=0 // loop_footer
    %s15 = sadd.s32 1, %s11
  $region7: #{tpu_custom_call.1} parent=0 // loop_footer_branch
    %10 = sbr.rel target = $region3
  $region8: #{tpu_custom_call.1} parent=0 // loop_exit
    _

// kernel: tpu_custom_call.1
$region0: #{tpu_custom_call.1}
  #allocation0 [shape = 'u32[]', space=smem, size = 0x4, offset = 0x4, fixed_abs, tag = 'smem constant byte address 0x4 - core index']
  #allocation1 [shape = 'u32[72,128]{1,0:T(1,128)}', space=vmem, size = 0x9000, scoped, tag = 'internal scratch']
  %s0 = inlined_call_operand.vmem [shape: bf16[2,16,16,4], index: 0, kind: input, shape index: {}]
  %s1 = inlined_call_operand.vmem [shape: bf16[3,3,4,4], index: 1, kind: input, shape index: {}]
  %s2 = inlined_call_operand.vmem [shape: f32[1,4], index: 2, kind: input, shape index: {}]
  %s3 = inlined_call_operand.vmem [shape: bf16[3,3,4,4], index: 3, kind: input, shape index: {}]
  %s4 = inlined_call_operand.vmem [shape: f32[1,4], index: 4, kind: input, shape index: {}]
  %s5 = inlined_call_operand.vmem [shape: f32[2,16,16,4], index: 5, kind: output, shape index: {}]
  %s6 = sld [smem:[#allocation0]]
  $region53: #{tpu_custom_call.1} parent=0
    _
  %s8 = ssub.s32 1, %s6
  %s9 = scalar_select 0, %s8, %s6
  loop: start=0, step=1, limit=6
  $region2: #{tpu_custom_call.1} parent=0 // loop_pre_header
    _
  $region3: #{tpu_custom_call.1} parent=0 // loop_header
    %s11 = sphi 0, %s15
    %p12 = scmp.ge.s32.totalorder %s11, 6
    %s18 = sphi 0, %s30
    %s19 = sphi 0, %s26
    %s20 = sphi 0, %s18
    %s21 = sphi 0, %s19
    %s22 = sphi 0, %s20
    %s23 = sphi 0, %s21
    %s33 = sphi 0, %s35
    %s36 = sphi 0, %s33
    %s37 = sphi 0, %s36
    %s53 = sphi 0, %s37
    %s57 = sphi 0, %s57
    %s59 = sphi 0, %s57
    %s60 = sphi 0, %s59
    %s74 = sphi 0, %s60
    %s78 = sphi 0, %s78
    %s80 = sphi 0, %s78
    %s81 = sphi 0, %s80
    %s95 = sphi 0, %s81
    %s99 = sphi 0, %s99
    %s101 = sphi 0, %s99
    %s102 = sphi 0, %s101
    %s116 = sphi 0, %s102
    %s120 = sphi 0, %s120
    %s122 = sphi 0, %s120
    %s123 = sphi 0, %s122
    %s137 = sphi 0, %s123
    %s145 = sphi 0, %s147
    %s148 = sphi 0, %s145
    %s149 = sphi 0, %s148
    %s165 = sphi 0, %s149
  $region4: #{tpu_custom_call.1} parent=0 // loop_header_branch
    %14 = sbr.rel (%p12) target = $region8
  $region5: #{tpu_custom_call.1} parent=0 // loop_body
    %s16 = ssub.s32 %s11, 1
    %s17 = ssub.s32 %s11, 2
    %s24 = sadd.s32 1, %s19
    %p25 = scmp.ge.s32.totalorder %s24, 2
    %s26 = scalar_select %p25, 0, %s24
    %s27 = sadd.s32 1, %s18
    %s28 = scalar_select %p25, %s27, %s18
    %p29 = scmp.ge.s32.totalorder %s28, 2
    %s30 = scalar_select %p29, 0, %s28
    %s31 = ssub.s32 %s18, %s30
    %p32 = scmp.eq.s32.totalorder %s31, 0
    %s34 = sadd.s32 %s33, 1
    %s35 = scalar_select %p32, %s33, %s34
    %p38 = pneg %p32
    %p39 = scmp.eq.s32.totalorder %s11, 3
    %p40 = por %p38, %p39
    %p41 = scmp.ne.s32.totalorder %s33, %s36
    %p42 = scmp.eq.s32.totalorder %s11, 0
    %p43 = por %p41, %p42
    %p44 = scmp.ne.s32.totalorder %s33, %s36
    %p45 = scmp.eq.s32.totalorder %s16, 3
    %p46 = por %p44, %p45
    %p47 = scmp.ne.s32.totalorder %s36, %s37
    %p48 = scmp.eq.s32.totalorder %s16, 0
    %p49 = por %p47, %p48
    %p50 = scmp.ne.s32.totalorder %s36, %s37
    %p51 = scmp.eq.s32.totalorder %s17, 3
    %p52 = por %p50, %p51
    %p54 = scmp.ne.s32.totalorder %s37, %s53
    %p55 = scmp.eq.s32.totalorder %s17, 0
    %p56 = por %p54, %p55
    %s58 = sadd.s32 %s57, 1
    %p61 = scmp.eq.s32.totalorder %s11, 3
    %p62 = scmp.ne.s32.totalorder %s57, %s59
    %p63 = scmp.eq.s32.totalorder %s11, 0
    %p64 = por %p62, %p63
    %p65 = scmp.ne.s32.totalorder %s57, %s59
    %p66 = scmp.eq.s32.totalorder %s16, 3
    %p67 = por %p65, %p66
    %p68 = scmp.ne.s32.totalorder %s59, %s60
    %p69 = scmp.eq.s32.totalorder %s16, 0
    %p70 = por %p68, %p69
    %p71 = scmp.ne.s32.totalorder %s59, %s60
    %p72 = scmp.eq.s32.totalorder %s17, 3
    %p73 = por %p71, %p72
    %p75 = scmp.ne.s32.totalorder %s60, %s74
    %p76 = scmp.eq.s32.totalorder %s17, 0
    %p77 = por %p75, %p76
    %s79 = sadd.s32 %s78, 1
    %p82 = scmp.eq.s32.totalorder %s11, 3
    %p83 = scmp.ne.s32.totalorder %s78, %s80
    %p84 = scmp.eq.s32.totalorder %s11, 0
    %p85 = por %p83, %p84
    %p86 = scmp.ne.s32.totalorder %s78, %s80
    %p87 = scmp.eq.s32.totalorder %s16, 3
    %p88 = por %p86, %p87
    %p89 = scmp.ne.s32.totalorder %s80, %s81
    %p90 = scmp.eq.s32.totalorder %s16, 0
    %p91 = por %p89, %p90
    %p92 = scmp.ne.s32.totalorder %s80, %s81
    %p93 = scmp.eq.s32.totalorder %s17, 3
    %p94 = por %p92, %p93
    %p96 = scmp.ne.s32.totalorder %s81, %s95
    %p97 = scmp.eq.s32.totalorder %s17, 0
    %p98 = por %p96, %p97
    %s100 = sadd.s32 %s99, 1
    %p103 = scmp.eq.s32.totalorder %s11, 3
    %p104 = scmp.ne.s32.totalorder %s99, %s101
    %p105 = scmp.eq.s32.totalorder %s11, 0
    %p106 = por %p104, %p105
    %p107 = scmp.ne.s32.totalorder %s99, %s101
    %p108 = scmp.eq.s32.totalorder %s16, 3
    %p109 = por %p107, %p108
    %p110 = scmp.ne.s32.totalorder %s101, %s102
    %p111 = scmp.eq.s32.totalorder %s16, 0
    %p112 = por %p110, %p111
    %p113 = scmp.ne.s32.totalorder %s101, %s102
    %p114 = scmp.eq.s32.totalorder %s17, 3
    %p115 = por %p113, %p114
    %p117 = scmp.ne.s32.totalorder %s102, %s116
    %p118 = scmp.eq.s32.totalorder %s17, 0
    %p119 = por %p117, %p118
    %s121 = sadd.s32 %s120, 1
    %p124 = scmp.eq.s32.totalorder %s11, 3
    %p125 = scmp.ne.s32.totalorder %s120, %s122
    %p126 = scmp.eq.s32.totalorder %s11, 0
    %p127 = por %p125, %p126
    %p128 = scmp.ne.s32.totalorder %s120, %s122
    %p129 = scmp.eq.s32.totalorder %s16, 3
    %p130 = por %p128, %p129
    %p131 = scmp.ne.s32.totalorder %s122, %s123
    %p132 = scmp.eq.s32.totalorder %s16, 0
    %p133 = por %p131, %p132
    %p134 = scmp.ne.s32.totalorder %s122, %s123
    %p135 = scmp.eq.s32.totalorder %s17, 3
    %p136 = por %p134, %p135
    %p138 = scmp.ne.s32.totalorder %s123, %s137
    %p139 = scmp.eq.s32.totalorder %s17, 0
    %p140 = por %p138, %p139
    %s141 = ssub.s32 %s18, %s30
    %s142 = ssub.s32 %s19, %s26
    %s143 = sor.u32 %s141, %s142
    %p144 = scmp.eq.s32.totalorder %s143, 0
    %s146 = sadd.s32 %s145, 1
    %s147 = scalar_select %p144, %s145, %s146
    %p150 = pneg %p144
    %p151 = scmp.eq.s32.totalorder %s11, 3
    %p152 = por %p150, %p151
    %p153 = scmp.ne.s32.totalorder %s145, %s148
    %p154 = scmp.eq.s32.totalorder %s11, 0
    %p155 = por %p153, %p154
    %p156 = scmp.ne.s32.totalorder %s145, %s148
    %p157 = scmp.eq.s32.totalorder %s16, 3
    %p158 = por %p156, %p157
    %p159 = scmp.ne.s32.totalorder %s148, %s149
    %p160 = scmp.eq.s32.totalorder %s16, 0
    %p161 = por %p159, %p160
    %p162 = scmp.ne.s32.totalorder %s148, %s149
    %p163 = scmp.eq.s32.totalorder %s17, 3
    %p164 = por %p162, %p163
    %p166 = scmp.ne.s32.totalorder %s149, %s165
    %p167 = scmp.eq.s32.totalorder %s17, 0
    %p168 = por %p166, %p167
    %p169 = scmp.le.s32.totalorder 1, %s11
    %p170 = scmp.lt.s32.totalorder %s11, 5
    %p171 = pnand %p169, %p170
    %p172 = pneg %p171
    // Predicated region
    $region9: #{tpu_custom_call.1} parent=5 // pred_check
      _
    $region10: #{tpu_custom_call.1} parent=5 // pred_check_branch
      %174 = sbr.rel (%p171) target = $region12
    $region11: #{tpu_custom_call.1} parent=5 // pred_region
      %s175 = ssub.s32 %s11, 1
      // Predicated region
      $region13: #{tpu_custom_call.1} parent=11 // pred_check
        %p176 = pneg %p70
      $region14: #{tpu_custom_call.1} parent=11 // pred_check_branch
        %178 = sbr.rel (%p176) target = $region16
      $region15: #{tpu_custom_call.1} parent=11 // pred_region
        _
      $region16: #{tpu_custom_call.1} parent=11 // pred_fallthru
        _
      // Predicated region
      $region17: #{tpu_custom_call.1} parent=11 // pred_check
        %p179 = pneg %p91
      $region18: #{tpu_custom_call.1} parent=11 // pred_check_branch
        %181 = sbr.rel (%p179) target = $region20
      $region19: #{tpu_custom_call.1} parent=11 // pred_region
        _
      $region20: #{tpu_custom_call.1} parent=11 // pred_fallthru
        _
      // Predicated region
      $region21: #{tpu_custom_call.1} parent=11 // pred_check
        %p182 = pneg %p112
      $region22: #{tpu_custom_call.1} parent=11 // pred_check_branch
        %184 = sbr.rel (%p182) target = $region24
      $region23: #{tpu_custom_call.1} parent=11 // pred_region
        _
      $region24: #{tpu_custom_call.1} parent=11 // pred_fallthru
        _
      // Predicated region
      $region25: #{tpu_custom_call.1} parent=11 // pred_check
        %p185 = pneg %p133
      $region26: #{tpu_custom_call.1} parent=11 // pred_check_branch
        %187 = sbr.rel (%p185) target = $region28
      $region27: #{tpu_custom_call.1} parent=11 // pred_region
        _
      $region28: #{tpu_custom_call.1} parent=11 // pred_fallthru
        _
    $region12: #{tpu_custom_call.1} parent=5 // pred_fallthru
      _
    %p188 = scmp.lt.s32.totalorder %s11, 4
    // Predicated region
    $region29: #{tpu_custom_call.1} parent=5 // pred_check
      %p189 = pneg %p188
    $region30: #{tpu_custom_call.1} parent=5 // pred_check_branch
      %191 = sbr.rel (%p189) target = $region32
    $region31: #{tpu_custom_call.1} parent=5 // pred_region
      // Predicated region
      $region33: #{tpu_custom_call.1} parent=31 // pred_check
        %p192 = pneg %p43
      $region34: #{tpu_custom_call.1} parent=31 // pred_check_branch
        %194 = sbr.rel (%p192) target = $region36
      $region35: #{tpu_custom_call.1} parent=31 // pred_region
        %p195 = scmp.lt.s32.totalorder %s18, 1
        %s196 = scalar_select %p195, %s18, 1
        %s197 = smul.addr %s196, 32
        %s198 = smul.addr %s197, 4
        %s199 = scalar_lea.vmem %s0, %s198
      $region36: #{tpu_custom_call.1} parent=31 // pred_fallthru
        _
    $region32: #{tpu_custom_call.1} parent=5 // pred_fallthru
      _
    %p200 = scmp.le.s32.totalorder 1, %s11
    %p201 = scmp.lt.s32.totalorder %s11, 5
    %p202 = pnand %p200, %p201
    %p203 = pneg %p202
    // Predicated region
    $region37: #{tpu_custom_call.1} parent=5 // pred_check
      _
    $region38: #{tpu_custom_call.1} parent=5 // pred_check_branch
      %205 = sbr.rel (%p202) target = $region40
    $region39: #{tpu_custom_call.1} parent=5 // pred_region
      %s206 = ssub.s32 %s11, 1
      %p207 = scmp.lt.s32.totalorder %s20, 1
      %s208 = scalar_select %p207, %s20, 1
      %s209 = smul.addr %s208, 32
      %s210 = smul.addr %s209, 4
      %s211 = scalar_lea.vmem %s0, %s210
      %p212 = pneg %p49
      %p213 = pneg %p46
      %p214 = pneg %p70
      %p215 = pneg %p67
      %p216 = pneg %p91
      %p217 = pneg %p88
      %p218 = pneg %p112
      %p219 = pneg %p109
      %p220 = pneg %p133
      %p221 = pneg %p130
      %p222 = pneg %p161
      %p223 = pneg %p158
      %s224 = smul.u32 8, %s21
      %p225 = scmp.lt.s32.totalorder %s20, 1
      %s226 = scalar_select %p225, %s20, 1
      %p227 = scmp.lt.s32.totalorder %s224, 15
      %s228 = scalar_select %p227, %s224, 15
      %s229 = smul.addr %s228, 2
      %s230 = smul.addr %s226, 32
      %s231 = sadd.s32 %s229, %s230
      %s232 = smul.addr %s231, 8
      %s233 = scalar_lea.vmem %s5, %s232
      %p234 = scmp.lt.s32.totalorder %s20, 1
      %s235 = scalar_select %p234, %s20, 1
      %s236 = smul.addr %s235, 32
      %s237 = smul.addr %s236, 4
      %s238 = scalar_lea.vmem %s0, %s237
      %s239 = smul.u32 8, %s21
      %p240 = scmp.lt.s32.totalorder %s20, 1
      %s241 = scalar_select %p240, %s20, 1
      %p242 = scmp.lt.s32.totalorder %s239, 15
      %s243 = scalar_select %p242, %s239, 15
      %s244 = smul.addr %s243, 2
      %s245 = smul.addr %s241, 32
      %s246 = sadd.s32 %s244, %s245
      %s247 = smul.addr %s246, 8
      %s248 = scalar_lea.vmem %s5, %s247
      %s249 = smul.u32 8, %s21
      %s251 = smul.u32 %s21, 8
      %v252 = vlaneseq
      %v253 = vshrl.u32 %v252, 7
      %v254 = vadd.s32 %v253, 8
      %vm255 = vcmp.eq.s32.totalorder %v253, 0
      %vm256 = vcmp.eq.s32.totalorder %v254, 0
      %vm257 = vcmp.eq.s32.totalorder %v253, 15
      %vm258 = vcmp.eq.s32.totalorder %v254, 15
      %s259 = smul.u32 %s251, 2
      %s260 = smul.addr %s259, 4
      %s261 = scalar_lea.vmem %s238, %s260
      %v262 = vld [vmem:[%s261] sm:$0xf]
      %v263 = vld [vmem:[%s261 + $0x4] sm:$0xf]
      %v264 = vld [vmem:[%s261 + $0x8] sm:$0xf]
      %v265 = vld [vmem:[%s261 + $0xc] sm:$0xf]
      %v266 = vld [vmem:[%s261 + $0x10] sm:$0xf]
      %v267 = vld [vmem:[%s261 + $0x14] sm:$0xf]
      %v268 = vld [vmem:[%s261 + $0x18] sm:$0xf]
      %v269 = vld [vmem:[%s261 + $0x1c] sm:$0xf]
      %v270 = vld [vmem:[%s261 + $0x20] sm:$0xf]
      %v271 = vld [vmem:[%s261 + $0x24] sm:$0xf]
      %v272 = vld [vmem:[%s261 + $0x28] sm:$0xf]
      %v273 = vld [vmem:[%s261 + $0x2c] sm:$0xf]
      %v274 = vld [vmem:[%s261 + $0x30] sm:$0xf]
      %v275 = vld [vmem:[%s261 + $0x34] sm:$0xf]
      %v276 = vld [vmem:[%s261 + $0x38] sm:$0xf]
      %v277 = vld [vmem:[%s261 + $0x3c] sm:$0xf]
      %s278 = ssub.s32 %s251, 2
      %p279 = scmp.gt.s32.totalorder %s278, 0
      %s280 = scalar_select %p279, %s278, 0
      %p281 = scmp.lt.s32.totalorder %s280, 15
      %s282 = scalar_select %p281, %s280, 15
      %s283 = smul.u32 %s282, 2
      %s284 = smul.addr %s283, 4
      %s285 = scalar_lea.vmem %s238, %s284
      %v286 = vld [vmem:[%s285] sm:$0xf]
      %v287 = vld [vmem:[%s285 + $0x4] sm:$0xf]
      %p288 = scmp.ge.s32.totalorder %s278, 0
      %p289 = scmp.lt.s32.totalorder %s278, 16
      %p290 = pnand %p288, %p289
      %p291 = pneg %p290
      %s292 = scalar_select %p291, 1, 0
      %v293 = vstv %s292
      %vm294 = vcmp.eq.s32.totalorder %v293, 1
      %v295 = vsel %vm294, %v286, 0
      %v296 = vsel %vm294, %v287, 0
      %s297 = ssub.s32 %s251, 1
      %p298 = scmp.gt.s32.totalorder %s297, 0
      %s299 = scalar_select %p298, %s297, 0
      %p300 = scmp.lt.s32.totalorder %s299, 15
      %s301 = scalar_select %p300, %s299, 15
      %s302 = smul.u32 %s301, 2
      %s303 = smul.addr %s302, 4
      %s304 = scalar_lea.vmem %s238, %s303
      %v305 = vld [vmem:[%s304] sm:$0xf]
      %v306 = vld [vmem:[%s304 + $0x4] sm:$0xf]
      %p307 = scmp.ge.s32.totalorder %s297, 0
      %p308 = scmp.lt.s32.totalorder %s297, 16
      %p309 = pnand %p307, %p308
      %p310 = pneg %p309
      %s311 = scalar_select %p310, 1, 0
      %v312 = vstv %s311
      %vm313 = vcmp.eq.s32.totalorder %v312, 1
      %v314 = vsel %vm313, %v305, 0
      %v315 = vsel %vm313, %v306, 0
      %s316 = sadd.s32 %s251, 8
      %p317 = scmp.gt.s32.totalorder %s316, 0
      %s318 = scalar_select %p317, %s316, 0
      %p319 = scmp.lt.s32.totalorder %s318, 15
      %s320 = scalar_select %p319, %s318, 15
      %s321 = smul.u32 %s320, 2
      %s322 = smul.addr %s321, 4
      %s323 = scalar_lea.vmem %s238, %s322
      %v324 = vld [vmem:[%s323] sm:$0xf]
      %v325 = vld [vmem:[%s323 + $0x4] sm:$0xf]
      %p326 = scmp.ge.s32.totalorder %s316, 0
      %p327 = scmp.lt.s32.totalorder %s316, 16
      %p328 = pnand %p326, %p327
      %p329 = pneg %p328
      %s330 = scalar_select %p329, 1, 0
      %v331 = vstv %s330
      %vm332 = vcmp.eq.s32.totalorder %v331, 1
      %v333 = vsel %vm332, %v324, 0
      %v334 = vsel %vm332, %v325, 0
      %s335 = sadd.s32 %s251, 9
      %p336 = scmp.gt.s32.totalorder %s335, 0
      %s337 = scalar_select %p336, %s335, 0
      %p338 = scmp.lt.s32.totalorder %s337, 15
      %s339 = scalar_select %p338, %s337, 15
      %s340 = smul.u32 %s339, 2
      %s341 = smul.addr %s340, 4
      %s342 = scalar_lea.vmem %s238, %s341
      %v343 = vld [vmem:[%s342] sm:$0xf]
      %v344 = vld [vmem:[%s342 + $0x4] sm:$0xf]
      %p345 = scmp.ge.s32.totalorder %s335, 0
      %p346 = scmp.lt.s32.totalorder %s335, 16
      %p347 = pnand %p345, %p346
      %p348 = pneg %p347
      %s349 = scalar_select %p348, 1, 0
      %v350 = vstv %s349
      %vm351 = vcmp.eq.s32.totalorder %v350, 1
      %v352 = vsel %vm351, %v343, 0
      %v353 = vsel %vm351, %v344, 0
      %v354 = vunpack.c.l.bf16 %v295
      %v355 = vunpack.c.l.bf16 %v296
      %v356 = vunpack.c.l.bf16 %v314
      %v357 = vunpack.c.l.bf16 %v315
      %v358 = vunpack.c.l.bf16 %v262
      %v359 = vunpack.c.l.bf16 %v263
      %v360 = vunpack.c.l.bf16 %v264
      %v361 = vunpack.c.l.bf16 %v265
      %v362 = vunpack.c.l.bf16 %v266
      %v363 = vunpack.c.l.bf16 %v267
      %v364 = vunpack.c.l.bf16 %v268
      %v365 = vunpack.c.l.bf16 %v269
      %v366 = vunpack.c.l.bf16 %v270
      %v367 = vunpack.c.l.bf16 %v271
      %v368 = vunpack.c.l.bf16 %v272
      %v369 = vunpack.c.l.bf16 %v273
      %v370 = vunpack.c.l.bf16 %v274
      %v371 = vunpack.c.l.bf16 %v275
      %v372 = vunpack.c.l.bf16 %v276
      %v373 = vunpack.c.l.bf16 %v277
      %v374 = vunpack.c.l.bf16 %v333
      %v375 = vunpack.c.l.bf16 %v334
      %v376 = vunpack.c.l.bf16 %v352
      %v377 = vunpack.c.l.bf16 %v353
      %v378 = vrot.slane %v354, 7
      %v379 = vrot.slane %v356, 7
      %v380 = vrot.slane %v358, 7
      %v381 = vrot.slane %v360, 7
      %v382 = vrot.slane %v362, 7
      %v383 = vrot.slane %v364, 7
      %v384 = vrot.slane %v366, 7
      %v385 = vrot.slane %v368, 7
      %v386 = vrot.slane %v370, 7
      %v387 = vrot.slane %v372, 7
      %v388 = vrot.slane %v374, 7
      %v389 = vrot.slane %v376, 7
      %v390 = vrot.slane %v355, 7
      %v391 = vrot.slane %v357, 7
      %v392 = vrot.slane %v359, 7
      %v393 = vrot.slane %v361, 7
      %v394 = vrot.slane %v363, 7
      %v395 = vrot.slane %v365, 7
      %v396 = vrot.slane %v367, 7
      %v397 = vrot.slane %v369, 7
      %v398 = vrot.slane %v371, 7
      %v399 = vrot.slane %v373, 7
      %v400 = vrot.slane %v375, 7
      %v401 = vrot.slane %v377, 7
      %vm402 = vcmp.lt.s32.totalorder %v253, 1
      %v403 = vsel %vm402, %v378, %v390
      %v404 = vsel %vm402, %v379, %v391
      %v405 = vsel %vm402, %v380, %v392
      %v406 = vsel %vm402, %v381, %v393
      %v407 = vsel %vm402, %v382, %v394
      %v408 = vsel %vm402, %v383, %v395
      %v409 = vsel %vm402, %v384, %v396
      %v410 = vsel %vm402, %v385, %v397
      %v411 = vsel %vm402, %v386, %v398
      %v412 = vsel %vm402, %v387, %v399
      %v413 = vsel %vm402, %v388, %v400
      %v414 = vsel %vm402, %v389, %v401
      %v415 = vsel %vm402, %v390, %v378
      %v416 = vsel %vm402, %v391, %v379
      %v417 = vsel %vm402, %v392, %v380
      %v418 = vsel %vm402, %v393, %v381
      %v419 = vsel %vm402, %v394, %v382
      %v420 = vsel %vm402, %v395, %v383
      %v421 = vsel %vm402, %v396, %v384
      %v422 = vsel %vm402, %v397, %v385
      %v423 = vsel %vm402, %v398, %v386
      %v424 = vsel %vm402, %v399, %v387
      %v425 = vsel %vm402, %v400, %v388
      %v426 = vsel %vm402, %v401, %v389
      %v427 = vsel %vm255, 1, 0
      %v428 = vsel %vm256, 1, 0
      %vm429 = vcmp.eq.s32.totalorder %v427, 1
      %vm430 = vcmp.eq.s32.totalorder %v428, 1
      %v431 = vsel %vm429, 0.0, %v415
      %v432 = vsel %vm430, 0.0, %v403
      %v433 = vsel %vm429, 0.0, %v416
      %v434 = vsel %vm430, 0.0, %v404
      %v435 = vsel %vm429, 0.0, %v417
      %v436 = vsel %vm430, 0.0, %v405
      %v437 = vsel %vm429, 0.0, %v418
      %v438 = vsel %vm430, 0.0, %v406
      %v439 = vsel %vm429, 0.0, %v419
      %v440 = vsel %vm430, 0.0, %v407
      %v441 = vsel %vm429, 0.0, %v420
      %v442 = vsel %vm430, 0.0, %v408
      %v443 = vsel %vm429, 0.0, %v421
      %v444 = vsel %vm430, 0.0, %v409
      %v445 = vsel %vm429, 0.0, %v422
      %v446 = vsel %vm430, 0.0, %v410
      %v447 = vsel %vm429, 0.0, %v423
      %v448 = vsel %vm430, 0.0, %v411
      %v449 = vsel %vm429, 0.0, %v424
      %v450 = vsel %vm430, 0.0, %v412
      %v451 = vsel %vm429, 0.0, %v425
      %v452 = vsel %vm430, 0.0, %v413
      %v453 = vsel %vm429, 0.0, %v426
      %v454 = vsel %vm430, 0.0, %v414
      %v455 = vrot.slane %v354, 1
      %v456 = vrot.slane %v356, 1
      %v457 = vrot.slane %v358, 1
      %v458 = vrot.slane %v360, 1
      %v459 = vrot.slane %v362, 1
      %v460 = vrot.slane %v364, 1
      %v461 = vrot.slane %v366, 1
      %v462 = vrot.slane %v368, 1
      %v463 = vrot.slane %v370, 1
      %v464 = vrot.slane %v372, 1
      %v465 = vrot.slane %v374, 1
      %v466 = vrot.slane %v376, 1
      %v467 = vrot.slane %v355, 1
      %v468 = vrot.slane %v357, 1
      %v469 = vrot.slane %v359, 1
      %v470 = vrot.slane %v361, 1
      %v471 = vrot.slane %v363, 1
      %v472 = vrot.slane %v365, 1
      %v473 = vrot.slane %v367, 1
      %v474 = vrot.slane %v369, 1
      %v475 = vrot.slane %v371, 1
      %v476 = vrot.slane %v373, 1
      %v477 = vrot.slane %v375, 1
      %v478 = vrot.slane %v377, 1
      %vm479 = vcmp.lt.s32.totalorder %v253, 7
      %v480 = vsel %vm479, %v455, %v467
      %v481 = vsel %vm479, %v456, %v468
      %v482 = vsel %vm479, %v457, %v469
      %v483 = vsel %vm479, %v458, %v470
      %v484 = vsel %vm479, %v459, %v471
      %v485 = vsel %vm479, %v460, %v472
      %v486 = vsel %vm479, %v461, %v473
      %v487 = vsel %vm479, %v462, %v474
      %v488 = vsel %vm479, %v463, %v475
      %v489 = vsel %vm479, %v464, %v476
      %v490 = vsel %vm479, %v465, %v477
      %v491 = vsel %vm479, %v466, %v478
      %v492 = vsel %vm479, %v467, %v455
      %v493 = vsel %vm479, %v468, %v456
      %v494 = vsel %vm479, %v469, %v457
      %v495 = vsel %vm479, %v470, %v458
      %v496 = vsel %vm479, %v471, %v459
      %v497 = vsel %vm479, %v472, %v460
      %v498 = vsel %vm479, %v473, %v461
      %v499 = vsel %vm479, %v474, %v462
      %v500 = vsel %vm479, %v475, %v463
      %v501 = vsel %vm479, %v476, %v464
      %v502 = vsel %vm479, %v477, %v465
      %v503 = vsel %vm479, %v478, %v466
      %v504 = vsel %vm257, 1, 0
      %v505 = vsel %vm258, 1, 0
      %vm506 = vcmp.eq.s32.totalorder %v504, 1
      %vm507 = vcmp.eq.s32.totalorder %v505, 1
      %v508 = vsel %vm506, 0.0, %v480
      %v509 = vsel %vm507, 0.0, %v492
      %v510 = vsel %vm506, 0.0, %v481
      %v511 = vsel %vm507, 0.0, %v493
      %v512 = vsel %vm506, 0.0, %v482
      %v513 = vsel %vm507, 0.0, %v494
      %v514 = vsel %vm506, 0.0, %v483
      %v515 = vsel %vm507, 0.0, %v495
      %v516 = vsel %vm506, 0.0, %v484
      %v517 = vsel %vm507, 0.0, %v496
      %v518 = vsel %vm506, 0.0, %v485
      %v519 = vsel %vm507, 0.0, %v497
      %v520 = vsel %vm506, 0.0, %v486
      %v521 = vsel %vm507, 0.0, %v498
      %v522 = vsel %vm506, 0.0, %v487
      %v523 = vsel %vm507, 0.0, %v499
      %v524 = vsel %vm506, 0.0, %v488
      %v525 = vsel %vm507, 0.0, %v500
      %v526 = vsel %vm506, 0.0, %v489
      %v527 = vsel %vm507, 0.0, %v501
      %v528 = vsel %vm506, 0.0, %v490
      %v529 = vsel %vm507, 0.0, %v502
      %v530 = vsel %vm506, 0.0, %v491
      %v531 = vsel %vm507, 0.0, %v503
      %v532 = vpack.c.bf16 %v431, %v431
      %v533 = vpack.c.bf16 %v432, %v432
      %v534 = vpack.c.bf16 %v433, %v433
      %v535 = vpack.c.bf16 %v434, %v434
      %v536 = vpack.c.bf16 %v435, %v435
      %v537 = vpack.c.bf16 %v436, %v436
      %v538 = vpack.c.bf16 %v437, %v437
      %v539 = vpack.c.bf16 %v438, %v438
      %v540 = vpack.c.bf16 %v439, %v439
      %v541 = vpack.c.bf16 %v440, %v440
      %v542 = vpack.c.bf16 %v441, %v441
      %v543 = vpack.c.bf16 %v442, %v442
      %v544 = vpack.c.bf16 %v443, %v443
      %v545 = vpack.c.bf16 %v444, %v444
      %v546 = vpack.c.bf16 %v445, %v445
      %v547 = vpack.c.bf16 %v446, %v446
      %v548 = vpack.c.bf16 %v447, %v447
      %v549 = vpack.c.bf16 %v448, %v448
      %v550 = vpack.c.bf16 %v449, %v449
      %v551 = vpack.c.bf16 %v450, %v450
      %v552 = vpack.c.bf16 %v451, %v451
      %v553 = vpack.c.bf16 %v452, %v452
      %v554 = vpack.c.bf16 %v453, %v453
      %v555 = vpack.c.bf16 %v454, %v454
      %v556 = vpack.c.bf16 %v508, %v508
      %v557 = vpack.c.bf16 %v509, %v509
      %v558 = vpack.c.bf16 %v510, %v510
      %v559 = vpack.c.bf16 %v511, %v511
      %v560 = vpack.c.bf16 %v512, %v512
      %v561 = vpack.c.bf16 %v513, %v513
      %v562 = vpack.c.bf16 %v514, %v514
      %v563 = vpack.c.bf16 %v515, %v515
      %v564 = vpack.c.bf16 %v516, %v516
      %v565 = vpack.c.bf16 %v517, %v517
      %v566 = vpack.c.bf16 %v518, %v518
      %v567 = vpack.c.bf16 %v519, %v519
      %v568 = vpack.c.bf16 %v520, %v520
      %v569 = vpack.c.bf16 %v521, %v521
      %v570 = vpack.c.bf16 %v522, %v522
      %v571 = vpack.c.bf16 %v523, %v523
      %v572 = vpack.c.bf16 %v524, %v524
      %v573 = vpack.c.bf16 %v525, %v525
      %v574 = vpack.c.bf16 %v526, %v526
      %v575 = vpack.c.bf16 %v527, %v527
      %v576 = vpack.c.bf16 %v528, %v528
      %v577 = vpack.c.bf16 %v529, %v529
      %v578 = vpack.c.bf16 %v530, %v530
      %v579 = vpack.c.bf16 %v531, %v531
      %v580 = vld [vmem:[%s1] sm:$0x3]
      %s581 = scalar_lea.vmem %s1, 2
      %v582 = vld [vmem:[%s581] sm:$0x3]
      %v603 = vunpack.c.l.b16 %v295
      %v604 = vunpack.c.l.b16 %v296
      %v605 = vunpack.c.l.b16 %v314
      %v606 = vunpack.c.l.b16 %v315
      %v607 = vunpack.c.l.b16 %v262
      %v608 = vunpack.c.l.b16 %v263
      %v609 = vunpack.c.l.b16 %v264
      %v610 = vunpack.c.l.b16 %v265
      %v611 = vunpack.c.l.b16 %v266
      %v612 = vunpack.c.l.b16 %v267
      %v613 = vunpack.c.l.b16 %v268
      %v614 = vunpack.c.l.b16 %v269
      %v615 = vunpack.c.l.b16 %v270
      %v616 = vunpack.c.l.b16 %v271
      %v617 = vunpack.c.l.b16 %v272
      %v618 = vunpack.c.l.b16 %v273
      %v619 = vunpack.c.l.b16 %v274
      %v620 = vunpack.c.l.b16 %v275
      %v621 = vunpack.c.l.b16 %v276
      %v622 = vunpack.c.l.b16 %v277
      %v623 = vpack.c.b16 %v604, %v603
      %v624 = vpack.c.b16 %v606, %v605
      %v625 = vpack.c.b16 %v608, %v607
      %v626 = vpack.c.b16 %v610, %v609
      %v627 = vpack.c.b16 %v612, %v611
      %v628 = vpack.c.b16 %v614, %v613
      %v629 = vpack.c.b16 %v616, %v615
      %v630 = vpack.c.b16 %v618, %v617
      %v631 = vpack.c.b16 %v620, %v619
      %v632 = vpack.c.b16 %v622, %v621
      %vm633 = vcmask 31744
      %v635 = vsel %vm633, %v623, 0
      %v638 = vsel %vm633, %v624, 0
      %v641 = vsel %vm633, %v625, 0
      %v644 = vsel %vm633, %v626, 0
      %v647 = vsel %vm633, %v627, 0
      %v650 = vsel %vm633, %v628, 0
      %v653 = vsel %vm633, %v629, 0
      %v656 = vsel %vm633, %v630, 0
      %v659 = vsel %vm633, %v631, 0
      %v662 = vsel %vm633, %v632, 0
      %vm664 = vcmask 1041408
      %v666 = vsel %vm664, %v582, 0
      %668 = vmatpush.bf16.msra.mxu0 0
      %669 = vmatpush.bf16.msra.mxu0 0
      %670 = vmatpush.bf16.msra.mxu0 0
      %671 = vmatpush.bf16.msra.mxu0 0
      %672 = vmatpush.bf16.msra.mxu0 0
      %673 = vmatpush.bf16.msra.mxu0 0
      %674 = vmatpush.bf16.msra.mxu0 0
      %675 = vmatpush.bf16.msra.mxu0 %v666
      %676 = vmatmul.bf16.gmra.mxu0 %v635
      %v677 = vpop.f32.mrf.mxu0
      %v678 = vadd.f32 0.0, %v677
      %v679 = vpop.f32.mrf.mxu0
      %v680 = vadd.f32 0.0, %v679
      %681 = vmatmul.bf16.gmra.mxu0 %v638
      %v682 = vpop.f32.mrf.mxu0
      %v683 = vadd.f32 0.0, %v682
      %v684 = vpop.f32.mrf.mxu0
      %v685 = vadd.f32 0.0, %v684
      %686 = vmatmul.bf16.gmra.mxu0 %v641
      %v687 = vpop.f32.mrf.mxu0
      %v688 = vadd.f32 0.0, %v687
      %v689 = vpop.f32.mrf.mxu0
      %v690 = vadd.f32 0.0, %v689
      %691 = vmatmul.bf16.gmra.mxu0 %v644
      %v692 = vpop.f32.mrf.mxu0
      %v693 = vadd.f32 0.0, %v692
      %v694 = vpop.f32.mrf.mxu0
      %v695 = vadd.f32 0.0, %v694
      %696 = vmatmul.bf16.gmra.mxu0 %v647
      %v697 = vpop.f32.mrf.mxu0
      %v698 = vadd.f32 0.0, %v697
      %v699 = vpop.f32.mrf.mxu0
      %v700 = vadd.f32 0.0, %v699
      %701 = vmatmul.bf16.gmra.mxu0 %v650
      %v702 = vpop.f32.mrf.mxu0
      %v703 = vadd.f32 0.0, %v702
      %v704 = vpop.f32.mrf.mxu0
      %v705 = vadd.f32 0.0, %v704
      %706 = vmatmul.bf16.gmra.mxu0 %v653
      %v707 = vpop.f32.mrf.mxu0
      %v708 = vadd.f32 0.0, %v707
      %v709 = vpop.f32.mrf.mxu0
      %v710 = vadd.f32 0.0, %v709
      %711 = vmatmul.bf16.gmra.mxu0 %v656
      %v712 = vpop.f32.mrf.mxu0
      %v713 = vadd.f32 0.0, %v712
      %v714 = vpop.f32.mrf.mxu0
      %v715 = vadd.f32 0.0, %v714
      %716 = vmatmul.bf16.gmra.mxu0 %v659
      %v717 = vpop.f32.mrf.mxu0
      %v718 = vadd.f32 0.0, %v717
      %v719 = vpop.f32.mrf.mxu0
      %v720 = vadd.f32 0.0, %v719
      %721 = vmatmul.bf16.gmra.mxu0 %v662
      %v722 = vpop.f32.mrf.mxu0
      %v723 = vadd.f32 0.0, %v722
      %v724 = vpop.f32.mrf.mxu0
      %v725 = vadd.f32 0.0, %v724
      %726 = vdwg.mxu0
      %v747 = vunpack.c.l.b16 %v532
      %v748 = vunpack.c.l.b16 %v533
      %v749 = vunpack.c.l.b16 %v534
      %v750 = vunpack.c.l.b16 %v535
      %v751 = vunpack.c.l.b16 %v536
      %v752 = vunpack.c.l.b16 %v537
      %v753 = vunpack.c.l.b16 %v538
      %v754 = vunpack.c.l.b16 %v539
      %v755 = vunpack.c.l.b16 %v540
      %v756 = vunpack.c.l.b16 %v541
      %v757 = vunpack.c.l.b16 %v542
      %v758 = vunpack.c.l.b16 %v543
      %v759 = vunpack.c.l.b16 %v544
      %v760 = vunpack.c.l.b16 %v545
      %v761 = vunpack.c.l.b16 %v546
      %v762 = vunpack.c.l.b16 %v547
      %v763 = vunpack.c.l.b16 %v548
      %v764 = vunpack.c.l.b16 %v549
      %v765 = vunpack.c.l.b16 %v550
      %v766 = vunpack.c.l.b16 %v551
      %v767 = vpack.c.b16 %v748, %v747
      %v768 = vpack.c.b16 %v750, %v749
      %v769 = vpack.c.b16 %v752, %v751
      %v770 = vpack.c.b16 %v754, %v753
      %v771 = vpack.c.b16 %v756, %v755
      %v772 = vpack.c.b16 %v758, %v757
      %v773 = vpack.c.b16 %v760, %v759
      %v774 = vpack.c.b16 %v762, %v761
      %v775 = vpack.c.b16 %v764, %v763
      %v776 = vpack.c.b16 %v766, %v765
      %v778 = vsel %vm633, %v767, 0
      %v781 = vsel %vm633, %v768, 0
      %v784 = vsel %vm633, %v769, 0
      %v787 = vsel %vm633, %v770, 0
      %v790 = vsel %vm633, %v771, 0
      %v793 = vsel %vm633, %v772, 0
      %v796 = vsel %vm633, %v773, 0
      %v799 = vsel %vm633, %v774, 0
      %v802 = vsel %vm633, %v775, 0
      %v805 = vsel %vm633, %v776, 0
      %v808 = vsel %vm664, %v580, 0
      %810 = vmatpush.bf16.msra.mxu0 0
      %811 = vmatpush.bf16.msra.mxu0 0
      %812 = vmatpush.bf16.msra.mxu0 0
      %813 = vmatpush.bf16.msra.mxu0 0
      %814 = vmatpush.bf16.msra.mxu0 0
      %815 = vmatpush.bf16.msra.mxu0 0
      %816 = vmatpush.bf16.msra.mxu0 0
      %817 = vmatpush.bf16.msra.mxu0 %v808
      %818 = vmatmul.bf16.gmra.mxu0 %v778
      %v819 = vpop.f32.mrf.mxu0
      %v820 = vadd.f32 %v678, %v819
      %v821 = vpop.f32.mrf.mxu0
      %v822 = vadd.f32 %v680, %v821
      %823 = vmatmul.bf16.gmra.mxu0 %v781
      %v824 = vpop.f32.mrf.mxu0
      %v825 = vadd.f32 %v683, %v824
      %v826 = vpop.f32.mrf.mxu0
      %v827 = vadd.f32 %v685, %v826
      %828 = vmatmul.bf16.gmra.mxu0 %v784
      %v829 = vpop.f32.mrf.mxu0
      %v830 = vadd.f32 %v688, %v829
      %v831 = vpop.f32.mrf.mxu0
      %v832 = vadd.f32 %v690, %v831
      %833 = vmatmul.bf16.gmra.mxu0 %v787
      %v834 = vpop.f32.mrf.mxu0
      %v835 = vadd.f32 %v693, %v834
      %v836 = vpop.f32.mrf.mxu0
      %v837 = vadd.f32 %v695, %v836
      %838 = vmatmul.bf16.gmra.mxu0 %v790
      %v839 = vpop.f32.mrf.mxu0
      %v840 = vadd.f32 %v698, %v839
      %v841 = vpop.f32.mrf.mxu0
      %v842 = vadd.f32 %v700, %v841
      %843 = vmatmul.bf16.gmra.mxu0 %v793
      %v844 = vpop.f32.mrf.mxu0
      %v845 = vadd.f32 %v703, %v844
      %v846 = vpop.f32.mrf.mxu0
      %v847 = vadd.f32 %v705, %v846
      %848 = vmatmul.bf16.gmra.mxu0 %v796
      %v849 = vpop.f32.mrf.mxu0
      %v850 = vadd.f32 %v708, %v849
      %v851 = vpop.f32.mrf.mxu0
      %v852 = vadd.f32 %v710, %v851
      %853 = vmatmul.bf16.gmra.mxu0 %v799
      %v854 = vpop.f32.mrf.mxu0
      %v855 = vadd.f32 %v713, %v854
      %v856 = vpop.f32.mrf.mxu0
      %v857 = vadd.f32 %v715, %v856
      %858 = vmatmul.bf16.gmra.mxu0 %v802
      %v859 = vpop.f32.mrf.mxu0
      %v860 = vadd.f32 %v718, %v859
      %v861 = vpop.f32.mrf.mxu0
      %v862 = vadd.f32 %v720, %v861
      %863 = vmatmul.bf16.gmra.mxu0 %v805
      %v864 = vpop.f32.mrf.mxu0
      %v865 = vadd.f32 %v723, %v864
      %v866 = vpop.f32.mrf.mxu0
      %v867 = vadd.f32 %v725, %v866
      %868 = vdwg.mxu0
      %s869 = scalar_lea.vmem %s1, 4
      %v870 = vld [vmem:[%s869] sm:$0x3]
      %v891 = vunpack.c.l.b16 %v556
      %v892 = vunpack.c.l.b16 %v557
      %v893 = vunpack.c.l.b16 %v558
      %v894 = vunpack.c.l.b16 %v559
      %v895 = vunpack.c.l.b16 %v560
      %v896 = vunpack.c.l.b16 %v561
      %v897 = vunpack.c.l.b16 %v562
      %v898 = vunpack.c.l.b16 %v563
      %v899 = vunpack.c.l.b16 %v564
      %v900 = vunpack.c.l.b16 %v565
      %v901 = vunpack.c.l.b16 %v566
      %v902 = vunpack.c.l.b16 %v567
      %v903 = vunpack.c.l.b16 %v568
      %v904 = vunpack.c.l.b16 %v569
      %v905 = vunpack.c.l.b16 %v570
      %v906 = vunpack.c.l.b16 %v571
      %v907 = vunpack.c.l.b16 %v572
      %v908 = vunpack.c.l.b16 %v573
      %v909 = vunpack.c.l.b16 %v574
      %v910 = vunpack.c.l.b16 %v575
      %v911 = vpack.c.b16 %v892, %v891
      %v912 = vpack.c.b16 %v894, %v893
      %v913 = vpack.c.b16 %v896, %v895
      %v914 = vpack.c.b16 %v898, %v897
      %v915 = vpack.c.b16 %v900, %v899
      %v916 = vpack.c.b16 %v902, %v901
      %v917 = vpack.c.b16 %v904, %v903
      %v918 = vpack.c.b16 %v906, %v905
      %v919 = vpack.c.b16 %v908, %v907
      %v920 = vpack.c.b16 %v910, %v909
      %v922 = vsel %vm633, %v911, 0
      %v925 = vsel %vm633, %v912, 0
      %v928 = vsel %vm633, %v913, 0
      %v931 = vsel %vm633, %v914, 0
      %v934 = vsel %vm633, %v915, 0
      %v937 = vsel %vm633, %v916, 0
      %v940 = vsel %vm633, %v917, 0
      %v943 = vsel %vm633, %v918, 0
      %v946 = vsel %vm633, %v919, 0
      %v949 = vsel %vm633, %v920, 0
      %v952 = vsel %vm664, %v870, 0
      %954 = vmatpush.bf16.msra.mxu0 0
      %955 = vmatpush.bf16.msra.mxu0 0
      %956 = vmatpush.bf16.msra.mxu0 0
      %957 = vmatpush.bf16.msra.mxu0 0
      %958 = vmatpush.bf16.msra.mxu0 0
      %959 = vmatpush.bf16.msra.mxu0 0
      %960 = vmatpush.bf16.msra.mxu0 0
      %961 = vmatpush.bf16.msra.mxu0 %v952
      %962 = vmatmul.bf16.gmra.mxu0 %v922
      %v963 = vpop.f32.mrf.mxu0
      %v964 = vadd.f32 0.0, %v963
      %v965 = vpop.f32.mrf.mxu0
      %v966 = vadd.f32 0.0, %v965
      %967 = vmatmul.bf16.gmra.mxu0 %v925
      %v968 = vpop.f32.mrf.mxu0
      %v969 = vadd.f32 0.0, %v968
      %v970 = vpop.f32.mrf.mxu0
      %v971 = vadd.f32 0.0, %v970
      %972 = vmatmul.bf16.gmra.mxu0 %v928
      %v973 = vpop.f32.mrf.mxu0
      %v974 = vadd.f32 0.0, %v973
      %v975 = vpop.f32.mrf.mxu0
      %v976 = vadd.f32 0.0, %v975
      %977 = vmatmul.bf16.gmra.mxu0 %v931
      %v978 = vpop.f32.mrf.mxu0
      %v979 = vadd.f32 0.0, %v978
      %v980 = vpop.f32.mrf.mxu0
      %v981 = vadd.f32 0.0, %v980
      %982 = vmatmul.bf16.gmra.mxu0 %v934
      %v983 = vpop.f32.mrf.mxu0
      %v984 = vadd.f32 0.0, %v983
      %v985 = vpop.f32.mrf.mxu0
      %v986 = vadd.f32 0.0, %v985
      %987 = vmatmul.bf16.gmra.mxu0 %v937
      %v988 = vpop.f32.mrf.mxu0
      %v989 = vadd.f32 0.0, %v988
      %v990 = vpop.f32.mrf.mxu0
      %v991 = vadd.f32 0.0, %v990
      %992 = vmatmul.bf16.gmra.mxu0 %v940
      %v993 = vpop.f32.mrf.mxu0
      %v994 = vadd.f32 0.0, %v993
      %v995 = vpop.f32.mrf.mxu0
      %v996 = vadd.f32 0.0, %v995
      %997 = vmatmul.bf16.gmra.mxu0 %v943
      %v998 = vpop.f32.mrf.mxu0
      %v999 = vadd.f32 0.0, %v998
      %v1000 = vpop.f32.mrf.mxu0
      %v1001 = vadd.f32 0.0, %v1000
      %1002 = vmatmul.bf16.gmra.mxu0 %v946
      %v1003 = vpop.f32.mrf.mxu0
      %v1004 = vadd.f32 0.0, %v1003
      %v1005 = vpop.f32.mrf.mxu0
      %v1006 = vadd.f32 0.0, %v1005
      %1007 = vmatmul.bf16.gmra.mxu0 %v949
      %v1008 = vpop.f32.mrf.mxu0
      %v1009 = vadd.f32 0.0, %v1008
      %v1010 = vpop.f32.mrf.mxu0
      %v1011 = vadd.f32 0.0, %v1010
      %1012 = vdwg.mxu0
      %v1013 = vadd.f32 %v820, %v964
      %v1014 = vadd.f32 %v822, %v966
      %v1015 = vadd.f32 %v825, %v969
      %v1016 = vadd.f32 %v827, %v971
      %v1017 = vadd.f32 %v830, %v974
      %v1018 = vadd.f32 %v832, %v976
      %v1019 = vadd.f32 %v835, %v979
      %v1020 = vadd.f32 %v837, %v981
      %v1021 = vadd.f32 %v840, %v984
      %v1022 = vadd.f32 %v842, %v986
      %v1023 = vadd.f32 %v845, %v989
      %v1024 = vadd.f32 %v847, %v991
      %v1025 = vadd.f32 %v850, %v994
      %v1026 = vadd.f32 %v852, %v996
      %v1027 = vadd.f32 %v855, %v999
      %v1028 = vadd.f32 %v857, %v1001
      %v1029 = vadd.f32 %v860, %v1004
      %v1030 = vadd.f32 %v862, %v1006
      %v1031 = vadd.f32 %v865, %v1009
      %v1032 = vadd.f32 %v867, %v1011
      %s1033 = scalar_lea.vmem %s1, 6
      %v1034 = vld [vmem:[%s1033] sm:$0x3]
      %v1037 = vunpack.c.l.b16 %v552
      %v1038 = vunpack.c.l.b16 %v553
      %v1039 = vpack.c.b16 %v1038, %v1037
      %v1041 = vsel %vm633, %v1039, 0
      %v1044 = vsel %vm664, %v1034, 0
      %1046 = vmatpush.bf16.msra.mxu0 0
      %1047 = vmatpush.bf16.msra.mxu0 0
      %1048 = vmatpush.bf16.msra.mxu0 0
      %1049 = vmatpush.bf16.msra.mxu0 0
      %1050 = vmatpush.bf16.msra.mxu0 0
      %1051 = vmatpush.bf16.msra.mxu0 0
      %1052 = vmatpush.bf16.msra.mxu0 0
      %1053 = vmatpush.bf16.msra.mxu0 %v1044
      %1054 = vmatmul.bf16.gmra.mxu0 %v781
      %v1055 = vpop.f32.mrf.mxu0
      %v1056 = vadd.f32 0.0, %v1055
      %v1057 = vpop.f32.mrf.mxu0
      %v1058 = vadd.f32 0.0, %v1057
      %1059 = vmatmul.bf16.gmra.mxu0 %v784
      %v1060 = vpop.f32.mrf.mxu0
      %v1061 = vadd.f32 0.0, %v1060
      %v1062 = vpop.f32.mrf.mxu0
      %v1063 = vadd.f32 0.0, %v1062
      %1064 = vmatmul.bf16.gmra.mxu0 %v787
      %v1065 = vpop.f32.mrf.mxu0
      %v1066 = vadd.f32 0.0, %v1065
      %v1067 = vpop.f32.mrf.mxu0
      %v1068 = vadd.f32 0.0, %v1067
      %1069 = vmatmul.bf16.gmra.mxu0 %v790
      %v1070 = vpop.f32.mrf.mxu0
      %v1071 = vadd.f32 0.0, %v1070
      %v1072 = vpop.f32.mrf.mxu0
      %v1073 = vadd.f32 0.0, %v1072
      %1074 = vmatmul.bf16.gmra.mxu0 %v793
      %v1075 = vpop.f32.mrf.mxu0
      %v1076 = vadd.f32 0.0, %v1075
      %v1077 = vpop.f32.mrf.mxu0
      %v1078 = vadd.f32 0.0, %v1077
      %1079 = vmatmul.bf16.gmra.mxu0 %v796
      %v1080 = vpop.f32.mrf.mxu0
      %v1081 = vadd.f32 0.0, %v1080
      %v1082 = vpop.f32.mrf.mxu0
      %v1083 = vadd.f32 0.0, %v1082
      %1084 = vmatmul.bf16.gmra.mxu0 %v799
      %v1085 = vpop.f32.mrf.mxu0
      %v1086 = vadd.f32 0.0, %v1085
      %v1087 = vpop.f32.mrf.mxu0
      %v1088 = vadd.f32 0.0, %v1087
      %1089 = vmatmul.bf16.gmra.mxu0 %v802
      %v1090 = vpop.f32.mrf.mxu0
      %v1091 = vadd.f32 0.0, %v1090
      %v1092 = vpop.f32.mrf.mxu0
      %v1093 = vadd.f32 0.0, %v1092
      %1094 = vmatmul.bf16.gmra.mxu0 %v805
      %v1095 = vpop.f32.mrf.mxu0
      %v1096 = vadd.f32 0.0, %v1095
      %v1097 = vpop.f32.mrf.mxu0
      %v1098 = vadd.f32 0.0, %v1097
      %1099 = vmatmul.bf16.gmra.mxu0 %v1041
      %v1100 = vpop.f32.mrf.mxu0
      %v1101 = vadd.f32 0.0, %v1100
      %v1102 = vpop.f32.mrf.mxu0
      %v1103 = vadd.f32 0.0, %v1102
      %1104 = vdwg.mxu0
      %v1105 = vadd.f32 %v1013, %v1056
      %v1106 = vadd.f32 %v1014, %v1058
      %v1107 = vadd.f32 %v1015, %v1061
      %v1108 = vadd.f32 %v1016, %v1063
      %v1109 = vadd.f32 %v1017, %v1066
      %v1110 = vadd.f32 %v1018, %v1068
      %v1111 = vadd.f32 %v1019, %v1071
      %v1112 = vadd.f32 %v1020, %v1073
      %v1113 = vadd.f32 %v1021, %v1076
      %v1114 = vadd.f32 %v1022, %v1078
      %v1115 = vadd.f32 %v1023, %v1081
      %v1116 = vadd.f32 %v1024, %v1083
      %v1117 = vadd.f32 %v1025, %v1086
      %v1118 = vadd.f32 %v1026, %v1088
      %v1119 = vadd.f32 %v1027, %v1091
      %v1120 = vadd.f32 %v1028, %v1093
      %v1121 = vadd.f32 %v1029, %v1096
      %v1122 = vadd.f32 %v1030, %v1098
      %v1123 = vadd.f32 %v1031, %v1101
      %v1124 = vadd.f32 %v1032, %v1103
      %s1125 = scalar_lea.vmem %s1, 8
      %v1126 = vld [vmem:[%s1125] sm:$0x3]
      %v1129 = vunpack.c.l.b16 %v333
      %v1130 = vunpack.c.l.b16 %v334
      %v1131 = vpack.c.b16 %v1130, %v1129
      %v1133 = vsel %vm633, %v1131, 0
      %v1136 = vsel %vm664, %v1126, 0
      %1138 = vmatpush.bf16.msra.mxu0 0
      %1139 = vmatpush.bf16.msra.mxu0 0
      %1140 = vmatpush.bf16.msra.mxu0 0
      %1141 = vmatpush.bf16.msra.mxu0 0
      %1142 = vmatpush.bf16.msra.mxu0 0
      %1143 = vmatpush.bf16.msra.mxu0 0
      %1144 = vmatpush.bf16.msra.mxu0 0
      %1145 = vmatpush.bf16.msra.mxu0 %v1136
      %1146 = vmatmul.bf16.gmra.mxu0 %v638
      %v1147 = vpop.f32.mrf.mxu0
      %v1148 = vadd.f32 0.0, %v1147
      %v1149 = vpop.f32.mrf.mxu0
      %v1150 = vadd.f32 0.0, %v1149
      %1151 = vmatmul.bf16.gmra.mxu0 %v641
      %v1152 = vpop.f32.mrf.mxu0
      %v1153 = vadd.f32 0.0, %v1152
      %v1154 = vpop.f32.mrf.mxu0
      %v1155 = vadd.f32 0.0, %v1154
      %1156 = vmatmul.bf16.gmra.mxu0 %v644
      %v1157 = vpop.f32.mrf.mxu0
      %v1158 = vadd.f32 0.0, %v1157
      %v1159 = vpop.f32.mrf.mxu0
      %v1160 = vadd.f32 0.0, %v1159
      %1161 = vmatmul.bf16.gmra.mxu0 %v647
      %v1162 = vpop.f32.mrf.mxu0
      %v1163 = vadd.f32 0.0, %v1162
      %v1164 = vpop.f32.mrf.mxu0
      %v1165 = vadd.f32 0.0, %v1164
      %1166 = vmatmul.bf16.gmra.mxu0 %v650
      %v1167 = vpop.f32.mrf.mxu0
      %v1168 = vadd.f32 0.0, %v1167
      %v1169 = vpop.f32.mrf.mxu0
      %v1170 = vadd.f32 0.0, %v1169
      %1171 = vmatmul.bf16.gmra.mxu0 %v653
      %v1172 = vpop.f32.mrf.mxu0
      %v1173 = vadd.f32 0.0, %v1172
      %v1174 = vpop.f32.mrf.mxu0
      %v1175 = vadd.f32 0.0, %v1174
      %1176 = vmatmul.bf16.gmra.mxu0 %v656
      %v1177 = vpop.f32.mrf.mxu0
      %v1178 = vadd.f32 0.0, %v1177
      %v1179 = vpop.f32.mrf.mxu0
      %v1180 = vadd.f32 0.0, %v1179
      %1181 = vmatmul.bf16.gmra.mxu0 %v659
      %v1182 = vpop.f32.mrf.mxu0
      %v1183 = vadd.f32 0.0, %v1182
      %v1184 = vpop.f32.mrf.mxu0
      %v1185 = vadd.f32 0.0, %v1184
      %1186 = vmatmul.bf16.gmra.mxu0 %v662
      %v1187 = vpop.f32.mrf.mxu0
      %v1188 = vadd.f32 0.0, %v1187
      %v1189 = vpop.f32.mrf.mxu0
      %v1190 = vadd.f32 0.0, %v1189
      %1191 = vmatmul.bf16.gmra.mxu0 %v1133
      %v1192 = vpop.f32.mrf.mxu0
      %v1193 = vadd.f32 0.0, %v1192
      %v1194 = vpop.f32.mrf.mxu0
      %v1195 = vadd.f32 0.0, %v1194
      %1196 = vdwg.mxu0
      %v1197 = vadd.f32 %v1105, %v1148
      %v1198 = vadd.f32 %v1106, %v1150
      %v1199 = vadd.f32 %v1107, %v1153
      %v1200 = vadd.f32 %v1108, %v1155
      %v1201 = vadd.f32 %v1109, %v1158
      %v1202 = vadd.f32 %v1110, %v1160
      %v1203 = vadd.f32 %v1111, %v1163
      %v1204 = vadd.f32 %v1112, %v1165
      %v1205 = vadd.f32 %v1113, %v1168
      %v1206 = vadd.f32 %v1114, %v1170
      %v1207 = vadd.f32 %v1115, %v1173
      %v1208 = vadd.f32 %v1116, %v1175
      %v1209 = vadd.f32 %v1117, %v1178
      %v1210 = vadd.f32 %v1118, %v1180
      %v1211 = vadd.f32 %v1119, %v1183
      %v1212 = vadd.f32 %v1120, %v1185
      %v1213 = vadd.f32 %v1121, %v1188
      %v1214 = vadd.f32 %v1122, %v1190
      %v1215 = vadd.f32 %v1123, %v1193
      %v1216 = vadd.f32 %v1124, %v1195
      %s1217 = scalar_lea.vmem %s1, 10
      %v1218 = vld [vmem:[%s1217] sm:$0x3]
      %v1221 = vunpack.c.l.b16 %v576
      %v1222 = vunpack.c.l.b16 %v577
      %v1223 = vpack.c.b16 %v1222, %v1221
      %v1225 = vsel %vm633, %v1223, 0
      %v1228 = vsel %vm664, %v1218, 0
      %1230 = vmatpush.bf16.msra.mxu0 0
      %1231 = vmatpush.bf16.msra.mxu0 0
      %1232 = vmatpush.bf16.msra.mxu0 0
      %1233 = vmatpush.bf16.msra.mxu0 0
      %1234 = vmatpush.bf16.msra.mxu0 0
      %1235 = vmatpush.bf16.msra.mxu0 0
      %1236 = vmatpush.bf16.msra.mxu0 0
      %1237 = vmatpush.bf16.msra.mxu0 %v1228
      %1238 = vmatmul.bf16.gmra.mxu0 %v925
      %v1239 = vpop.f32.mrf.mxu0
      %v1240 = vadd.f32 0.0, %v1239
      %v1241 = vpop.f32.mrf.mxu0
      %v1242 = vadd.f32 0.0, %v1241
      %1243 = vmatmul.bf16.gmra.mxu0 %v928
      %v1244 = vpop.f32.mrf.mxu0
      %v1245 = vadd.f32 0.0, %v1244
      %v1246 = vpop.f32.mrf.mxu0
      %v1247 = vadd.f32 0.0, %v1246
      %1248 = vmatmul.bf16.gmra.mxu0 %v931
      %v1249 = vpop.f32.mrf.mxu0
      %v1250 = vadd.f32 0.0, %v1249
      %v1251 = vpop.f32.mrf.mxu0
      %v1252 = vadd.f32 0.0, %v1251
      %1253 = vmatmul.bf16.gmra.mxu0 %v934
      %v1254 = vpop.f32.mrf.mxu0
      %v1255 = vadd.f32 0.0, %v1254
      %v1256 = vpop.f32.mrf.mxu0
      %v1257 = vadd.f32 0.0, %v1256
      %1258 = vmatmul.bf16.gmra.mxu0 %v937
      %v1259 = vpop.f32.mrf.mxu0
      %v1260 = vadd.f32 0.0, %v1259
      %v1261 = vpop.f32.mrf.mxu0
      %v1262 = vadd.f32 0.0, %v1261
      %1263 = vmatmul.bf16.gmra.mxu0 %v940
      %v1264 = vpop.f32.mrf.mxu0
      %v1265 = vadd.f32 0.0, %v1264
      %v1266 = vpop.f32.mrf.mxu0
      %v1267 = vadd.f32 0.0, %v1266
      %1268 = vmatmul.bf16.gmra.mxu0 %v943
      %v1269 = vpop.f32.mrf.mxu0
      %v1270 = vadd.f32 0.0, %v1269
      %v1271 = vpop.f32.mrf.mxu0
      %v1272 = vadd.f32 0.0, %v1271
      %1273 = vmatmul.bf16.gmra.mxu0 %v946
      %v1274 = vpop.f32.mrf.mxu0
      %v1275 = vadd.f32 0.0, %v1274
      %v1276 = vpop.f32.mrf.mxu0
      %v1277 = vadd.f32 0.0, %v1276
      %1278 = vmatmul.bf16.gmra.mxu0 %v949
      %v1279 = vpop.f32.mrf.mxu0
      %v1280 = vadd.f32 0.0, %v1279
      %v1281 = vpop.f32.mrf.mxu0
      %v1282 = vadd.f32 0.0, %v1281
      %1283 = vmatmul.bf16.gmra.mxu0 %v1225
      %v1284 = vpop.f32.mrf.mxu0
      %v1285 = vadd.f32 0.0, %v1284
      %v1286 = vpop.f32.mrf.mxu0
      %v1287 = vadd.f32 0.0, %v1286
      %1288 = vdwg.mxu0
      %v1289 = vadd.f32 %v1197, %v1240
      %v1290 = vadd.f32 %v1198, %v1242
      %v1291 = vadd.f32 %v1199, %v1245
      %v1292 = vadd.f32 %v1200, %v1247
      %v1293 = vadd.f32 %v1201, %v1250
      %v1294 = vadd.f32 %v1202, %v1252
      %v1295 = vadd.f32 %v1203, %v1255
      %v1296 = vadd.f32 %v1204, %v1257
      %v1297 = vadd.f32 %v1205, %v1260
      %v1298 = vadd.f32 %v1206, %v1262
      %v1299 = vadd.f32 %v1207, %v1265
      %v1300 = vadd.f32 %v1208, %v1267
      %v1301 = vadd.f32 %v1209, %v1270
      %v1302 = vadd.f32 %v1210, %v1272
      %v1303 = vadd.f32 %v1211, %v1275
      %v1304 = vadd.f32 %v1212, %v1277
      %v1305 = vadd.f32 %v1213, %v1280
      %v1306 = vadd.f32 %v1214, %v1282
      %v1307 = vadd.f32 %v1215, %v1285
      %v1308 = vadd.f32 %v1216, %v1287
      %s1309 = scalar_lea.vmem %s1, 12
      %v1310 = vld [vmem:[%s1309] sm:$0x3]
      %v1313 = vunpack.c.l.b16 %v554
      %v1314 = vunpack.c.l.b16 %v555
      %v1315 = vpack.c.b16 %v1314, %v1313
      %v1317 = vsel %vm633, %v1315, 0
      %v1320 = vsel %vm664, %v1310, 0
      %1322 = vmatpush.bf16.msra.mxu0 0
      %1323 = vmatpush.bf16.msra.mxu0 0
      %1324 = vmatpush.bf16.msra.mxu0 0
      %1325 = vmatpush.bf16.msra.mxu0 0
      %1326 = vmatpush.bf16.msra.mxu0 0
      %1327 = vmatpush.bf16.msra.mxu0 0
      %1328 = vmatpush.bf16.msra.mxu0 0
      %1329 = vmatpush.bf16.msra.mxu0 %v1320
      %1330 = vmatmul.bf16.gmra.mxu0 %v784
      %v1331 = vpop.f32.mrf.mxu0
      %v1332 = vadd.f32 0.0, %v1331
      %v1333 = vpop.f32.mrf.mxu0
      %v1334 = vadd.f32 0.0, %v1333
      %1335 = vmatmul.bf16.gmra.mxu0 %v787
      %v1336 = vpop.f32.mrf.mxu0
      %v1337 = vadd.f32 0.0, %v1336
      %v1338 = vpop.f32.mrf.mxu0
      %v1339 = vadd.f32 0.0, %v1338
      %1340 = vmatmul.bf16.gmra.mxu0 %v790
      %v1341 = vpop.f32.mrf.mxu0
      %v1342 = vadd.f32 0.0, %v1341
      %v1343 = vpop.f32.mrf.mxu0
      %v1344 = vadd.f32 0.0, %v1343
      %1345 = vmatmul.bf16.gmra.mxu0 %v793
      %v1346 = vpop.f32.mrf.mxu0
      %v1347 = vadd.f32 0.0, %v1346
      %v1348 = vpop.f32.mrf.mxu0
      %v1349 = vadd.f32 0.0, %v1348
      %1350 = vmatmul.bf16.gmra.mxu0 %v796
      %v1351 = vpop.f32.mrf.mxu0
      %v1352 = vadd.f32 0.0, %v1351
      %v1353 = vpop.f32.mrf.mxu0
      %v1354 = vadd.f32 0.0, %v1353
      %1355 = vmatmul.bf16.gmra.mxu0 %v799
      %v1356 = vpop.f32.mrf.mxu0
      %v1357 = vadd.f32 0.0, %v1356
      %v1358 = vpop.f32.mrf.mxu0
      %v1359 = vadd.f32 0.0, %v1358
      %1360 = vmatmul.bf16.gmra.mxu0 %v802
      %v1361 = vpop.f32.mrf.mxu0
      %v1362 = vadd.f32 0.0, %v1361
      %v1363 = vpop.f32.mrf.mxu0
      %v1364 = vadd.f32 0.0, %v1363
      %1365 = vmatmul.bf16.gmra.mxu0 %v805
      %v1366 = vpop.f32.mrf.mxu0
      %v1367 = vadd.f32 0.0, %v1366
      %v1368 = vpop.f32.mrf.mxu0
      %v1369 = vadd.f32 0.0, %v1368
      %1370 = vmatmul.bf16.gmra.mxu0 %v1041
      %v1371 = vpop.f32.mrf.mxu0
      %v1372 = vadd.f32 0.0, %v1371
      %v1373 = vpop.f32.mrf.mxu0
      %v1374 = vadd.f32 0.0, %v1373
      %1375 = vmatmul.bf16.gmra.mxu0 %v1317
      %v1376 = vpop.f32.mrf.mxu0
      %v1377 = vadd.f32 0.0, %v1376
      %v1378 = vpop.f32.mrf.mxu0
      %v1379 = vadd.f32 0.0, %v1378
      %1380 = vdwg.mxu0
      %v1381 = vadd.f32 %v1289, %v1332
      %v1382 = vadd.f32 %v1290, %v1334
      %v1383 = vadd.f32 %v1291, %v1337
      %v1384 = vadd.f32 %v1292, %v1339
      %v1385 = vadd.f32 %v1293, %v1342
      %v1386 = vadd.f32 %v1294, %v1344
      %v1387 = vadd.f32 %v1295, %v1347
      %v1388 = vadd.f32 %v1296, %v1349
      %v1389 = vadd.f32 %v1297, %v1352
      %v1390 = vadd.f32 %v1298, %v1354
      %v1391 = vadd.f32 %v1299, %v1357
      %v1392 = vadd.f32 %v1300, %v1359
      %v1393 = vadd.f32 %v1301, %v1362
      %v1394 = vadd.f32 %v1302, %v1364
      %v1395 = vadd.f32 %v1303, %v1367
      %v1396 = vadd.f32 %v1304, %v1369
      %v1397 = vadd.f32 %v1305, %v1372
      %v1398 = vadd.f32 %v1306, %v1374
      %v1399 = vadd.f32 %v1307, %v1377
      %v1400 = vadd.f32 %v1308, %v1379
      %s1401 = scalar_lea.vmem %s1, 14
      %v1402 = vld [vmem:[%s1401] sm:$0x3]
      %v1405 = vunpack.c.l.b16 %v352
      %v1406 = vunpack.c.l.b16 %v353
      %v1407 = vpack.c.b16 %v1406, %v1405
      %v1409 = vsel %vm633, %v1407, 0
      %v1412 = vsel %vm664, %v1402, 0
      %1414 = vmatpush.bf16.msra.mxu0 0
      %1415 = vmatpush.bf16.msra.mxu0 0
      %1416 = vmatpush.bf16.msra.mxu0 0
      %1417 = vmatpush.bf16.msra.mxu0 0
      %1418 = vmatpush.bf16.msra.mxu0 0
      %1419 = vmatpush.bf16.msra.mxu0 0
      %1420 = vmatpush.bf16.msra.mxu0 0
      %1421 = vmatpush.bf16.msra.mxu0 %v1412
      %1422 = vmatmul.bf16.gmra.mxu0 %v641
      %v1423 = vpop.f32.mrf.mxu0
      %v1424 = vadd.f32 0.0, %v1423
      %v1425 = vpop.f32.mrf.mxu0
      %v1426 = vadd.f32 0.0, %v1425
      %1427 = vmatmul.bf16.gmra.mxu0 %v644
      %v1428 = vpop.f32.mrf.mxu0
      %v1429 = vadd.f32 0.0, %v1428
      %v1430 = vpop.f32.mrf.mxu0
      %v1431 = vadd.f32 0.0, %v1430
      %1432 = vmatmul.bf16.gmra.mxu0 %v647
      %v1433 = vpop.f32.mrf.mxu0
      %v1434 = vadd.f32 0.0, %v1433
      %v1435 = vpop.f32.mrf.mxu0
      %v1436 = vadd.f32 0.0, %v1435
      %1437 = vmatmul.bf16.gmra.mxu0 %v650
      %v1438 = vpop.f32.mrf.mxu0
      %v1439 = vadd.f32 0.0, %v1438
      %v1440 = vpop.f32.mrf.mxu0
      %v1441 = vadd.f32 0.0, %v1440
      %1442 = vmatmul.bf16.gmra.mxu0 %v653
      %v1443 = vpop.f32.mrf.mxu0
      %v1444 = vadd.f32 0.0, %v1443
      %v1445 = vpop.f32.mrf.mxu0
      %v1446 = vadd.f32 0.0, %v1445
      %1447 = vmatmul.bf16.gmra.mxu0 %v656
      %v1448 = vpop.f32.mrf.mxu0
      %v1449 = vadd.f32 0.0, %v1448
      %v1450 = vpop.f32.mrf.mxu0
      %v1451 = vadd.f32 0.0, %v1450
      %1452 = vmatmul.bf16.gmra.mxu0 %v659
      %v1453 = vpop.f32.mrf.mxu0
      %v1454 = vadd.f32 0.0, %v1453
      %v1455 = vpop.f32.mrf.mxu0
      %v1456 = vadd.f32 0.0, %v1455
      %1457 = vmatmul.bf16.gmra.mxu0 %v662
      %v1458 = vpop.f32.mrf.mxu0
      %v1459 = vadd.f32 0.0, %v1458
      %v1460 = vpop.f32.mrf.mxu0
      %v1461 = vadd.f32 0.0, %v1460
      %1462 = vmatmul.bf16.gmra.mxu0 %v1133
      %v1463 = vpop.f32.mrf.mxu0
      %v1464 = vadd.f32 0.0, %v1463
      %v1465 = vpop.f32.mrf.mxu0
      %v1466 = vadd.f32 0.0, %v1465
      %1467 = vmatmul.bf16.gmra.mxu0 %v1409
      %v1468 = vpop.f32.mrf.mxu0
      %v1469 = vadd.f32 0.0, %v1468
      %v1470 = vpop.f32.mrf.mxu0
      %v1471 = vadd.f32 0.0, %v1470
      %1472 = vdwg.mxu0
      %v1473 = vadd.f32 %v1381, %v1424
      %v1474 = vadd.f32 %v1382, %v1426
      %v1475 = vadd.f32 %v1383, %v1429
      %v1476 = vadd.f32 %v1384, %v1431
      %v1477 = vadd.f32 %v1385, %v1434
      %v1478 = vadd.f32 %v1386, %v1436
      %v1479 = vadd.f32 %v1387, %v1439
      %v1480 = vadd.f32 %v1388, %v1441
      %v1481 = vadd.f32 %v1389, %v1444
      %v1482 = vadd.f32 %v1390, %v1446
      %v1483 = vadd.f32 %v1391, %v1449
      %v1484 = vadd.f32 %v1392, %v1451
      %v1485 = vadd.f32 %v1393, %v1454
      %v1486 = vadd.f32 %v1394, %v1456
      %v1487 = vadd.f32 %v1395, %v1459
      %v1488 = vadd.f32 %v1396, %v1461
      %v1489 = vadd.f32 %v1397, %v1464
      %v1490 = vadd.f32 %v1398, %v1466
      %v1491 = vadd.f32 %v1399, %v1469
      %v1492 = vadd.f32 %v1400, %v1471
      %s1493 = scalar_lea.vmem %s1, 16
      %v1494 = vld [vmem:[%s1493] sm:$0x3]
      %v1497 = vunpack.c.l.b16 %v578
      %v1498 = vunpack.c.l.b16 %v579
      %v1499 = vpack.c.b16 %v1498, %v1497
      %v1501 = vsel %vm633, %v1499, 0
      %v1504 = vsel %vm664, %v1494, 0
      %1506 = vmatpush.bf16.msra.mxu0 0
      %1507 = vmatpush.bf16.msra.mxu0 0
      %1508 = vmatpush.bf16.msra.mxu0 0
      %1509 = vmatpush.bf16.msra.mxu0 0
      %1510 = vmatpush.bf16.msra.mxu0 0
      %1511 = vmatpush.bf16.msra.mxu0 0
      %1512 = vmatpush.bf16.msra.mxu0 0
      %1513 = vmatpush.bf16.msra.mxu0 %v1504
      %1514 = vmatmul.bf16.gmra.mxu0 %v928
      %v1515 = vpop.f32.mrf.mxu0
      %v1516 = vadd.f32 0.0, %v1515
      %v1517 = vpop.f32.mrf.mxu0
      %v1518 = vadd.f32 0.0, %v1517
      %1519 = vmatmul.bf16.gmra.mxu0 %v931
      %v1520 = vpop.f32.mrf.mxu0
      %v1521 = vadd.f32 0.0, %v1520
      %v1522 = vpop.f32.mrf.mxu0
      %v1523 = vadd.f32 0.0, %v1522
      %1524 = vmatmul.bf16.gmra.mxu0 %v934
      %v1525 = vpop.f32.mrf.mxu0
      %v1526 = vadd.f32 0.0, %v1525
      %v1527 = vpop.f32.mrf.mxu0
      %v1528 = vadd.f32 0.0, %v1527
      %1529 = vmatmul.bf16.gmra.mxu0 %v937
      %v1530 = vpop.f32.mrf.mxu0
      %v1531 = vadd.f32 0.0, %v1530
      %v1532 = vpop.f32.mrf.mxu0
      %v1533 = vadd.f32 0.0, %v1532
      %1534 = vmatmul.bf16.gmra.mxu0 %v940
      %v1535 = vpop.f32.mrf.mxu0
      %v1536 = vadd.f32 0.0, %v1535
      %v1537 = vpop.f32.mrf.mxu0
      %v1538 = vadd.f32 0.0, %v1537
      %1539 = vmatmul.bf16.gmra.mxu0 %v943
      %v1540 = vpop.f32.mrf.mxu0
      %v1541 = vadd.f32 0.0, %v1540
      %v1542 = vpop.f32.mrf.mxu0
      %v1543 = vadd.f32 0.0, %v1542
      %1544 = vmatmul.bf16.gmra.mxu0 %v946
      %v1545 = vpop.f32.mrf.mxu0
      %v1546 = vadd.f32 0.0, %v1545
      %v1547 = vpop.f32.mrf.mxu0
      %v1548 = vadd.f32 0.0, %v1547
      %1549 = vmatmul.bf16.gmra.mxu0 %v949
      %v1550 = vpop.f32.mrf.mxu0
      %v1551 = vadd.f32 0.0, %v1550
      %v1552 = vpop.f32.mrf.mxu0
      %v1553 = vadd.f32 0.0, %v1552
      %1554 = vmatmul.bf16.gmra.mxu0 %v1225
      %v1555 = vpop.f32.mrf.mxu0
      %v1556 = vadd.f32 0.0, %v1555
      %v1557 = vpop.f32.mrf.mxu0
      %v1558 = vadd.f32 0.0, %v1557
      %1559 = vmatmul.bf16.gmra.mxu0 %v1501
      %v1560 = vpop.f32.mrf.mxu0
      %v1561 = vadd.f32 0.0, %v1560
      %v1562 = vpop.f32.mrf.mxu0
      %v1563 = vadd.f32 0.0, %v1562
      %1564 = vdwg.mxu0
      %v1565 = vadd.f32 %v1473, %v1516
      %v1566 = vadd.f32 %v1474, %v1518
      %v1567 = vadd.f32 %v1475, %v1521
      %v1568 = vadd.f32 %v1476, %v1523
      %v1569 = vadd.f32 %v1477, %v1526
      %v1570 = vadd.f32 %v1478, %v1528
      %v1571 = vadd.f32 %v1479, %v1531
      %v1572 = vadd.f32 %v1480, %v1533
      %v1573 = vadd.f32 %v1481, %v1536
      %v1574 = vadd.f32 %v1482, %v1538
      %v1575 = vadd.f32 %v1483, %v1541
      %v1576 = vadd.f32 %v1484, %v1543
      %v1577 = vadd.f32 %v1485, %v1546
      %v1578 = vadd.f32 %v1486, %v1548
      %v1579 = vadd.f32 %v1487, %v1551
      %v1580 = vadd.f32 %v1488, %v1553
      %v1581 = vadd.f32 %v1489, %v1556
      %v1582 = vadd.f32 %v1490, %v1558
      %v1583 = vadd.f32 %v1491, %v1561
      %v1584 = vadd.f32 %v1492, %v1563
      %v1585 = vld [vmem:[%s2] sm:$0x1]
      %v1587 = vperm.slane %v1585, 0
      %v1589 = vadd.f32 %v1565, %v1587
      %v1590 = vadd.f32 %v1566, %v1587
      %v1591 = vadd.f32 %v1567, %v1587
      %v1592 = vadd.f32 %v1568, %v1587
      %v1593 = vadd.f32 %v1569, %v1587
      %v1594 = vadd.f32 %v1570, %v1587
      %v1595 = vadd.f32 %v1571, %v1587
      %v1596 = vadd.f32 %v1572, %v1587
      %v1597 = vadd.f32 %v1573, %v1587
      %v1598 = vadd.f32 %v1574, %v1587
      %v1599 = vadd.f32 %v1575, %v1587
      %v1600 = vadd.f32 %v1576, %v1587
      %v1601 = vadd.f32 %v1577, %v1587
      %v1602 = vadd.f32 %v1578, %v1587
      %v1603 = vadd.f32 %v1579, %v1587
      %v1604 = vadd.f32 %v1580, %v1587
      %v1605 = vadd.f32 %v1581, %v1587
      %v1606 = vadd.f32 %v1582, %v1587
      %v1607 = vadd.f32 %v1583, %v1587
      %v1608 = vadd.f32 %v1584, %v1587
      %v1609 = vmax.f32 %v1589, 0.0
      %v1610 = vmax.f32 %v1590, 0.0
      %v1611 = vmax.f32 %v1591, 0.0
      %v1612 = vmax.f32 %v1592, 0.0
      %v1613 = vmax.f32 %v1593, 0.0
      %v1614 = vmax.f32 %v1594, 0.0
      %v1615 = vmax.f32 %v1595, 0.0
      %v1616 = vmax.f32 %v1596, 0.0
      %v1617 = vmax.f32 %v1597, 0.0
      %v1618 = vmax.f32 %v1598, 0.0
      %v1619 = vmax.f32 %v1599, 0.0
      %v1620 = vmax.f32 %v1600, 0.0
      %v1621 = vmax.f32 %v1601, 0.0
      %v1622 = vmax.f32 %v1602, 0.0
      %v1623 = vmax.f32 %v1603, 0.0
      %v1624 = vmax.f32 %v1604, 0.0
      %v1625 = vmax.f32 %v1605, 0.0
      %v1626 = vmax.f32 %v1606, 0.0
      %v1627 = vmax.f32 %v1607, 0.0
      %v1628 = vmax.f32 %v1608, 0.0
      %v1629 = vstv %s297
      %v1630 = vadd.s32 %v1629, 1
      %v1631 = vadd.s32 %v1629, 2
      %v1632 = vadd.s32 %v1629, 3
      %v1633 = vadd.s32 %v1629, 4
      %v1634 = vadd.s32 %v1629, 5
      %v1635 = vadd.s32 %v1629, 6
      %v1636 = vadd.s32 %v1629, 7
      %v1637 = vadd.s32 %v1629, 8
      %v1638 = vadd.s32 %v1629, 9
      %vm1639 = vcmp.ge.s32.totalorder %v1629, 0
      %vm1640 = vcmp.ge.s32.totalorder %v1630, 0
      %vm1641 = vcmp.ge.s32.totalorder %v1631, 0
      %vm1642 = vcmp.ge.s32.totalorder %v1632, 0
      %vm1643 = vcmp.ge.s32.totalorder %v1633, 0
      %vm1644 = vcmp.ge.s32.totalorder %v1634, 0
      %vm1645 = vcmp.ge.s32.totalorder %v1635, 0
      %vm1646 = vcmp.ge.s32.totalorder %v1636, 0
      %vm1647 = vcmp.ge.s32.totalorder %v1637, 0
      %vm1648 = vcmp.ge.s32.totalorder %v1638, 0
      %vm1649 = vcmp.lt.s32.totalorder %v1629, 16
      %vm1650 = vcmp.lt.s32.totalorder %v1630, 16
      %vm1651 = vcmp.lt.s32.totalorder %v1631, 16
      %vm1652 = vcmp.lt.s32.totalorder %v1632, 16
      %vm1653 = vcmp.lt.s32.totalorder %v1633, 16
      %vm1654 = vcmp.lt.s32.totalorder %v1634, 16
      %vm1655 = vcmp.lt.s32.totalorder %v1635, 16
      %vm1656 = vcmp.lt.s32.totalorder %v1636, 16
      %vm1657 = vcmp.lt.s32.totalorder %v1637, 16
      %vm1658 = vcmp.lt.s32.totalorder %v1638, 16
      %vm1659 = vmand %vm1639, %vm1649
      %vm1660 = vmand %vm1640, %vm1650
      %vm1661 = vmand %vm1641, %vm1651
      %vm1662 = vmand %vm1642, %vm1652
      %vm1663 = vmand %vm1643, %vm1653
      %vm1664 = vmand %vm1644, %vm1654
      %vm1665 = vmand %vm1645, %vm1655
      %vm1666 = vmand %vm1646, %vm1656
      %vm1667 = vmand %vm1647, %vm1657
      %vm1668 = vmand %vm1648, %vm1658
      %v1669 = vsel %vm1659, 1, 0
      %v1670 = vsel %vm1660, 1, 0
      %v1671 = vsel %vm1661, 1, 0
      %v1672 = vsel %vm1662, 1, 0
      %v1673 = vsel %vm1663, 1, 0
      %v1674 = vsel %vm1664, 1, 0
      %v1675 = vsel %vm1665, 1, 0
      %v1676 = vsel %vm1666, 1, 0
      %v1677 = vsel %vm1667, 1, 0
      %v1678 = vsel %vm1668, 1, 0
      %vm1679 = vcmp.eq.s32.totalorder %v1669, 1
      %vm1680 = vcmp.eq.s32.totalorder %v1670, 1
      %vm1681 = vcmp.eq.s32.totalorder %v1671, 1
      %vm1682 = vcmp.eq.s32.totalorder %v1672, 1
      %vm1683 = vcmp.eq.s32.totalorder %v1673, 1
      %vm1684 = vcmp.eq.s32.totalorder %v1674, 1
      %vm1685 = vcmp.eq.s32.totalorder %v1675, 1
      %vm1686 = vcmp.eq.s32.totalorder %v1676, 1
      %vm1687 = vcmp.eq.s32.totalorder %v1677, 1
      %vm1688 = vcmp.eq.s32.totalorder %v1678, 1
      %v1689 = vsel %vm1679, %v1609, 0.0
      %v1690 = vsel %vm1679, %v1610, 0.0
      %v1691 = vsel %vm1680, %v1611, 0.0
      %v1692 = vsel %vm1680, %v1612, 0.0
      %v1693 = vsel %vm1681, %v1613, 0.0
      %v1694 = vsel %vm1681, %v1614, 0.0
      %v1695 = vsel %vm1682, %v1615, 0.0
      %v1696 = vsel %vm1682, %v1616, 0.0
      %v1697 = vsel %vm1683, %v1617, 0.0
      %v1698 = vsel %vm1683, %v1618, 0.0
      %v1699 = vsel %vm1684, %v1619, 0.0
      %v1700 = vsel %vm1684, %v1620, 0.0
      %v1701 = vsel %vm1685, %v1621, 0.0
      %v1702 = vsel %vm1685, %v1622, 0.0
      %v1703 = vsel %vm1686, %v1623, 0.0
      %v1704 = vsel %vm1686, %v1624, 0.0
      %v1705 = vsel %vm1687, %v1625, 0.0
      %v1706 = vsel %vm1687, %v1626, 0.0
      %v1707 = vsel %vm1688, %v1627, 0.0
      %v1708 = vsel %vm1688, %v1628, 0.0
      %v1709 = vrot.slane %v1689, 7
      %v1710 = vrot.slane %v1691, 7
      %v1711 = vrot.slane %v1693, 7
      %v1712 = vrot.slane %v1695, 7
      %v1713 = vrot.slane %v1697, 7
      %v1714 = vrot.slane %v1699, 7
      %v1715 = vrot.slane %v1701, 7
      %v1716 = vrot.slane %v1703, 7
      %v1717 = vrot.slane %v1705, 7
      %v1718 = vrot.slane %v1707, 7
      %v1719 = vrot.slane %v1690, 7
      %v1720 = vrot.slane %v1692, 7
      %v1721 = vrot.slane %v1694, 7
      %v1722 = vrot.slane %v1696, 7
      %v1723 = vrot.slane %v1698, 7
      %v1724 = vrot.slane %v1700, 7
      %v1725 = vrot.slane %v1702, 7
      %v1726 = vrot.slane %v1704, 7
      %v1727 = vrot.slane %v1706, 7
      %v1728 = vrot.slane %v1708, 7
      %v1729 = vsel %vm402, %v1709, %v1719
      %v1730 = vsel %vm402, %v1710, %v1720
      %v1731 = vsel %vm402, %v1711, %v1721
      %v1732 = vsel %vm402, %v1712, %v1722
      %v1733 = vsel %vm402, %v1713, %v1723
      %v1734 = vsel %vm402, %v1714, %v1724
      %v1735 = vsel %vm402, %v1715, %v1725
      %v1736 = vsel %vm402, %v1716, %v1726
      %v1737 = vsel %vm402, %v1717, %v1727
      %v1738 = vsel %vm402, %v1718, %v1728
      %v1739 = vsel %vm402, %v1719, %v1709
      %v1740 = vsel %vm402, %v1720, %v1710
      %v1741 = vsel %vm402, %v1721, %v1711
      %v1742 = vsel %vm402, %v1722, %v1712
      %v1743 = vsel %vm402, %v1723, %v1713
      %v1744 = vsel %vm402, %v1724, %v1714
      %v1745 = vsel %vm402, %v1725, %v1715
      %v1746 = vsel %vm402, %v1726, %v1716
      %v1747 = vsel %vm402, %v1727, %v1717
      %v1748 = vsel %vm402, %v1728, %v1718
      %v1749 = vsel %vm429, 0.0, %v1739
      %v1750 = vsel %vm430, 0.0, %v1729
      %v1751 = vsel %vm429, 0.0, %v1740
      %v1752 = vsel %vm430, 0.0, %v1730
      %v1753 = vsel %vm429, 0.0, %v1741
      %v1754 = vsel %vm430, 0.0, %v1731
      %v1755 = vsel %vm429, 0.0, %v1742
      %v1756 = vsel %vm430, 0.0, %v1732
      %v1757 = vsel %vm429, 0.0, %v1743
      %v1758 = vsel %vm430, 0.0, %v1733
      %v1759 = vsel %vm429, 0.0, %v1744
      %v1760 = vsel %vm430, 0.0, %v1734
      %v1761 = vsel %vm429, 0.0, %v1745
      %v1762 = vsel %vm430, 0.0, %v1735
      %v1763 = vsel %vm429, 0.0, %v1746
      %v1764 = vsel %vm430, 0.0, %v1736
      %v1765 = vsel %vm429, 0.0, %v1747
      %v1766 = vsel %vm430, 0.0, %v1737
      %v1767 = vsel %vm429, 0.0, %v1748
      %v1768 = vsel %vm430, 0.0, %v1738
      %v1769 = vrot.slane %v1689, 1
      %v1770 = vrot.slane %v1691, 1
      %v1771 = vrot.slane %v1693, 1
      %v1772 = vrot.slane %v1695, 1
      %v1773 = vrot.slane %v1697, 1
      %v1774 = vrot.slane %v1699, 1
      %v1775 = vrot.slane %v1701, 1
      %v1776 = vrot.slane %v1703, 1
      %v1777 = vrot.slane %v1705, 1
      %v1778 = vrot.slane %v1707, 1
      %v1779 = vrot.slane %v1690, 1
      %v1780 = vrot.slane %v1692, 1
      %v1781 = vrot.slane %v1694, 1
      %v1782 = vrot.slane %v1696, 1
      %v1783 = vrot.slane %v1698, 1
      %v1784 = vrot.slane %v1700, 1
      %v1785 = vrot.slane %v1702, 1
      %v1786 = vrot.slane %v1704, 1
      %v1787 = vrot.slane %v1706, 1
      %v1788 = vrot.slane %v1708, 1
      %v1789 = vsel %vm479, %v1769, %v1779
      %v1790 = vsel %vm479, %v1770, %v1780
      %v1791 = vsel %vm479, %v1771, %v1781
      %v1792 = vsel %vm479, %v1772, %v1782
      %v1793 = vsel %vm479, %v1773, %v1783
      %v1794 = vsel %vm479, %v1774, %v1784
      %v1795 = vsel %vm479, %v1775, %v1785
      %v1796 = vsel %vm479, %v1776, %v1786
      %v1797 = vsel %vm479, %v1777, %v1787
      %v1798 = vsel %vm479, %v1778, %v1788
      %v1799 = vsel %vm479, %v1779, %v1769
      %v1800 = vsel %vm479, %v1780, %v1770
      %v1801 = vsel %vm479, %v1781, %v1771
      %v1802 = vsel %vm479, %v1782, %v1772
      %v1803 = vsel %vm479, %v1783, %v1773
      %v1804 = vsel %vm479, %v1784, %v1774
      %v1805 = vsel %vm479, %v1785, %v1775
      %v1806 = vsel %vm479, %v1786, %v1776
      %v1807 = vsel %vm479, %v1787, %v1777
      %v1808 = vsel %vm479, %v1788, %v1778
      %v1809 = vsel %vm506, 0.0, %v1789
      %v1810 = vsel %vm507, 0.0, %v1799
      %v1811 = vsel %vm506, 0.0, %v1790
      %v1812 = vsel %vm507, 0.0, %v1800
      %v1813 = vsel %vm506, 0.0, %v1791
      %v1814 = vsel %vm507, 0.0, %v1801
      %v1815 = vsel %vm506, 0.0, %v1792
      %v1816 = vsel %vm507, 0.0, %v1802
      %v1817 = vsel %vm506, 0.0, %v1793
      %v1818 = vsel %vm507, 0.0, %v1803
      %v1819 = vsel %vm506, 0.0, %v1794
      %v1820 = vsel %vm507, 0.0, %v1804
      %v1821 = vsel %vm506, 0.0, %v1795
      %v1822 = vsel %vm507, 0.0, %v1805
      %v1823 = vsel %vm506, 0.0, %v1796
      %v1824 = vsel %vm507, 0.0, %v1806
      %v1825 = vsel %vm506, 0.0, %v1797
      %v1826 = vsel %vm507, 0.0, %v1807
      %v1827 = vsel %vm506, 0.0, %v1798
      %v1828 = vsel %vm507, 0.0, %v1808
      %v1829 = vpack.c.bf16 %v1749, %v1749
      %v1830 = vpack.c.bf16 %v1750, %v1750
      %v1831 = vpack.c.bf16 %v1751, %v1751
      %v1832 = vpack.c.bf16 %v1752, %v1752
      %v1833 = vpack.c.bf16 %v1753, %v1753
      %v1834 = vpack.c.bf16 %v1754, %v1754
      %v1835 = vpack.c.bf16 %v1755, %v1755
      %v1836 = vpack.c.bf16 %v1756, %v1756
      %v1837 = vpack.c.bf16 %v1757, %v1757
      %v1838 = vpack.c.bf16 %v1758, %v1758
      %v1839 = vpack.c.bf16 %v1759, %v1759
      %v1840 = vpack.c.bf16 %v1760, %v1760
      %v1841 = vpack.c.bf16 %v1761, %v1761
      %v1842 = vpack.c.bf16 %v1762, %v1762
      %v1843 = vpack.c.bf16 %v1763, %v1763
      %v1844 = vpack.c.bf16 %v1764, %v1764
      %v1845 = vpack.c.bf16 %v1765, %v1765
      %v1846 = vpack.c.bf16 %v1766, %v1766
      %v1847 = vpack.c.bf16 %v1767, %v1767
      %v1848 = vpack.c.bf16 %v1768, %v1768
      %v1849 = vpack.c.bf16 %v1689, %v1689
      %v1850 = vpack.c.bf16 %v1690, %v1690
      %v1851 = vpack.c.bf16 %v1691, %v1691
      %v1852 = vpack.c.bf16 %v1692, %v1692
      %v1853 = vpack.c.bf16 %v1693, %v1693
      %v1854 = vpack.c.bf16 %v1694, %v1694
      %v1855 = vpack.c.bf16 %v1695, %v1695
      %v1856 = vpack.c.bf16 %v1696, %v1696
      %v1857 = vpack.c.bf16 %v1697, %v1697
      %v1858 = vpack.c.bf16 %v1698, %v1698
      %v1859 = vpack.c.bf16 %v1699, %v1699
      %v1860 = vpack.c.bf16 %v1700, %v1700
      %v1861 = vpack.c.bf16 %v1701, %v1701
      %v1862 = vpack.c.bf16 %v1702, %v1702
      %v1863 = vpack.c.bf16 %v1703, %v1703
      %v1864 = vpack.c.bf16 %v1704, %v1704
      %v1865 = vpack.c.bf16 %v1705, %v1705
      %v1866 = vpack.c.bf16 %v1706, %v1706
      %v1867 = vpack.c.bf16 %v1707, %v1707
      %v1868 = vpack.c.bf16 %v1708, %v1708
      %v1869 = vpack.c.bf16 %v1809, %v1809
      %v1870 = vpack.c.bf16 %v1810, %v1810
      %v1871 = vpack.c.bf16 %v1811, %v1811
      %v1872 = vpack.c.bf16 %v1812, %v1812
      %v1873 = vpack.c.bf16 %v1813, %v1813
      %v1874 = vpack.c.bf16 %v1814, %v1814
      %v1875 = vpack.c.bf16 %v1815, %v1815
      %v1876 = vpack.c.bf16 %v1816, %v1816
      %v1877 = vpack.c.bf16 %v1817, %v1817
      %v1878 = vpack.c.bf16 %v1818, %v1818
      %v1879 = vpack.c.bf16 %v1819, %v1819
      %v1880 = vpack.c.bf16 %v1820, %v1820
      %v1881 = vpack.c.bf16 %v1821, %v1821
      %v1882 = vpack.c.bf16 %v1822, %v1822
      %v1883 = vpack.c.bf16 %v1823, %v1823
      %v1884 = vpack.c.bf16 %v1824, %v1824
      %v1885 = vpack.c.bf16 %v1825, %v1825
      %v1886 = vpack.c.bf16 %v1826, %v1826
      %v1887 = vpack.c.bf16 %v1827, %v1827
      %v1888 = vpack.c.bf16 %v1828, %v1828
      %v1889 = vld [vmem:[%s3] sm:$0x3]
      %s1890 = scalar_lea.vmem %s3, 2
      %v1891 = vld [vmem:[%s1890] sm:$0x3]
      %v1908 = vunpack.c.l.b16 %v1849
      %v1909 = vunpack.c.l.b16 %v1850
      %v1910 = vunpack.c.l.b16 %v1851
      %v1911 = vunpack.c.l.b16 %v1852
      %v1912 = vunpack.c.l.b16 %v1853
      %v1913 = vunpack.c.l.b16 %v1854
      %v1914 = vunpack.c.l.b16 %v1855
      %v1915 = vunpack.c.l.b16 %v1856
      %v1916 = vunpack.c.l.b16 %v1857
      %v1917 = vunpack.c.l.b16 %v1858
      %v1918 = vunpack.c.l.b16 %v1859
      %v1919 = vunpack.c.l.b16 %v1860
      %v1920 = vunpack.c.l.b16 %v1861
      %v1921 = vunpack.c.l.b16 %v1862
      %v1922 = vunpack.c.l.b16 %v1863
      %v1923 = vunpack.c.l.b16 %v1864
      %v1924 = vpack.c.b16 %v1909, %v1908
      %v1925 = vpack.c.b16 %v1911, %v1910
      %v1926 = vpack.c.b16 %v1913, %v1912
      %v1927 = vpack.c.b16 %v1915, %v1914
      %v1928 = vpack.c.b16 %v1917, %v1916
      %v1929 = vpack.c.b16 %v1919, %v1918
      %v1930 = vpack.c.b16 %v1921, %v1920
      %v1931 = vpack.c.b16 %v1923, %v1922
      %v1933 = vsel %vm633, %v1924, 0
      %v1936 = vsel %vm633, %v1925, 0
      %v1939 = vsel %vm633, %v1926, 0
      %v1942 = vsel %vm633, %v1927, 0
      %v1945 = vsel %vm633, %v1928, 0
      %v1948 = vsel %vm633, %v1929, 0
      %v1951 = vsel %vm633, %v1930, 0
      %v1954 = vsel %vm633, %v1931, 0
      %v1957 = vsel %vm664, %v1891, 0
      %1959 = vmatpush.bf16.msra.mxu0 0
      %1960 = vmatpush.bf16.msra.mxu0 0
      %1961 = vmatpush.bf16.msra.mxu0 0
      %1962 = vmatpush.bf16.msra.mxu0 0
      %1963 = vmatpush.bf16.msra.mxu0 0
      %1964 = vmatpush.bf16.msra.mxu0 0
      %1965 = vmatpush.bf16.msra.mxu0 0
      %1966 = vmatpush.bf16.msra.mxu0 %v1957
      %1967 = vmatmul.bf16.gmra.mxu0 %v1933
      %v1968 = vpop.f32.mrf.mxu0
      %v1969 = vadd.f32 0.0, %v1968
      %v1970 = vpop.f32.mrf.mxu0
      %v1971 = vadd.f32 0.0, %v1970
      %1972 = vmatmul.bf16.gmra.mxu0 %v1936
      %v1973 = vpop.f32.mrf.mxu0
      %v1974 = vadd.f32 0.0, %v1973
      %v1975 = vpop.f32.mrf.mxu0
      %v1976 = vadd.f32 0.0, %v1975
      %1977 = vmatmul.bf16.gmra.mxu0 %v1939
      %v1978 = vpop.f32.mrf.mxu0
      %v1979 = vadd.f32 0.0, %v1978
      %v1980 = vpop.f32.mrf.mxu0
      %v1981 = vadd.f32 0.0, %v1980
      %1982 = vmatmul.bf16.gmra.mxu0 %v1942
      %v1983 = vpop.f32.mrf.mxu0
      %v1984 = vadd.f32 0.0, %v1983
      %v1985 = vpop.f32.mrf.mxu0
      %v1986 = vadd.f32 0.0, %v1985
      %1987 = vmatmul.bf16.gmra.mxu0 %v1945
      %v1988 = vpop.f32.mrf.mxu0
      %v1989 = vadd.f32 0.0, %v1988
      %v1990 = vpop.f32.mrf.mxu0
      %v1991 = vadd.f32 0.0, %v1990
      %1992 = vmatmul.bf16.gmra.mxu0 %v1948
      %v1993 = vpop.f32.mrf.mxu0
      %v1994 = vadd.f32 0.0, %v1993
      %v1995 = vpop.f32.mrf.mxu0
      %v1996 = vadd.f32 0.0, %v1995
      %1997 = vmatmul.bf16.gmra.mxu0 %v1951
      %v1998 = vpop.f32.mrf.mxu0
      %v1999 = vadd.f32 0.0, %v1998
      %v2000 = vpop.f32.mrf.mxu0
      %v2001 = vadd.f32 0.0, %v2000
      %2002 = vmatmul.bf16.gmra.mxu0 %v1954
      %v2003 = vpop.f32.mrf.mxu0
      %v2004 = vadd.f32 0.0, %v2003
      %v2005 = vpop.f32.mrf.mxu0
      %v2006 = vadd.f32 0.0, %v2005
      %2007 = vdwg.mxu0
      %v2024 = vunpack.c.l.b16 %v1829
      %v2025 = vunpack.c.l.b16 %v1830
      %v2026 = vunpack.c.l.b16 %v1831
      %v2027 = vunpack.c.l.b16 %v1832
      %v2028 = vunpack.c.l.b16 %v1833
      %v2029 = vunpack.c.l.b16 %v1834
      %v2030 = vunpack.c.l.b16 %v1835
      %v2031 = vunpack.c.l.b16 %v1836
      %v2032 = vunpack.c.l.b16 %v1837
      %v2033 = vunpack.c.l.b16 %v1838
      %v2034 = vunpack.c.l.b16 %v1839
      %v2035 = vunpack.c.l.b16 %v1840
      %v2036 = vunpack.c.l.b16 %v1841
      %v2037 = vunpack.c.l.b16 %v1842
      %v2038 = vunpack.c.l.b16 %v1843
      %v2039 = vunpack.c.l.b16 %v1844
      %v2040 = vpack.c.b16 %v2025, %v2024
      %v2041 = vpack.c.b16 %v2027, %v2026
      %v2042 = vpack.c.b16 %v2029, %v2028
      %v2043 = vpack.c.b16 %v2031, %v2030
      %v2044 = vpack.c.b16 %v2033, %v2032
      %v2045 = vpack.c.b16 %v2035, %v2034
      %v2046 = vpack.c.b16 %v2037, %v2036
      %v2047 = vpack.c.b16 %v2039, %v2038
      %v2049 = vsel %vm633, %v2040, 0
      %v2052 = vsel %vm633, %v2041, 0
      %v2055 = vsel %vm633, %v2042, 0
      %v2058 = vsel %vm633, %v2043, 0
      %v2061 = vsel %vm633, %v2044, 0
      %v2064 = vsel %vm633, %v2045, 0
      %v2067 = vsel %vm633, %v2046, 0
      %v2070 = vsel %vm633, %v2047, 0
      %v2073 = vsel %vm664, %v1889, 0
      %2075 = vmatpush.bf16.msra.mxu0 0
      %2076 = vmatpush.bf16.msra.mxu0 0
      %2077 = vmatpush.bf16.msra.mxu0 0
      %2078 = vmatpush.bf16.msra.mxu0 0
      %2079 = vmatpush.bf16.msra.mxu0 0
      %2080 = vmatpush.bf16.msra.mxu0 0
      %2081 = vmatpush.bf16.msra.mxu0 0
      %2082 = vmatpush.bf16.msra.mxu0 %v2073
      %2083 = vmatmul.bf16.gmra.mxu0 %v2049
      %v2084 = vpop.f32.mrf.mxu0
      %v2085 = vadd.f32 %v1969, %v2084
      %v2086 = vpop.f32.mrf.mxu0
      %v2087 = vadd.f32 %v1971, %v2086
      %2088 = vmatmul.bf16.gmra.mxu0 %v2052
      %v2089 = vpop.f32.mrf.mxu0
      %v2090 = vadd.f32 %v1974, %v2089
      %v2091 = vpop.f32.mrf.mxu0
      %v2092 = vadd.f32 %v1976, %v2091
      %2093 = vmatmul.bf16.gmra.mxu0 %v2055
      %v2094 = vpop.f32.mrf.mxu0
      %v2095 = vadd.f32 %v1979, %v2094
      %v2096 = vpop.f32.mrf.mxu0
      %v2097 = vadd.f32 %v1981, %v2096
      %2098 = vmatmul.bf16.gmra.mxu0 %v2058
      %v2099 = vpop.f32.mrf.mxu0
      %v2100 = vadd.f32 %v1984, %v2099
      %v2101 = vpop.f32.mrf.mxu0
      %v2102 = vadd.f32 %v1986, %v2101
      %2103 = vmatmul.bf16.gmra.mxu0 %v2061
      %v2104 = vpop.f32.mrf.mxu0
      %v2105 = vadd.f32 %v1989, %v2104
      %v2106 = vpop.f32.mrf.mxu0
      %v2107 = vadd.f32 %v1991, %v2106
      %2108 = vmatmul.bf16.gmra.mxu0 %v2064
      %v2109 = vpop.f32.mrf.mxu0
      %v2110 = vadd.f32 %v1994, %v2109
      %v2111 = vpop.f32.mrf.mxu0
      %v2112 = vadd.f32 %v1996, %v2111
      %2113 = vmatmul.bf16.gmra.mxu0 %v2067
      %v2114 = vpop.f32.mrf.mxu0
      %v2115 = vadd.f32 %v1999, %v2114
      %v2116 = vpop.f32.mrf.mxu0
      %v2117 = vadd.f32 %v2001, %v2116
      %2118 = vmatmul.bf16.gmra.mxu0 %v2070
      %v2119 = vpop.f32.mrf.mxu0
      %v2120 = vadd.f32 %v2004, %v2119
      %v2121 = vpop.f32.mrf.mxu0
      %v2122 = vadd.f32 %v2006, %v2121
      %2123 = vdwg.mxu0
      %s2124 = scalar_lea.vmem %s3, 4
      %v2125 = vld [vmem:[%s2124] sm:$0x3]
      %v2142 = vunpack.c.l.b16 %v1869
      %v2143 = vunpack.c.l.b16 %v1870
      %v2144 = vunpack.c.l.b16 %v1871
      %v2145 = vunpack.c.l.b16 %v1872
      %v2146 = vunpack.c.l.b16 %v1873
      %v2147 = vunpack.c.l.b16 %v1874
      %v2148 = vunpack.c.l.b16 %v1875
      %v2149 = vunpack.c.l.b16 %v1876
      %v2150 = vunpack.c.l.b16 %v1877
      %v2151 = vunpack.c.l.b16 %v1878
      %v2152 = vunpack.c.l.b16 %v1879
      %v2153 = vunpack.c.l.b16 %v1880
      %v2154 = vunpack.c.l.b16 %v1881
      %v2155 = vunpack.c.l.b16 %v1882
      %v2156 = vunpack.c.l.b16 %v1883
      %v2157 = vunpack.c.l.b16 %v1884
      %v2158 = vpack.c.b16 %v2143, %v2142
      %v2159 = vpack.c.b16 %v2145, %v2144
      %v2160 = vpack.c.b16 %v2147, %v2146
      %v2161 = vpack.c.b16 %v2149, %v2148
      %v2162 = vpack.c.b16 %v2151, %v2150
      %v2163 = vpack.c.b16 %v2153, %v2152
      %v2164 = vpack.c.b16 %v2155, %v2154
      %v2165 = vpack.c.b16 %v2157, %v2156
      %v2167 = vsel %vm633, %v2158, 0
      %v2170 = vsel %vm633, %v2159, 0
      %v2173 = vsel %vm633, %v2160, 0
      %v2176 = vsel %vm633, %v2161, 0
      %v2179 = vsel %vm633, %v2162, 0
      %v2182 = vsel %vm633, %v2163, 0
      %v2185 = vsel %vm633, %v2164, 0
      %v2188 = vsel %vm633, %v2165, 0
      %v2191 = vsel %vm664, %v2125, 0
      %2193 = vmatpush.bf16.msra.mxu0 0
      %2194 = vmatpush.bf16.msra.mxu0 0
      %2195 = vmatpush.bf16.msra.mxu0 0
      %2196 = vmatpush.bf16.msra.mxu0 0
      %2197 = vmatpush.bf16.msra.mxu0 0
      %2198 = vmatpush.bf16.msra.mxu0 0
      %2199 = vmatpush.bf16.msra.mxu0 0
      %2200 = vmatpush.bf16.msra.mxu0 %v2191
      %2201 = vmatmul.bf16.gmra.mxu0 %v2167
      %v2202 = vpop.f32.mrf.mxu0
      %v2203 = vadd.f32 0.0, %v2202
      %v2204 = vpop.f32.mrf.mxu0
      %v2205 = vadd.f32 0.0, %v2204
      %2206 = vmatmul.bf16.gmra.mxu0 %v2170
      %v2207 = vpop.f32.mrf.mxu0
      %v2208 = vadd.f32 0.0, %v2207
      %v2209 = vpop.f32.mrf.mxu0
      %v2210 = vadd.f32 0.0, %v2209
      %2211 = vmatmul.bf16.gmra.mxu0 %v2173
      %v2212 = vpop.f32.mrf.mxu0
      %v2213 = vadd.f32 0.0, %v2212
      %v2214 = vpop.f32.mrf.mxu0
      %v2215 = vadd.f32 0.0, %v2214
      %2216 = vmatmul.bf16.gmra.mxu0 %v2176
      %v2217 = vpop.f32.mrf.mxu0
      %v2218 = vadd.f32 0.0, %v2217
      %v2219 = vpop.f32.mrf.mxu0
      %v2220 = vadd.f32 0.0, %v2219
      %2221 = vmatmul.bf16.gmra.mxu0 %v2179
      %v2222 = vpop.f32.mrf.mxu0
      %v2223 = vadd.f32 0.0, %v2222
      %v2224 = vpop.f32.mrf.mxu0
      %v2225 = vadd.f32 0.0, %v2224
      %2226 = vmatmul.bf16.gmra.mxu0 %v2182
      %v2227 = vpop.f32.mrf.mxu0
      %v2228 = vadd.f32 0.0, %v2227
      %v2229 = vpop.f32.mrf.mxu0
      %v2230 = vadd.f32 0.0, %v2229
      %2231 = vmatmul.bf16.gmra.mxu0 %v2185
      %v2232 = vpop.f32.mrf.mxu0
      %v2233 = vadd.f32 0.0, %v2232
      %v2234 = vpop.f32.mrf.mxu0
      %v2235 = vadd.f32 0.0, %v2234
      %2236 = vmatmul.bf16.gmra.mxu0 %v2188
      %v2237 = vpop.f32.mrf.mxu0
      %v2238 = vadd.f32 0.0, %v2237
      %v2239 = vpop.f32.mrf.mxu0
      %v2240 = vadd.f32 0.0, %v2239
      %2241 = vdwg.mxu0
      %v2242 = vadd.f32 %v2085, %v2203
      %v2243 = vadd.f32 %v2087, %v2205
      %v2244 = vadd.f32 %v2090, %v2208
      %v2245 = vadd.f32 %v2092, %v2210
      %v2246 = vadd.f32 %v2095, %v2213
      %v2247 = vadd.f32 %v2097, %v2215
      %v2248 = vadd.f32 %v2100, %v2218
      %v2249 = vadd.f32 %v2102, %v2220
      %v2250 = vadd.f32 %v2105, %v2223
      %v2251 = vadd.f32 %v2107, %v2225
      %v2252 = vadd.f32 %v2110, %v2228
      %v2253 = vadd.f32 %v2112, %v2230
      %v2254 = vadd.f32 %v2115, %v2233
      %v2255 = vadd.f32 %v2117, %v2235
      %v2256 = vadd.f32 %v2120, %v2238
      %v2257 = vadd.f32 %v2122, %v2240
      %s2258 = scalar_lea.vmem %s3, 6
      %v2259 = vld [vmem:[%s2258] sm:$0x3]
      %v2262 = vunpack.c.l.b16 %v1845
      %v2263 = vunpack.c.l.b16 %v1846
      %v2264 = vpack.c.b16 %v2263, %v2262
      %v2266 = vsel %vm633, %v2264, 0
      %v2269 = vsel %vm664, %v2259, 0
      %2271 = vmatpush.bf16.msra.mxu0 0
      %2272 = vmatpush.bf16.msra.mxu0 0
      %2273 = vmatpush.bf16.msra.mxu0 0
      %2274 = vmatpush.bf16.msra.mxu0 0
      %2275 = vmatpush.bf16.msra.mxu0 0
      %2276 = vmatpush.bf16.msra.mxu0 0
      %2277 = vmatpush.bf16.msra.mxu0 0
      %2278 = vmatpush.bf16.msra.mxu0 %v2269
      %2279 = vmatmul.bf16.gmra.mxu0 %v2052
      %v2280 = vpop.f32.mrf.mxu0
      %v2281 = vadd.f32 0.0, %v2280
      %v2282 = vpop.f32.mrf.mxu0
      %v2283 = vadd.f32 0.0, %v2282
      %2284 = vmatmul.bf16.gmra.mxu0 %v2055
      %v2285 = vpop.f32.mrf.mxu0
      %v2286 = vadd.f32 0.0, %v2285
      %v2287 = vpop.f32.mrf.mxu0
      %v2288 = vadd.f32 0.0, %v2287
      %2289 = vmatmul.bf16.gmra.mxu0 %v2058
      %v2290 = vpop.f32.mrf.mxu0
      %v2291 = vadd.f32 0.0, %v2290
      %v2292 = vpop.f32.mrf.mxu0
      %v2293 = vadd.f32 0.0, %v2292
      %2294 = vmatmul.bf16.gmra.mxu0 %v2061
      %v2295 = vpop.f32.mrf.mxu0
      %v2296 = vadd.f32 0.0, %v2295
      %v2297 = vpop.f32.mrf.mxu0
      %v2298 = vadd.f32 0.0, %v2297
      %2299 = vmatmul.bf16.gmra.mxu0 %v2064
      %v2300 = vpop.f32.mrf.mxu0
      %v2301 = vadd.f32 0.0, %v2300
      %v2302 = vpop.f32.mrf.mxu0
      %v2303 = vadd.f32 0.0, %v2302
      %2304 = vmatmul.bf16.gmra.mxu0 %v2067
      %v2305 = vpop.f32.mrf.mxu0
      %v2306 = vadd.f32 0.0, %v2305
      %v2307 = vpop.f32.mrf.mxu0
      %v2308 = vadd.f32 0.0, %v2307
      %2309 = vmatmul.bf16.gmra.mxu0 %v2070
      %v2310 = vpop.f32.mrf.mxu0
      %v2311 = vadd.f32 0.0, %v2310
      %v2312 = vpop.f32.mrf.mxu0
      %v2313 = vadd.f32 0.0, %v2312
      %2314 = vmatmul.bf16.gmra.mxu0 %v2266
      %v2315 = vpop.f32.mrf.mxu0
      %v2316 = vadd.f32 0.0, %v2315
      %v2317 = vpop.f32.mrf.mxu0
      %v2318 = vadd.f32 0.0, %v2317
      %2319 = vdwg.mxu0
      %v2320 = vadd.f32 %v2242, %v2281
      %v2321 = vadd.f32 %v2243, %v2283
      %v2322 = vadd.f32 %v2244, %v2286
      %v2323 = vadd.f32 %v2245, %v2288
      %v2324 = vadd.f32 %v2246, %v2291
      %v2325 = vadd.f32 %v2247, %v2293
      %v2326 = vadd.f32 %v2248, %v2296
      %v2327 = vadd.f32 %v2249, %v2298
      %v2328 = vadd.f32 %v2250, %v2301
      %v2329 = vadd.f32 %v2251, %v2303
      %v2330 = vadd.f32 %v2252, %v2306
      %v2331 = vadd.f32 %v2253, %v2308
      %v2332 = vadd.f32 %v2254, %v2311
      %v2333 = vadd.f32 %v2255, %v2313
      %v2334 = vadd.f32 %v2256, %v2316
      %v2335 = vadd.f32 %v2257, %v2318
      %s2336 = scalar_lea.vmem %s3, 8
      %v2337 = vld [vmem:[%s2336] sm:$0x3]
      %v2340 = vunpack.c.l.b16 %v1865
      %v2341 = vunpack.c.l.b16 %v1866
      %v2342 = vpack.c.b16 %v2341, %v2340
      %v2344 = vsel %vm633, %v2342, 0
      %v2347 = vsel %vm664, %v2337, 0
      %2349 = vmatpush.bf16.msra.mxu0 0
      %2350 = vmatpush.bf16.msra.mxu0 0
      %2351 = vmatpush.bf16.msra.mxu0 0
      %2352 = vmatpush.bf16.msra.mxu0 0
      %2353 = vmatpush.bf16.msra.mxu0 0
      %2354 = vmatpush.bf16.msra.mxu0 0
      %2355 = vmatpush.bf16.msra.mxu0 0
      %2356 = vmatpush.bf16.msra.mxu0 %v2347
      %2357 = vmatmul.bf16.gmra.mxu0 %v1936
      %v2358 = vpop.f32.mrf.mxu0
      %v2359 = vadd.f32 0.0, %v2358
      %v2360 = vpop.f32.mrf.mxu0
      %v2361 = vadd.f32 0.0, %v2360
      %2362 = vmatmul.bf16.gmra.mxu0 %v1939
      %v2363 = vpop.f32.mrf.mxu0
      %v2364 = vadd.f32 0.0, %v2363
      %v2365 = vpop.f32.mrf.mxu0
      %v2366 = vadd.f32 0.0, %v2365
      %2367 = vmatmul.bf16.gmra.mxu0 %v1942
      %v2368 = vpop.f32.mrf.mxu0
      %v2369 = vadd.f32 0.0, %v2368
      %v2370 = vpop.f32.mrf.mxu0
      %v2371 = vadd.f32 0.0, %v2370
      %2372 = vmatmul.bf16.gmra.mxu0 %v1945
      %v2373 = vpop.f32.mrf.mxu0
      %v2374 = vadd.f32 0.0, %v2373
      %v2375 = vpop.f32.mrf.mxu0
      %v2376 = vadd.f32 0.0, %v2375
      %2377 = vmatmul.bf16.gmra.mxu0 %v1948
      %v2378 = vpop.f32.mrf.mxu0
      %v2379 = vadd.f32 0.0, %v2378
      %v2380 = vpop.f32.mrf.mxu0
      %v2381 = vadd.f32 0.0, %v2380
      %2382 = vmatmul.bf16.gmra.mxu0 %v1951
      %v2383 = vpop.f32.mrf.mxu0
      %v2384 = vadd.f32 0.0, %v2383
      %v2385 = vpop.f32.mrf.mxu0
      %v2386 = vadd.f32 0.0, %v2385
      %2387 = vmatmul.bf16.gmra.mxu0 %v1954
      %v2388 = vpop.f32.mrf.mxu0
      %v2389 = vadd.f32 0.0, %v2388
      %v2390 = vpop.f32.mrf.mxu0
      %v2391 = vadd.f32 0.0, %v2390
      %2392 = vmatmul.bf16.gmra.mxu0 %v2344
      %v2393 = vpop.f32.mrf.mxu0
      %v2394 = vadd.f32 0.0, %v2393
      %v2395 = vpop.f32.mrf.mxu0
      %v2396 = vadd.f32 0.0, %v2395
      %2397 = vdwg.mxu0
      %v2398 = vadd.f32 %v2320, %v2359
      %v2399 = vadd.f32 %v2321, %v2361
      %v2400 = vadd.f32 %v2322, %v2364
      %v2401 = vadd.f32 %v2323, %v2366
      %v2402 = vadd.f32 %v2324, %v2369
      %v2403 = vadd.f32 %v2325, %v2371
      %v2404 = vadd.f32 %v2326, %v2374
      %v2405 = vadd.f32 %v2327, %v2376
      %v2406 = vadd.f32 %v2328, %v2379
      %v2407 = vadd.f32 %v2329, %v2381
      %v2408 = vadd.f32 %v2330, %v2384
      %v2409 = vadd.f32 %v2331, %v2386
      %v2410 = vadd.f32 %v2332, %v2389
      %v2411 = vadd.f32 %v2333, %v2391
      %v2412 = vadd.f32 %v2334, %v2394
      %v2413 = vadd.f32 %v2335, %v2396
      %s2414 = scalar_lea.vmem %s3, 10
      %v2415 = vld [vmem:[%s2414] sm:$0x3]
      %v2418 = vunpack.c.l.b16 %v1885
      %v2419 = vunpack.c.l.b16 %v1886
      %v2420 = vpack.c.b16 %v2419, %v2418
      %v2422 = vsel %vm633, %v2420, 0
      %v2425 = vsel %vm664, %v2415, 0
      %2427 = vmatpush.bf16.msra.mxu0 0
      %2428 = vmatpush.bf16.msra.mxu0 0
      %2429 = vmatpush.bf16.msra.mxu0 0
      %2430 = vmatpush.bf16.msra.mxu0 0
      %2431 = vmatpush.bf16.msra.mxu0 0
      %2432 = vmatpush.bf16.msra.mxu0 0
      %2433 = vmatpush.bf16.msra.mxu0 0
      %2434 = vmatpush.bf16.msra.mxu0 %v2425
      %2435 = vmatmul.bf16.gmra.mxu0 %v2170
      %v2436 = vpop.f32.mrf.mxu0
      %v2437 = vadd.f32 0.0, %v2436
      %v2438 = vpop.f32.mrf.mxu0
      %v2439 = vadd.f32 0.0, %v2438
      %2440 = vmatmul.bf16.gmra.mxu0 %v2173
      %v2441 = vpop.f32.mrf.mxu0
      %v2442 = vadd.f32 0.0, %v2441
      %v2443 = vpop.f32.mrf.mxu0
      %v2444 = vadd.f32 0.0, %v2443
      %2445 = vmatmul.bf16.gmra.mxu0 %v2176
      %v2446 = vpop.f32.mrf.mxu0
      %v2447 = vadd.f32 0.0, %v2446
      %v2448 = vpop.f32.mrf.mxu0
      %v2449 = vadd.f32 0.0, %v2448
      %2450 = vmatmul.bf16.gmra.mxu0 %v2179
      %v2451 = vpop.f32.mrf.mxu0
      %v2452 = vadd.f32 0.0, %v2451
      %v2453 = vpop.f32.mrf.mxu0
      %v2454 = vadd.f32 0.0, %v2453
      %2455 = vmatmul.bf16.gmra.mxu0 %v2182
      %v2456 = vpop.f32.mrf.mxu0
      %v2457 = vadd.f32 0.0, %v2456
      %v2458 = vpop.f32.mrf.mxu0
      %v2459 = vadd.f32 0.0, %v2458
      %2460 = vmatmul.bf16.gmra.mxu0 %v2185
      %v2461 = vpop.f32.mrf.mxu0
      %v2462 = vadd.f32 0.0, %v2461
      %v2463 = vpop.f32.mrf.mxu0
      %v2464 = vadd.f32 0.0, %v2463
      %2465 = vmatmul.bf16.gmra.mxu0 %v2188
      %v2466 = vpop.f32.mrf.mxu0
      %v2467 = vadd.f32 0.0, %v2466
      %v2468 = vpop.f32.mrf.mxu0
      %v2469 = vadd.f32 0.0, %v2468
      %2470 = vmatmul.bf16.gmra.mxu0 %v2422
      %v2471 = vpop.f32.mrf.mxu0
      %v2472 = vadd.f32 0.0, %v2471
      %v2473 = vpop.f32.mrf.mxu0
      %v2474 = vadd.f32 0.0, %v2473
      %2475 = vdwg.mxu0
      %v2476 = vadd.f32 %v2398, %v2437
      %v2477 = vadd.f32 %v2399, %v2439
      %v2478 = vadd.f32 %v2400, %v2442
      %v2479 = vadd.f32 %v2401, %v2444
      %v2480 = vadd.f32 %v2402, %v2447
      %v2481 = vadd.f32 %v2403, %v2449
      %v2482 = vadd.f32 %v2404, %v2452
      %v2483 = vadd.f32 %v2405, %v2454
      %v2484 = vadd.f32 %v2406, %v2457
      %v2485 = vadd.f32 %v2407, %v2459
      %v2486 = vadd.f32 %v2408, %v2462
      %v2487 = vadd.f32 %v2409, %v2464
      %v2488 = vadd.f32 %v2410, %v2467
      %v2489 = vadd.f32 %v2411, %v2469
      %v2490 = vadd.f32 %v2412, %v2472
      %v2491 = vadd.f32 %v2413, %v2474
      %s2492 = scalar_lea.vmem %s3, 12
      %v2493 = vld [vmem:[%s2492] sm:$0x3]
      %v2496 = vunpack.c.l.b16 %v1847
      %v2497 = vunpack.c.l.b16 %v1848
      %v2498 = vpack.c.b16 %v2497, %v2496
      %v2500 = vsel %vm633, %v2498, 0
      %v2503 = vsel %vm664, %v2493, 0
      %2505 = vmatpush.bf16.msra.mxu0 0
      %2506 = vmatpush.bf16.msra.mxu0 0
      %2507 = vmatpush.bf16.msra.mxu0 0
      %2508 = vmatpush.bf16.msra.mxu0 0
      %2509 = vmatpush.bf16.msra.mxu0 0
      %2510 = vmatpush.bf16.msra.mxu0 0
      %2511 = vmatpush.bf16.msra.mxu0 0
      %2512 = vmatpush.bf16.msra.mxu0 %v2503
      %2513 = vmatmul.bf16.gmra.mxu0 %v2055
      %v2514 = vpop.f32.mrf.mxu0
      %v2515 = vadd.f32 0.0, %v2514
      %v2516 = vpop.f32.mrf.mxu0
      %v2517 = vadd.f32 0.0, %v2516
      %2518 = vmatmul.bf16.gmra.mxu0 %v2058
      %v2519 = vpop.f32.mrf.mxu0
      %v2520 = vadd.f32 0.0, %v2519
      %v2521 = vpop.f32.mrf.mxu0
      %v2522 = vadd.f32 0.0, %v2521
      %2523 = vmatmul.bf16.gmra.mxu0 %v2061
      %v2524 = vpop.f32.mrf.mxu0
      %v2525 = vadd.f32 0.0, %v2524
      %v2526 = vpop.f32.mrf.mxu0
      %v2527 = vadd.f32 0.0, %v2526
      %2528 = vmatmul.bf16.gmra.mxu0 %v2064
      %v2529 = vpop.f32.mrf.mxu0
      %v2530 = vadd.f32 0.0, %v2529
      %v2531 = vpop.f32.mrf.mxu0
      %v2532 = vadd.f32 0.0, %v2531
      %2533 = vmatmul.bf16.gmra.mxu0 %v2067
      %v2534 = vpop.f32.mrf.mxu0
      %v2535 = vadd.f32 0.0, %v2534
      %v2536 = vpop.f32.mrf.mxu0
      %v2537 = vadd.f32 0.0, %v2536
      %2538 = vmatmul.bf16.gmra.mxu0 %v2070
      %v2539 = vpop.f32.mrf.mxu0
      %v2540 = vadd.f32 0.0, %v2539
      %v2541 = vpop.f32.mrf.mxu0
      %v2542 = vadd.f32 0.0, %v2541
      %2543 = vmatmul.bf16.gmra.mxu0 %v2266
      %v2544 = vpop.f32.mrf.mxu0
      %v2545 = vadd.f32 0.0, %v2544
      %v2546 = vpop.f32.mrf.mxu0
      %v2547 = vadd.f32 0.0, %v2546
      %2548 = vmatmul.bf16.gmra.mxu0 %v2500
      %v2549 = vpop.f32.mrf.mxu0
      %v2550 = vadd.f32 0.0, %v2549
      %v2551 = vpop.f32.mrf.mxu0
      %v2552 = vadd.f32 0.0, %v2551
      %2553 = vdwg.mxu0
      %v2554 = vadd.f32 %v2476, %v2515
      %v2555 = vadd.f32 %v2477, %v2517
      %v2556 = vadd.f32 %v2478, %v2520
      %v2557 = vadd.f32 %v2479, %v2522
      %v2558 = vadd.f32 %v2480, %v2525
      %v2559 = vadd.f32 %v2481, %v2527
      %v2560 = vadd.f32 %v2482, %v2530
      %v2561 = vadd.f32 %v2483, %v2532
      %v2562 = vadd.f32 %v2484, %v2535
      %v2563 = vadd.f32 %v2485, %v2537
      %v2564 = vadd.f32 %v2486, %v2540
      %v2565 = vadd.f32 %v2487, %v2542
      %v2566 = vadd.f32 %v2488, %v2545
      %v2567 = vadd.f32 %v2489, %v2547
      %v2568 = vadd.f32 %v2490, %v2550
      %v2569 = vadd.f32 %v2491, %v2552
      %s2570 = scalar_lea.vmem %s3, 14
      %v2571 = vld [vmem:[%s2570] sm:$0x3]
      %v2574 = vunpack.c.l.b16 %v1867
      %v2575 = vunpack.c.l.b16 %v1868
      %v2576 = vpack.c.b16 %v2575, %v2574
      %v2578 = vsel %vm633, %v2576, 0
      %v2581 = vsel %vm664, %v2571, 0
      %2583 = vmatpush.bf16.msra.mxu0 0
      %2584 = vmatpush.bf16.msra.mxu0 0
      %2585 = vmatpush.bf16.msra.mxu0 0
      %2586 = vmatpush.bf16.msra.mxu0 0
      %2587 = vmatpush.bf16.msra.mxu0 0
      %2588 = vmatpush.bf16.msra.mxu0 0
      %2589 = vmatpush.bf16.msra.mxu0 0
      %2590 = vmatpush.bf16.msra.mxu0 %v2581
      %2591 = vmatmul.bf16.gmra.mxu0 %v1939
      %v2592 = vpop.f32.mrf.mxu0
      %v2593 = vadd.f32 0.0, %v2592
      %v2594 = vpop.f32.mrf.mxu0
      %v2595 = vadd.f32 0.0, %v2594
      %2596 = vmatmul.bf16.gmra.mxu0 %v1942
      %v2597 = vpop.f32.mrf.mxu0
      %v2598 = vadd.f32 0.0, %v2597
      %v2599 = vpop.f32.mrf.mxu0
      %v2600 = vadd.f32 0.0, %v2599
      %2601 = vmatmul.bf16.gmra.mxu0 %v1945
      %v2602 = vpop.f32.mrf.mxu0
      %v2603 = vadd.f32 0.0, %v2602
      %v2604 = vpop.f32.mrf.mxu0
      %v2605 = vadd.f32 0.0, %v2604
      %2606 = vmatmul.bf16.gmra.mxu0 %v1948
      %v2607 = vpop.f32.mrf.mxu0
      %v2608 = vadd.f32 0.0, %v2607
      %v2609 = vpop.f32.mrf.mxu0
      %v2610 = vadd.f32 0.0, %v2609
      %2611 = vmatmul.bf16.gmra.mxu0 %v1951
      %v2612 = vpop.f32.mrf.mxu0
      %v2613 = vadd.f32 0.0, %v2612
      %v2614 = vpop.f32.mrf.mxu0
      %v2615 = vadd.f32 0.0, %v2614
      %2616 = vmatmul.bf16.gmra.mxu0 %v1954
      %v2617 = vpop.f32.mrf.mxu0
      %v2618 = vadd.f32 0.0, %v2617
      %v2619 = vpop.f32.mrf.mxu0
      %v2620 = vadd.f32 0.0, %v2619
      %2621 = vmatmul.bf16.gmra.mxu0 %v2344
      %v2622 = vpop.f32.mrf.mxu0
      %v2623 = vadd.f32 0.0, %v2622
      %v2624 = vpop.f32.mrf.mxu0
      %v2625 = vadd.f32 0.0, %v2624
      %2626 = vmatmul.bf16.gmra.mxu0 %v2578
      %v2627 = vpop.f32.mrf.mxu0
      %v2628 = vadd.f32 0.0, %v2627
      %v2629 = vpop.f32.mrf.mxu0
      %v2630 = vadd.f32 0.0, %v2629
      %2631 = vdwg.mxu0
      %v2632 = vadd.f32 %v2554, %v2593
      %v2633 = vadd.f32 %v2555, %v2595
      %v2634 = vadd.f32 %v2556, %v2598
      %v2635 = vadd.f32 %v2557, %v2600
      %v2636 = vadd.f32 %v2558, %v2603
      %v2637 = vadd.f32 %v2559, %v2605
      %v2638 = vadd.f32 %v2560, %v2608
      %v2639 = vadd.f32 %v2561, %v2610
      %v2640 = vadd.f32 %v2562, %v2613
      %v2641 = vadd.f32 %v2563, %v2615
      %v2642 = vadd.f32 %v2564, %v2618
      %v2643 = vadd.f32 %v2565, %v2620
      %v2644 = vadd.f32 %v2566, %v2623
      %v2645 = vadd.f32 %v2567, %v2625
      %v2646 = vadd.f32 %v2568, %v2628
      %v2647 = vadd.f32 %v2569, %v2630
      %s2648 = scalar_lea.vmem %s3, 16
      %v2649 = vld [vmem:[%s2648] sm:$0x3]
      %v2652 = vunpack.c.l.b16 %v1887
      %v2653 = vunpack.c.l.b16 %v1888
      %v2654 = vpack.c.b16 %v2653, %v2652
      %v2656 = vsel %vm633, %v2654, 0
      %v2659 = vsel %vm664, %v2649, 0
      %2661 = vmatpush.bf16.msra.mxu0 0
      %2662 = vmatpush.bf16.msra.mxu0 0
      %2663 = vmatpush.bf16.msra.mxu0 0
      %2664 = vmatpush.bf16.msra.mxu0 0
      %2665 = vmatpush.bf16.msra.mxu0 0
      %2666 = vmatpush.bf16.msra.mxu0 0
      %2667 = vmatpush.bf16.msra.mxu0 0
      %2668 = vmatpush.bf16.msra.mxu0 %v2659
      %2669 = vmatmul.bf16.gmra.mxu0 %v2173
      %v2670 = vpop.f32.mrf.mxu0
      %v2671 = vadd.f32 0.0, %v2670
      %v2672 = vpop.f32.mrf.mxu0
      %v2673 = vadd.f32 0.0, %v2672
      %2674 = vmatmul.bf16.gmra.mxu0 %v2176
      %v2675 = vpop.f32.mrf.mxu0
      %v2676 = vadd.f32 0.0, %v2675
      %v2677 = vpop.f32.mrf.mxu0
      %v2678 = vadd.f32 0.0, %v2677
      %2679 = vmatmul.bf16.gmra.mxu0 %v2179
      %v2680 = vpop.f32.mrf.mxu0
      %v2681 = vadd.f32 0.0, %v2680
      %v2682 = vpop.f32.mrf.mxu0
      %v2683 = vadd.f32 0.0, %v2682
      %2684 = vmatmul.bf16.gmra.mxu0 %v2182
      %v2685 = vpop.f32.mrf.mxu0
      %v2686 = vadd.f32 0.0, %v2685
      %v2687 = vpop.f32.mrf.mxu0
      %v2688 = vadd.f32 0.0, %v2687
      %2689 = vmatmul.bf16.gmra.mxu0 %v2185
      %v2690 = vpop.f32.mrf.mxu0
      %v2691 = vadd.f32 0.0, %v2690
      %v2692 = vpop.f32.mrf.mxu0
      %v2693 = vadd.f32 0.0, %v2692
      %2694 = vmatmul.bf16.gmra.mxu0 %v2188
      %v2695 = vpop.f32.mrf.mxu0
      %v2696 = vadd.f32 0.0, %v2695
      %v2697 = vpop.f32.mrf.mxu0
      %v2698 = vadd.f32 0.0, %v2697
      %2699 = vmatmul.bf16.gmra.mxu0 %v2422
      %v2700 = vpop.f32.mrf.mxu0
      %v2701 = vadd.f32 0.0, %v2700
      %v2702 = vpop.f32.mrf.mxu0
      %v2703 = vadd.f32 0.0, %v2702
      %2704 = vmatmul.bf16.gmra.mxu0 %v2656
      %v2705 = vpop.f32.mrf.mxu0
      %v2706 = vadd.f32 0.0, %v2705
      %v2707 = vpop.f32.mrf.mxu0
      %v2708 = vadd.f32 0.0, %v2707
      %2709 = vdwg.mxu0
      %v2710 = vadd.f32 %v2632, %v2671
      %v2711 = vadd.f32 %v2633, %v2673
      %v2712 = vadd.f32 %v2634, %v2676
      %v2713 = vadd.f32 %v2635, %v2678
      %v2714 = vadd.f32 %v2636, %v2681
      %v2715 = vadd.f32 %v2637, %v2683
      %v2716 = vadd.f32 %v2638, %v2686
      %v2717 = vadd.f32 %v2639, %v2688
      %v2718 = vadd.f32 %v2640, %v2691
      %v2719 = vadd.f32 %v2641, %v2693
      %v2720 = vadd.f32 %v2642, %v2696
      %v2721 = vadd.f32 %v2643, %v2698
      %v2722 = vadd.f32 %v2644, %v2701
      %v2723 = vadd.f32 %v2645, %v2703
      %v2724 = vadd.f32 %v2646, %v2706
      %v2725 = vadd.f32 %v2647, %v2708
      %v2726 = vld [vmem:[%s4] sm:$0x1]
      %v2728 = vperm.slane %v2726, 0
      %v2730 = vadd.f32 %v2710, %v2728
      %v2731 = vadd.f32 %v2711, %v2728
      %v2732 = vadd.f32 %v2712, %v2728
      %v2733 = vadd.f32 %v2713, %v2728
      %v2734 = vadd.f32 %v2714, %v2728
      %v2735 = vadd.f32 %v2715, %v2728
      %v2736 = vadd.f32 %v2716, %v2728
      %v2737 = vadd.f32 %v2717, %v2728
      %v2738 = vadd.f32 %v2718, %v2728
      %v2739 = vadd.f32 %v2719, %v2728
      %v2740 = vadd.f32 %v2720, %v2728
      %v2741 = vadd.f32 %v2721, %v2728
      %v2742 = vadd.f32 %v2722, %v2728
      %v2743 = vadd.f32 %v2723, %v2728
      %v2744 = vadd.f32 %v2724, %v2728
      %v2745 = vadd.f32 %v2725, %v2728
      %v2746 = vadd.f32 %v2730, %v358
      %v2747 = vadd.f32 %v2731, %v359
      %v2748 = vadd.f32 %v2732, %v360
      %v2749 = vadd.f32 %v2733, %v361
      %v2750 = vadd.f32 %v2734, %v362
      %v2751 = vadd.f32 %v2735, %v363
      %v2752 = vadd.f32 %v2736, %v364
      %v2753 = vadd.f32 %v2737, %v365
      %v2754 = vadd.f32 %v2738, %v366
      %v2755 = vadd.f32 %v2739, %v367
      %v2756 = vadd.f32 %v2740, %v368
      %v2757 = vadd.f32 %v2741, %v369
      %v2758 = vadd.f32 %v2742, %v370
      %v2759 = vadd.f32 %v2743, %v371
      %v2760 = vadd.f32 %v2744, %v372
      %v2761 = vadd.f32 %v2745, %v373
      %v2762 = vmax.f32 %v2746, 0.0
      %v2763 = vmax.f32 %v2747, 0.0
      %v2764 = vmax.f32 %v2748, 0.0
      %v2765 = vmax.f32 %v2749, 0.0
      %v2766 = vmax.f32 %v2750, 0.0
      %v2767 = vmax.f32 %v2751, 0.0
      %v2768 = vmax.f32 %v2752, 0.0
      %v2769 = vmax.f32 %v2753, 0.0
      %v2770 = vmax.f32 %v2754, 0.0
      %v2771 = vmax.f32 %v2755, 0.0
      %v2772 = vmax.f32 %v2756, 0.0
      %v2773 = vmax.f32 %v2757, 0.0
      %v2774 = vmax.f32 %v2758, 0.0
      %v2775 = vmax.f32 %v2759, 0.0
      %v2776 = vmax.f32 %v2760, 0.0
      %v2777 = vmax.f32 %v2761, 0.0
      %2778 = vst.msk [vmem:[%s248] sm:$0xff] %vm633, %v2762
      %2779 = vst.msk [vmem:[%s248 + $0x8] sm:$0xff] %vm633, %v2763
      %2780 = vst.msk [vmem:[%s248 + $0x10] sm:$0xff] %vm633, %v2764
      %2781 = vst.msk [vmem:[%s248 + $0x18] sm:$0xff] %vm633, %v2765
      %2782 = vst.msk [vmem:[%s248 + $0x20] sm:$0xff] %vm633, %v2766
      %2783 = vst.msk [vmem:[%s248 + $0x28] sm:$0xff] %vm633, %v2767
      %2784 = vst.msk [vmem:[%s248 + $0x30] sm:$0xff] %vm633, %v2768
      %2785 = vst.msk [vmem:[%s248 + $0x38] sm:$0xff] %vm633, %v2769
      %2786 = vst.msk [vmem:[%s248 + $0x40] sm:$0xff] %vm633, %v2770
      %2787 = vst.msk [vmem:[%s248 + $0x48] sm:$0xff] %vm633, %v2771
      %2788 = vst.msk [vmem:[%s248 + $0x50] sm:$0xff] %vm633, %v2772
      %2789 = vst.msk [vmem:[%s248 + $0x58] sm:$0xff] %vm633, %v2773
      %2790 = vst.msk [vmem:[%s248 + $0x60] sm:$0xff] %vm633, %v2774
      %2791 = vst.msk [vmem:[%s248 + $0x68] sm:$0xff] %vm633, %v2775
      %2792 = vst.msk [vmem:[%s248 + $0x70] sm:$0xff] %vm633, %v2776
      %2793 = vst.msk [vmem:[%s248 + $0x78] sm:$0xff] %vm633, %v2777
      %s2794 = smul.u32 8, %s21
      %p2795 = scmp.lt.s32.totalorder %s20, 1
      %s2796 = scalar_select %p2795, %s20, 1
      %p2797 = scmp.lt.s32.totalorder %s2794, 15
      %s2798 = scalar_select %p2797, %s2794, 15
      %s2799 = smul.addr %s2798, 2
      %s2800 = smul.addr %s2796, 32
      %s2801 = sadd.s32 %s2799, %s2800
      %s2802 = smul.addr %s2801, 8
      %s2803 = scalar_lea.vmem %s5, %s2802
      // Predicated region
      $region41: #{tpu_custom_call.1} parent=39 // pred_check
        %p2804 = pneg %p158
      $region42: #{tpu_custom_call.1} parent=39 // pred_check_branch
        %2806 = sbr.rel (%p2804) target = $region44
      $region43: #{tpu_custom_call.1} parent=39 // pred_region
        %s2807 = smul.u32 8, %s21
      $region44: #{tpu_custom_call.1} parent=39 // pred_fallthru
        _
    $region40: #{tpu_custom_call.1} parent=5 // pred_fallthru
      _
    %p2808 = scmp.le.s32.totalorder 2, %s11
    // Predicated region
    $region45: #{tpu_custom_call.1} parent=5 // pred_check
      %p2809 = pneg %p2808
    $region46: #{tpu_custom_call.1} parent=5 // pred_check_branch
      %2811 = sbr.rel (%p2809) target = $region48
    $region47: #{tpu_custom_call.1} parent=5 // pred_region
      %s2812 = ssub.s32 %s11, 2
      // Predicated region
      $region49: #{tpu_custom_call.1} parent=47 // pred_check
        %p2813 = pneg %p164
      $region50: #{tpu_custom_call.1} parent=47 // pred_check_branch
        %2815 = sbr.rel (%p2813) target = $region52
      $region51: #{tpu_custom_call.1} parent=47 // pred_region
        %s2816 = smul.u32 8, %s23
        %p2817 = scmp.lt.s32.totalorder %s22, 1
        %s2818 = scalar_select %p2817, %s22, 1
        %p2819 = scmp.lt.s32.totalorder %s2816, 15
        %s2820 = scalar_select %p2819, %s2816, 15
        %s2821 = smul.addr %s2820, 2
        %s2822 = smul.addr %s2818, 32
        %s2823 = sadd.s32 %s2821, %s2822
        %s2824 = smul.addr %s2823, 8
        %s2825 = scalar_lea.vmem %s5, %s2824
      $region52: #{tpu_custom_call.1} parent=47 // pred_fallthru
        _
    $region48: #{tpu_custom_call.1} parent=5 // pred_fallthru
      _
  $region6: #{tpu_custom_call.1} parent=0 // loop_footer
    %s15 = sadd.s32 1, %s11
  $region7: #{tpu_custom_call.1} parent=0 // loop_footer_branch
    %10 = sbr.rel target = $region3
  $region8: #{tpu_custom_call.1} parent=0 // loop_exit
    _

</llo_original>
